<compile_context>
chip_gen: v7x
topology: tpu7x:2x2x1
jax: 0.10.0
libtpu: 0.0.40
codegen_flags: <defaults>
</compile_context>

<pallas_src>
import functools

import jax
import jax.numpy as jnp
from jax.experimental import pallas as pl
from jax.experimental.pallas import tpu as pltpu

EPS = 1e-5
LANE = 128


# ----------------------------------------------------------------------------
# small helpers
# ----------------------------------------------------------------------------
def _round_up(v, m):
    return (v + m - 1) // m * m


def _pad_last(a, size):
    pad = size - a.shape[-1]
    if pad == 0:
        return a
    widths = [(0, 0)] * (a.ndim - 1) + [(0, pad)]
    return jnp.pad(a, widths)


def _pad2(a, rows, cols):
    return jnp.pad(a, ((0, rows - a.shape[0]), (0, cols - a.shape[1])))


def _vmem_limit_bytes(frac=0.7):
    """Generation-aware scoped-VMEM budget (v5e/v6e: 128 MiB, v7x: 64 MiB)."""
    cap = 128 * 1024 * 1024
    try:
        info = pltpu.get_tpu_info()
        cap = int(getattr(info, "vmem_capacity_bytes", cap))
    except Exception:
        pass
    return int(cap * frac)


def _pick_row_tile(m, cap):
    """Largest divisor of m that is a multiple of 8 and <= cap (fallback: m)."""
    best = None
    d = 1
    while d * d <= m:
        if m % d == 0:
            for c in (d, m // d):
                if c % 8 == 0 and c <= cap and (best is None or c > best):
                    best = c
        d += 1
    return best if best is not None else m


def _finalize_stats(partials, count):
    """partials: (T, 2, C) per-tile [sum, sumsq] -> (2, C) [mean, rstd]."""
    s = jnp.sum(partials[:, 0, :], axis=0)
    ss = jnp.sum(partials[:, 1, :], axis=0)
    mean = s / count
    var = jnp.maximum(ss / count - mean * mean, 0.0)      # biased variance
    rstd = jax.lax.rsqrt(var + EPS)
    # TODO(synk): for very large N*H*W, use a shifted/Welford combine here to
    # avoid E[x^2]-mean^2 cancellation.
    return jnp.stack([mean, rstd], axis=0).astype(jnp.float32)


# ----------------------------------------------------------------------------
# in-kernel helpers
# ----------------------------------------------------------------------------
def _partial_stats(h_f32):
    s = jnp.sum(h_f32, axis=0, keepdims=True)
    ss = jnp.sum(h_f32 * h_f32, axis=0, keepdims=True)
    return jnp.concatenate([s, ss], axis=0)                # (2, C)


def _bn(h_f32, stats_ref, g_ref, b_ref):
    mean = stats_ref[0:1, :]
    rstd = stats_ref[1:2, :]
    return (h_f32 - mean) * rstd * g_ref[...] + b_ref[...]


# ----------------------------------------------------------------------------
# kernels
# ----------------------------------------------------------------------------
def _conv1_kernel(x_ref, w1_ref, h1_ref, p1_ref):
    # (TM, Cp) @ (Cp, Pp) -> (TM, Pp) f32
    h1 = jnp.dot(x_ref[...].astype(w1_ref.dtype), w1_ref[...],
                 preferred_element_type=jnp.float32)
    h1_ref[...] = h1.astype(h1_ref.dtype)
    p1_ref[0] = _partial_stats(h1)


def _conv2_kernel(H, W, h1_ref, s1_ref, g1_ref, b1_ref, w2_ref,
                  h2_ref, p2_ref, pad_ref, acc_ref):
    Pp = h1_ref.shape[-1]
    HW = H * W
    h1 = h1_ref[...].astype(jnp.float32)                   # (HW, Pp)
    a1 = jnp.maximum(_bn(h1, s1_ref, g1_ref, b1_ref), 0.0)

    # Zero only the 1-pixel halo, write the interior in the compute dtype.
    zr = jnp.zeros((1, W + 2, Pp), pad_ref.dtype)
    zc = jnp.zeros((H + 2, 1, Pp), pad_ref.dtype)
    pad_ref[0:1, :, :] = zr
    pad_ref[H + 1:H + 2, :, :] = zr
    pad_ref[:, 0:1, :] = zc
    pad_ref[:, W + 1:W + 2, :] = zc
    pad_ref[1:H + 1, 1:W + 1, :] = a1.reshape(H, W, Pp).astype(pad_ref.dtype)

    # 3x3 conv = 9 shifted accumulating matmuls straight from pad_ref
    # (no im2col buffer, no (HW, 9*Pp) concat).
    # TODO(synk): when planes < 128, pack real channels of multiple taps into
    # one 128-lane group (and use >=256-wide K chunks on v6e/v7x).
    for t in range(9):
        dy, dx = divmod(t, 3)
        lhs = pad_ref[dy:dy + H, dx:dx + W, :].reshape(HW, Pp)
        contrib = jnp.dot(lhs, w2_ref[t], preferred_element_type=jnp.float32)
        if t == 0:
            acc_ref[...] = contrib
        else:
            acc_ref[...] += contrib

    h2 = acc_ref[...]
    h2_ref[...] = h2.astype(h2_ref.dtype)
    p2_ref[0] = _partial_stats(h2)


def _conv3_kernel(h2_ref, s2_ref, g2_ref, b2_ref, w3_ref, h3_ref, p3_ref):
    h2 = h2_ref[...].astype(jnp.float32)                   # (TM, Pp)
    a2 = jnp.maximum(_bn(h2, s2_ref, g2_ref, b2_ref), 0.0)
    h3 = jnp.dot(a2.astype(w3_ref.dtype), w3_ref[...],
                 preferred_element_type=jnp.float32)       # (TM, Cp) f32
    h3_ref[...] = h3.astype(h3_ref.dtype)
    p3_ref[0] = _partial_stats(h3)


def _residual_kernel(h3_ref, x_ref, s3_ref, g3_ref, b3_ref, out_ref):
    h3 = h3_ref[...].astype(jnp.float32)
    y = _bn(h3, s3_ref, g3_ref, b3_ref) + x_ref[...].astype(jnp.float32)
    out_ref[...] = jnp.maximum(y, 0.0).astype(out_ref.dtype)


# ----------------------------------------------------------------------------
# parameter preparation (lane-dense, pre-transposed; hoist/cache in real use)
# ----------------------------------------------------------------------------
def prepare_params(params, compute_dtype=jnp.bfloat16):
    f32 = jnp.float32
    cd = compute_dtype
    Cin, P = params["w1"].shape
    Cp = _round_up(Cin, LANE)
    Pp = _round_up(P, LANE)
    w2 = jnp.zeros((3, 3, Pp, Pp), f32).at[:, :, :P, :P].set(params["w2"])
    return {
        "w1": _pad2(params["w1"], Cp, Pp).astype(cd),        # (Cp, Pp)
        "w2": w2.reshape(9, Pp, Pp).astype(cd),              # per-tap (dy*3+dx)
        "w3": _pad2(params["w3"], Pp, Cp).astype(cd),        # (Pp, Cp)
        "g1": _pad_last(params["g1"], Pp).astype(f32),
        "b1": _pad_last(params["b1"], Pp).astype(f32),
        "g2": _pad_last(params["g2"], Pp).astype(f32),
        "b2": _pad_last(params["b2"], Pp).astype(f32),
        "g3": _pad_last(params["g3"], Cp).astype(f32),
        "b3": _pad_last(params["b3"], Cp).astype(f32),
    }


# ----------------------------------------------------------------------------
# forward
# ----------------------------------------------------------------------------
def bottleneck_forward_nhwc(x_nhwc, pp, out_channels):
    """Bottleneck forward in NHWC (stride=1, identity residual)."""
    N, H, W, Cin = x_nhwc.shape
    HW = H * W
    M = N * HW
    Cp, Pp = pp["w1"].shape
    cd = pp["w1"].dtype
    f32 = jnp.float32
    assert Cin == out_channels, "identity residual requires inplanes == planes*4"
    # TODO(synk): stride!=1 / downsample branch of the PyTorch module is not
    # implemented (default configuration has neither).

    vmem_limit = _vmem_limit_bytes()
    cparams = pltpu.CompilerParams(
        dimension_semantics=("parallel",),
        vmem_limit_bytes=vmem_limit,
    )

    row_cap = 2048 if vmem_limit >= 64 * 1024 * 1024 else 1024
    TM = _pick_row_tile(M, row_cap)
    nT = M // TM

    x2 = _pad_last(x_nhwc.reshape(M, Cin), Cp)              # (M, Cp) lane-dense

    def rows(c, depth=None):
        if depth is None:
            return pl.BlockSpec((TM, c), lambda i: (i, 0))
        return pl.BlockSpec((TM, c), lambda i: (i, 0),
                            pipeline_mode=pl.Buffered(depth))

    def img_rows(c):
        return pl.BlockSpec((HW, c), lambda n: (n, 0))

    def tile_stats(c):
        return pl.BlockSpec((1, 2, c), lambda i: (i, 0, 0))

    def full(shape):
        nd = len(shape)
        return pl.BlockSpec(shape, lambda i: (0,) * nd)

    # ---- stage 1: conv1 (1x1) + bn1 partial stats ---------------------------
    h1, p1 = pl.pallas_call(
        _conv1_kernel,
        grid=(nT,),
        in_specs=[rows(Cp), full((Cp, Pp))],
        out_specs=(rows(Pp), tile_stats(Pp)),
        out_shape=(jax.ShapeDtypeStruct((M, Pp), cd),
                   jax.ShapeDtypeStruct((nT, 2, Pp), f32)),
        compiler_params=cparams,
    )(x2, pp["w1"])
    s1 = _finalize_stats(p1, M)

    # ---- stage 2: bn1+relu, conv2 (3x3, 9 shifted matmuls) + bn2 stats ------
    # Kept per-image because of the 1-pixel halo.
    h2, p2 = pl.pallas_call(
        functools.partial(_conv2_kernel, H, W),
        grid=(N,),
        in_specs=[img_rows(Pp), full((2, Pp)), full((1, Pp)),
                  full((1, Pp)), full((9, Pp, Pp))],
        out_specs=(img_rows(Pp), tile_stats(Pp)),
        out_shape=(jax.ShapeDtypeStruct((M, Pp), cd),
                   jax.ShapeDtypeStruct((N, 2, Pp), f32)),
        scratch_shapes=[pltpu.VMEM((H + 2, W + 2, Pp), cd),   # padded activ.
                        pltpu.VMEM((HW, Pp), f32)],           # f32 accumulator
        compiler_params=cparams,
    )(h1, s1, pp["g1"], pp["b1"], pp["w2"])
    s2 = _finalize_stats(p2, M)

    # ---- stage 3: bn2+relu, conv3 (1x1) + bn3 partial stats -----------------
    h3, p3 = pl.pallas_call(
        _conv3_kernel,
        grid=(nT,),
        in_specs=[rows(Pp), full((2, Pp)), full((1, Pp)),
                  full((1, Pp)), full((Pp, Cp))],
        out_specs=(rows(Cp), tile_stats(Cp)),
        out_shape=(jax.ShapeDtypeStruct((M, Cp), cd),
                   jax.ShapeDtypeStruct((nT, 2, Cp), f32)),
        compiler_params=cparams,
    )(h2, s2, pp["g2"], pp["b2"], pp["w3"])
    s3 = _finalize_stats(p3, M)

    # ---- stage 4: bn3 + identity residual + relu (HBM-bandwidth bound) ------
    depth = 3 if nT >= 3 else None        # deeper buffering only when useful
    out2 = pl.pallas_call(
        _residual_kernel,
        grid=(nT,),
        in_specs=[rows(Cp, depth), rows(Cp, depth), full((2, Cp)),
                  full((1, Cp)), full((1, Cp))],
        out_specs=rows(Cp),
        out_shape=jax.ShapeDtypeStruct((M, Cp), x_nhwc.dtype),
        input_output_aliases={1: 0},      # write result into x2's HBM buffer
        compiler_params=cparams,
    )(h3, x2, s3, pp["g3"], pp["b3"])

    return out2[:, :out_channels].reshape(N, H, W, out_channels)


def bottleneck_forward(x_nchw, params, *, compute_dtype=jnp.bfloat16):
    """NCHW wrapper matching the PyTorch module's layout."""
    # TODO(synk): in a real pipeline keep activations NHWC end-to-end, call
    # prepare_params once, and call bottleneck_forward_nhwc directly to avoid
    # the NCHW<->NHWC HBM round trips and per-call weight padding.
    pp = prepare_params(params, compute_dtype)
    x_nhwc = jnp.transpose(x_nchw, (0, 2, 3, 1))
    out = bottleneck_forward_nhwc(x_nhwc, pp, params["w3"].shape[1])
    return jnp.transpose(out, (0, 3, 1, 2))


# ----------------------------------------------------------------------------
# parameters + pure-JAX reference
# ----------------------------------------------------------------------------
def make_params(key, inplanes, planes):
    """Deterministic synthetic parameters (conv weights stored pre-transposed)."""
    cout = planes * 4  # expansion = 4
    ks = jax.random.split(key, 9)
    f32 = jnp.float32
    return {
        # conv1: torch (P, Cin, 1, 1) -> (Cin, P)
        "w1": jax.random.normal(ks[0], (inplanes, planes), f32) * 0.05,
        # conv2: torch (P, P, 3, 3)   -> HWIO (3, 3, P, P)
        "w2": jax.random.normal(ks[1], (3, 3, planes, planes), f32) * 0.05,
        # conv3: torch (4P, P, 1, 1)  -> (P, 4P)
        "w3": jax.random.normal(ks[2], (planes, cout), f32) * 0.05,
        "g1": 1.0 + 0.1 * jax.random.normal(ks[3], (1, planes), f32),
        "b1": 0.1 * jax.random.normal(ks[4], (1, planes), f32),
        "g2": 1.0 + 0.1 * jax.random.normal(ks[5], (1, planes), f32),
        "b2": 0.1 * jax.random.normal(ks[6], (1, planes), f32),
        "g3": 1.0 + 0.1 * jax.random.normal(ks[7], (1, cout), f32),
        "b3": 0.1 * jax.random.normal(ks[8], (1, cout), f32),
    }


def reference_forward(x_nchw, params):
    """Pure-JAX reference (training-mode BN) for a correctness check."""
    hi = jax.lax.Precision.HIGHEST
    x = jnp.transpose(x_nchw, (0, 2, 3, 1)).astype(jnp.float32)

    def bn(h, g, b, relu):
        g = g.reshape(-1)
        b = b.reshape(-1)
        mean = h.mean(axis=(0, 1, 2))
        var = ((h - mean) ** 2).mean(axis=(0, 1, 2))
        y = (h - mean) * jax.lax.rsqrt(var + EPS) * g + b
        return jnp.maximum(y, 0.0) if relu else y

    h = jnp.einsum("nhwc,cp->nhwp", x, params["w1"], precision=hi)
    h = bn(h, params["g1"], params["b1"], True)
    h = jax.lax.conv_general_dilated(
        h, params["w2"], window_strides=(1, 1), padding=((1, 1), (1, 1)),
        dimension_numbers=("NHWC", "HWIO", "NHWC"), precision=hi)
    h = bn(h, params["g2"], params["b2"], True)
    h = jnp.einsum("nhwc,cp->nhwp", h, params["w3"], precision=hi)
    h = bn(h, params["g3"], params["b3"], False)
    out = jnp.maximum(h + x, 0.0)
    return jnp.transpose(out, (0, 3, 1, 2))


if __name__ == "__main__":
    key = jax.random.PRNGKey(0)
    k_x, k_p = jax.random.split(key)

    # Bottleneck(inplanes=32, planes=8): identity residual (no downsample).
    N, planes, H, W = 2, 8, 8, 8
    inplanes = planes * 4  # 32

    x = jax.random.normal(k_x, (N, inplanes, H, W), jnp.float32)
    params = make_params(k_p, inplanes, planes)

    ref = reference_forward(x, params)

    # f32 MXU path: tight agreement with the reference.
    fwd_f32 = jax.jit(functools.partial(
        bottleneck_forward, params=params, compute_dtype=jnp.float32))
    out = jax.block_until_ready(fwd_f32(x))
    assert out.shape == (N, inplanes, H, W)
    assert jnp.allclose(out, ref, rtol=1e-3, atol=1e-3), (
        float(jnp.max(jnp.abs(out - ref))))

    # Default bf16 MXU path (throughput option): loose sanity check.
    # Note: BN statistics come from f32 matmul outputs while the next stage
    # normalizes the bf16-rounded stored activations (small, bounded skew).
    fwd_bf16 = jax.jit(functools.partial(bottleneck_forward, params=params))
    out_bf16 = jax.block_until_ready(fwd_bf16(x))
    rel = float(jnp.max(jnp.abs(out_bf16 - ref)) /
                (jnp.max(jnp.abs(ref)) + 1e-6))
    assert rel < 0.05, rel

    print("KERNEL_OK")
</pallas_src>

<mosaic_0001>
module attributes {stable_mosaic.version = 11 : i64} {
  func.func @_conv3_kernel(%arg0: i32, %arg1: memref<128x128xf32, #tpu.memory_space<vmem>>, %arg2: memref<2x128xf32, #tpu.memory_space<vmem>>, %arg3: memref<1x128xf32, #tpu.memory_space<vmem>>, %arg4: memref<1x128xf32, #tpu.memory_space<vmem>>, %arg5: memref<128x128xf32, #tpu.memory_space<vmem>>, %arg6: memref<128x128xf32, #tpu.memory_space<vmem>>, %arg7: memref<1x2x128xf32, #tpu.memory_space<vmem>>) attributes {dimension_semantics = [#tpu.dimension_semantics<parallel>], iteration_bounds = array<i64: 1>, scalar_prefetch = 0 : i64, scratch_operands = 0 : i64, tpu.core_type = #tpu.core_type<tc>, window_params = [{transform_indices = @transform_0, window_bounds = array<i64: 128, 128>}, {pipeline_mode = #tpu.pipeline_mode<synchronous>, transform_indices = @transform_1, window_bounds = array<i64: 2, 128>}, {pipeline_mode = #tpu.pipeline_mode<synchronous>, transform_indices = @transform_2, window_bounds = array<i64: 1, 128>}, {pipeline_mode = #tpu.pipeline_mode<synchronous>, transform_indices = @transform_3, window_bounds = array<i64: 1, 128>}, {pipeline_mode = #tpu.pipeline_mode<synchronous>, transform_indices = @transform_4, window_bounds = array<i64: 128, 128>}, {transform_indices = @transform_5, window_bounds = array<i64: 128, 128>}, {transform_indices = @transform_6, window_bounds = array<i64: 1, 2, 128>}]} {
    %c0 = arith.constant 0 : index
    %c0_0 = arith.constant 0 : index
    %0 = vector.load %arg1[%c0, %c0_0] : memref<128x128xf32, #tpu.memory_space<vmem>>, vector<128x128xf32>
    %c0_1 = arith.constant 0 : index
    %c0_2 = arith.constant 0 : index
    %1 = vector.load %arg2[%c0_1, %c0_2] : memref<2x128xf32, #tpu.memory_space<vmem>>, vector<1x128xf32>
    %c1 = arith.constant 1 : index
    %c0_3 = arith.constant 0 : index
    %2 = vector.load %arg2[%c1, %c0_3] : memref<2x128xf32, #tpu.memory_space<vmem>>, vector<1x128xf32>
    %3 = vector.broadcast %1 : vector<1x128xf32> to vector<128x128xf32>
    %4 = arith.subf %0, %3 : vector<128x128xf32>
    %5 = vector.broadcast %2 : vector<1x128xf32> to vector<128x128xf32>
    %6 = arith.mulf %4, %5 : vector<128x128xf32>
    %c0_4 = arith.constant 0 : index
    %c0_5 = arith.constant 0 : index
    %7 = vector.load %arg3[%c0_4, %c0_5] : memref<1x128xf32, #tpu.memory_space<vmem>>, vector<1x128xf32>
    %8 = vector.broadcast %7 : vector<1x128xf32> to vector<128x128xf32>
    %9 = arith.mulf %6, %8 : vector<128x128xf32>
    %c0_6 = arith.constant 0 : index
    %c0_7 = arith.constant 0 : index
    %10 = vector.load %arg4[%c0_6, %c0_7] : memref<1x128xf32, #tpu.memory_space<vmem>>, vector<1x128xf32>
    %11 = vector.broadcast %10 : vector<1x128xf32> to vector<128x128xf32>
    %12 = arith.addf %9, %11 : vector<128x128xf32>
    %cst = arith.constant 0.000000e+00 : f32
    %13 = vector.broadcast %cst : f32 to vector<128x128xf32>
    %14 = arith.maximumf %12, %13 : vector<128x128xf32>
    %c0_8 = arith.constant 0 : index
    %c0_9 = arith.constant 0 : index
    %15 = vector.load %arg5[%c0_8, %c0_9] : memref<128x128xf32, #tpu.memory_space<vmem>>, vector<128x128xf32>
    %cst_10 = arith.constant dense<0.000000e+00> : vector<128x128xf32>
    %16 = tpu.matmul %14, %15, %cst_10 {dimension_numbers = #tpu.dot_dimension_numbers<[1], [0], [0], [1], [0, 0, 1, 1], [], []>} : vector<128x128xf32>, vector<128x128xf32>, vector<128x128xf32> -> vector<128x128xf32>
    %c0_11 = arith.constant 0 : index
    %c0_12 = arith.constant 0 : index
    %17 = vector.load %arg6[%c0_11, %c0_12] : memref<128x128xf32, #tpu.memory_space<vmem>>, vector<128x128xf32>
    tpu.vector_store %arg6[%c0_11, %c0_12], %16 {strides = array<i32>} : memref<128x128xf32, #tpu.memory_space<vmem>>, vector<128x128xf32>,
    %cst_13 = arith.constant dense<0.000000e+00> : vector<128xf32>
    %18 = vector.multi_reduction <add>, %16, %cst_13 [0] : vector<128x128xf32> to vector<128xf32>
    %19 = vector.shape_cast %18 : vector<128xf32> to vector<1x128xf32>
    %20 = arith.mulf %16, %16 : vector<128x128xf32>
    %cst_14 = arith.constant dense<0.000000e+00> : vector<128xf32>
    %21 = vector.multi_reduction <add>, %20, %cst_14 [0] : vector<128x128xf32> to vector<128xf32>
    %22 = vector.shape_cast %21 : vector<128xf32> to vector<1x128xf32>
    %23 = tpu.concatenate %19, %22 in 0 : vector<1x128xf32>, vector<1x128xf32> -> vector<2x128xf32>
    %c0_15 = arith.constant 0 : index
    %c0_16 = arith.constant 0 : index
    %c0_17 = arith.constant 0 : index
    %24 = vector.load %arg7[%c0_15, %c0_16, %c0_17] : memref<1x2x128xf32, #tpu.memory_space<vmem>>, vector<1x2x128xf32>
    %25 = vector.shape_cast %24 : vector<1x2x128xf32> to vector<2x128xf32>
    %26 = vector.shape_cast %23 : vector<2x128xf32> to vector<1x2x128xf32>
    tpu.vector_store %arg7[%c0_15, %c0_16, %c0_17], %26 {strides = array<i32>} : memref<1x2x128xf32, #tpu.memory_space<vmem>>, vector<1x2x128xf32>,
    return
  }
  func.func @transform_0(%arg0: i32) -> (i32, i32) {
    %c0_i32 = arith.constant 0 : i32
    %c0_i32_0 = arith.constant 0 : i32
    return %arg0, %c0_i32 : i32, i32
  }
  func.func @transform_1(%arg0: i32) -> (i32, i32) {
    %c0_i32 = arith.constant 0 : i32
    %c0_i32_0 = arith.constant 0 : i32
    %c0_i32_1 = arith.constant 0 : i32
    return %c0_i32, %c0_i32_0 : i32, i32
  }
  func.func @transform_2(%arg0: i32) -> (i32, i32) {
    %c0_i32 = arith.constant 0 : i32
    %c0_i32_0 = arith.constant 0 : i32
    %c0_i32_1 = arith.constant 0 : i32
    return %c0_i32, %c0_i32_0 : i32, i32
  }
  func.func @transform_3(%arg0: i32) -> (i32, i32) {
    %c0_i32 = arith.constant 0 : i32
    %c0_i32_0 = arith.constant 0 : i32
    %c0_i32_1 = arith.constant 0 : i32
    return %c0_i32, %c0_i32_0 : i32, i32
  }
  func.func @transform_4(%arg0: i32) -> (i32, i32) {
    %c0_i32 = arith.constant 0 : i32
    %c0_i32_0 = arith.constant 0 : i32
    %c0_i32_1 = arith.constant 0 : i32
    return %c0_i32, %c0_i32_0 : i32, i32
  }
  func.func @transform_5(%arg0: i32) -> (i32, i32) {
    %c0_i32 = arith.constant 0 : i32
    %c0_i32_0 = arith.constant 0 : i32
    return %arg0, %c0_i32 : i32, i32
  }
  func.func @transform_6(%arg0: i32) -> (i32, i32, i32) {
    %c0_i32 = arith.constant 0 : i32
    %c0_i32_0 = arith.constant 0 : i32
    %c0_i32_1 = arith.constant 0 : i32
    return %arg0, %c0_i32, %c0_i32_0 : i32, i32, i32
  }
}

module attributes {stable_mosaic.version = 11 : i64} {
  func.func @_conv1_kernel(%arg0: i32, %arg1: memref<128x128xf32, #tpu.memory_space<vmem>>, %arg2: memref<128x128xf32, #tpu.memory_space<vmem>>, %arg3: memref<128x128xf32, #tpu.memory_space<vmem>>, %arg4: memref<1x2x128xf32, #tpu.memory_space<vmem>>) attributes {dimension_semantics = [#tpu.dimension_semantics<parallel>], iteration_bounds = array<i64: 1>, scalar_prefetch = 0 : i64, scratch_operands = 0 : i64, tpu.core_type = #tpu.core_type<tc>, window_params = [{transform_indices = @transform_0, window_bounds = array<i64: 128, 128>}, {pipeline_mode = #tpu.pipeline_mode<synchronous>, transform_indices = @transform_1, window_bounds = array<i64: 128, 128>}, {transform_indices = @transform_2, window_bounds = array<i64: 128, 128>}, {transform_indices = @transform_3, window_bounds = array<i64: 1, 2, 128>}]} {
    %c0 = arith.constant 0 : index
    %c0_0 = arith.constant 0 : index
    %0 = vector.load %arg1[%c0, %c0_0] : memref<128x128xf32, #tpu.memory_space<vmem>>, vector<128x128xf32>
    %c0_1 = arith.constant 0 : index
    %c0_2 = arith.constant 0 : index
    %1 = vector.load %arg2[%c0_1, %c0_2] : memref<128x128xf32, #tpu.memory_space<vmem>>, vector<128x128xf32>
    %cst = arith.constant dense<0.000000e+00> : vector<128x128xf32>
    %2 = tpu.matmul %0, %1, %cst {dimension_numbers = #tpu.dot_dimension_numbers<[1], [0], [0], [1], [0, 0, 1, 1], [], []>} : vector<128x128xf32>, vector<128x128xf32>, vector<128x128xf32> -> vector<128x128xf32>
    %c0_3 = arith.constant 0 : index
    %c0_4 = arith.constant 0 : index
    %3 = vector.load %arg3[%c0_3, %c0_4] : memref<128x128xf32, #tpu.memory_space<vmem>>, vector<128x128xf32>
    tpu.vector_store %arg3[%c0_3, %c0_4], %2 {strides = array<i32>} : memref<128x128xf32, #tpu.memory_space<vmem>>, vector<128x128xf32>,
    %cst_5 = arith.constant dense<0.000000e+00> : vector<128xf32>
    %4 = vector.multi_reduction <add>, %2, %cst_5 [0] : vector<128x128xf32> to vector<128xf32>
    %5 = vector.shape_cast %4 : vector<128xf32> to vector<1x128xf32>
    %6 = arith.mulf %2, %2 : vector<128x128xf32>
    %cst_6 = arith.constant dense<0.000000e+00> : vector<128xf32>
    %7 = vector.multi_reduction <add>, %6, %cst_6 [0] : vector<128x128xf32> to vector<128xf32>
    %8 = vector.shape_cast %7 : vector<128xf32> to vector<1x128xf32>
    %9 = tpu.concatenate %5, %8 in 0 : vector<1x128xf32>, vector<1x128xf32> -> vector<2x128xf32>
    %c0_7 = arith.constant 0 : index
    %c0_8 = arith.constant 0 : index
    %c0_9 = arith.constant 0 : index
    %10 = vector.load %arg4[%c0_7, %c0_8, %c0_9] : memref<1x2x128xf32, #tpu.memory_space<vmem>>, vector<1x2x128xf32>
    %11 = vector.shape_cast %10 : vector<1x2x128xf32> to vector<2x128xf32>
    %12 = vector.shape_cast %9 : vector<2x128xf32> to vector<1x2x128xf32>
    tpu.vector_store %arg4[%c0_7, %c0_8, %c0_9], %12 {strides = array<i32>} : memref<1x2x128xf32, #tpu.memory_space<vmem>>, vector<1x2x128xf32>,
    return
  }
  func.func @transform_0(%arg0: i32) -> (i32, i32) {
    %c0_i32 = arith.constant 0 : i32
    %c0_i32_0 = arith.constant 0 : i32
    return %arg0, %c0_i32 : i32, i32
  }
  func.func @transform_1(%arg0: i32) -> (i32, i32) {
    %c0_i32 = arith.constant 0 : i32
    %c0_i32_0 = arith.constant 0 : i32
    %c0_i32_1 = arith.constant 0 : i32
    return %c0_i32, %c0_i32_0 : i32, i32
  }
  func.func @transform_2(%arg0: i32) -> (i32, i32) {
    %c0_i32 = arith.constant 0 : i32
    %c0_i32_0 = arith.constant 0 : i32
    return %arg0, %c0_i32 : i32, i32
  }
  func.func @transform_3(%arg0: i32) -> (i32, i32, i32) {
    %c0_i32 = arith.constant 0 : i32
    %c0_i32_0 = arith.constant 0 : i32
    %c0_i32_1 = arith.constant 0 : i32
    return %arg0, %c0_i32, %c0_i32_0 : i32, i32, i32
  }
}

module attributes {stable_mosaic.version = 11 : i64} {
  func.func @_residual_kernel(%arg0: i32, %arg1: memref<128x128xf32, #tpu.memory_space<vmem>>, %arg2: memref<128x128xf32, #tpu.memory_space<vmem>>, %arg3: memref<2x128xf32, #tpu.memory_space<vmem>>, %arg4: memref<1x128xf32, #tpu.memory_space<vmem>>, %arg5: memref<1x128xf32, #tpu.memory_space<vmem>>, %arg6: memref<128x128xf32, #tpu.memory_space<vmem>>) attributes {dimension_semantics = [#tpu.dimension_semantics<parallel>], iteration_bounds = array<i64: 1>, scalar_prefetch = 0 : i64, scratch_operands = 0 : i64, tpu.core_type = #tpu.core_type<tc>, window_params = [{transform_indices = @transform_0, window_bounds = array<i64: 128, 128>}, {transform_indices = @transform_1, window_bounds = array<i64: 128, 128>}, {pipeline_mode = #tpu.pipeline_mode<synchronous>, transform_indices = @transform_2, window_bounds = array<i64: 2, 128>}, {pipeline_mode = #tpu.pipeline_mode<synchronous>, transform_indices = @transform_3, window_bounds = array<i64: 1, 128>}, {pipeline_mode = #tpu.pipeline_mode<synchronous>, transform_indices = @transform_4, window_bounds = array<i64: 1, 128>}, {transform_indices = @transform_5, window_bounds = array<i64: 128, 128>}]} {
    %c0 = arith.constant 0 : index
    %c0_0 = arith.constant 0 : index
    %0 = vector.load %arg1[%c0, %c0_0] : memref<128x128xf32, #tpu.memory_space<vmem>>, vector<128x128xf32>
    %c0_1 = arith.constant 0 : index
    %c0_2 = arith.constant 0 : index
    %1 = vector.load %arg3[%c0_1, %c0_2] : memref<2x128xf32, #tpu.memory_space<vmem>>, vector<1x128xf32>
    %c1 = arith.constant 1 : index
    %c0_3 = arith.constant 0 : index
    %2 = vector.load %arg3[%c1, %c0_3] : memref<2x128xf32, #tpu.memory_space<vmem>>, vector<1x128xf32>
    %3 = vector.broadcast %1 : vector<1x128xf32> to vector<128x128xf32>
    %4 = arith.subf %0, %3 : vector<128x128xf32>
    %5 = vector.broadcast %2 : vector<1x128xf32> to vector<128x128xf32>
    %6 = arith.mulf %4, %5 : vector<128x128xf32>
    %c0_4 = arith.constant 0 : index
    %c0_5 = arith.constant 0 : index
    %7 = vector.load %arg4[%c0_4, %c0_5] : memref<1x128xf32, #tpu.memory_space<vmem>>, vector<1x128xf32>
    %8 = vector.broadcast %7 : vector<1x128xf32> to vector<128x128xf32>
    %9 = arith.mulf %6, %8 : vector<128x128xf32>
    %c0_6 = arith.constant 0 : index
    %c0_7 = arith.constant 0 : index
    %10 = vector.load %arg5[%c0_6, %c0_7] : memref<1x128xf32, #tpu.memory_space<vmem>>, vector<1x128xf32>
    %11 = vector.broadcast %10 : vector<1x128xf32> to vector<128x128xf32>
    %12 = arith.addf %9, %11 : vector<128x128xf32>
    %c0_8 = arith.constant 0 : index
    %c0_9 = arith.constant 0 : index
    %13 = vector.load %arg2[%c0_8, %c0_9] : memref<128x128xf32, #tpu.memory_space<vmem>>, vector<128x128xf32>
    %14 = arith.addf %12, %13 : vector<128x128xf32>
    %cst = arith.constant 0.000000e+00 : f32
    %15 = vector.broadcast %cst : f32 to vector<128x128xf32>
    %16 = arith.maximumf %14, %15 : vector<128x128xf32>
    %c0_10 = arith.constant 0 : index
    %c0_11 = arith.constant 0 : index
    %17 = vector.load %arg6[%c0_10, %c0_11] : memref<128x128xf32, #tpu.memory_space<vmem>>, vector<128x128xf32>
    tpu.vector_store %arg6[%c0_10, %c0_11], %16 {strides = array<i32>} : memref<128x128xf32, #tpu.memory_space<vmem>>, vector<128x128xf32>,
    return
  }
  func.func @transform_0(%arg0: i32) -> (i32, i32) {
    %c0_i32 = arith.constant 0 : i32
    %c0_i32_0 = arith.constant 0 : i32
    return %arg0, %c0_i32 : i32, i32
  }
  func.func @transform_1(%arg0: i32) -> (i32, i32) {
    %c0_i32 = arith.constant 0 : i32
    %c0_i32_0 = arith.constant 0 : i32
    return %arg0, %c0_i32 : i32, i32
  }
  func.func @transform_2(%arg0: i32) -> (i32, i32) {
    %c0_i32 = arith.constant 0 : i32
    %c0_i32_0 = arith.constant 0 : i32
    %c0_i32_1 = arith.constant 0 : i32
    return %c0_i32, %c0_i32_0 : i32, i32
  }
  func.func @transform_3(%arg0: i32) -> (i32, i32) {
    %c0_i32 = arith.constant 0 : i32
    %c0_i32_0 = arith.constant 0 : i32
    %c0_i32_1 = arith.constant 0 : i32
    return %c0_i32, %c0_i32_0 : i32, i32
  }
  func.func @transform_4(%arg0: i32) -> (i32, i32) {
    %c0_i32 = arith.constant 0 : i32
    %c0_i32_0 = arith.constant 0 : i32
    %c0_i32_1 = arith.constant 0 : i32
    return %c0_i32, %c0_i32_0 : i32, i32
  }
  func.func @transform_5(%arg0: i32) -> (i32, i32) {
    %c0_i32 = arith.constant 0 : i32
    %c0_i32_0 = arith.constant 0 : i32
    return %arg0, %c0_i32 : i32, i32
  }
}

module attributes {stable_mosaic.version = 11 : i64} {
  func.func @_conv2_kernel(%arg0: i32, %arg1: memref<64x128xf32, #tpu.memory_space<vmem>>, %arg2: memref<2x128xf32, #tpu.memory_space<vmem>>, %arg3: memref<1x128xf32, #tpu.memory_space<vmem>>, %arg4: memref<1x128xf32, #tpu.memory_space<vmem>>, %arg5: memref<9x128x128xf32, #tpu.memory_space<vmem>>, %arg6: memref<64x128xf32, #tpu.memory_space<vmem>>, %arg7: memref<1x2x128xf32, #tpu.memory_space<vmem>>, %arg8: memref<10x10x128xf32, #tpu.memory_space<vmem>>, %arg9: memref<64x128xf32, #tpu.memory_space<vmem>>) attributes {dimension_semantics = [#tpu.dimension_semantics<parallel>], iteration_bounds = array<i64: 2>, scalar_prefetch = 0 : i64, scratch_operands = 2 : i64, tpu.core_type = #tpu.core_type<tc>, window_params = [{transform_indices = @transform_0, window_bounds = array<i64: 64, 128>}, {pipeline_mode = #tpu.pipeline_mode<synchronous>, transform_indices = @transform_1, window_bounds = array<i64: 2, 128>}, {pipeline_mode = #tpu.pipeline_mode<synchronous>, transform_indices = @transform_2, window_bounds = array<i64: 1, 128>}, {pipeline_mode = #tpu.pipeline_mode<synchronous>, transform_indices = @transform_3, window_bounds = array<i64: 1, 128>}, {pipeline_mode = #tpu.pipeline_mode<synchronous>, transform_indices = @transform_4, window_bounds = array<i64: 9, 128, 128>}, {transform_indices = @transform_5, window_bounds = array<i64: 64, 128>}, {transform_indices = @transform_6, window_bounds = array<i64: 1, 2, 128>}]} {
    %c0 = arith.constant 0 : index
    %c0_0 = arith.constant 0 : index
    %0 = vector.load %arg1[%c0, %c0_0] : memref<64x128xf32, #tpu.memory_space<vmem>>, vector<64x128xf32>
    %c0_1 = arith.constant 0 : index
    %c0_2 = arith.constant 0 : index
    %1 = vector.load %arg2[%c0_1, %c0_2] : memref<2x128xf32, #tpu.memory_space<vmem>>, vector<1x128xf32>
    %c1 = arith.constant 1 : index
    %c0_3 = arith.constant 0 : index
    %2 = vector.load %arg2[%c1, %c0_3] : memref<2x128xf32, #tpu.memory_space<vmem>>, vector<1x128xf32>
    %3 = vector.broadcast %1 : vector<1x128xf32> to vector<64x128xf32>
    %4 = arith.subf %0, %3 : vector<64x128xf32>
    %5 = vector.broadcast %2 : vector<1x128xf32> to vector<64x128xf32>
    %6 = arith.mulf %4, %5 : vector<64x128xf32>
    %c0_4 = arith.constant 0 : index
    %c0_5 = arith.constant 0 : index
    %7 = vector.load %arg3[%c0_4, %c0_5] : memref<1x128xf32, #tpu.memory_space<vmem>>, vector<1x128xf32>
    %8 = vector.broadcast %7 : vector<1x128xf32> to vector<64x128xf32>
    %9 = arith.mulf %6, %8 : vector<64x128xf32>
    %c0_6 = arith.constant 0 : index
    %c0_7 = arith.constant 0 : index
    %10 = vector.load %arg4[%c0_6, %c0_7] : memref<1x128xf32, #tpu.memory_space<vmem>>, vector<1x128xf32>
    %11 = vector.broadcast %10 : vector<1x128xf32> to vector<64x128xf32>
    %12 = arith.addf %9, %11 : vector<64x128xf32>
    %cst = arith.constant 0.000000e+00 : f32
    %13 = vector.broadcast %cst : f32 to vector<64x128xf32>
    %14 = arith.maximumf %12, %13 : vector<64x128xf32>
    %cst_8 = arith.constant 0.000000e+00 : f32
    %15 = vector.broadcast %cst_8 : f32 to vector<1x10x128xf32>
    %cst_9 = arith.constant 0.000000e+00 : f32
    %16 = vector.broadcast %cst_9 : f32 to vector<10x1x128xf32>
    %c0_10 = arith.constant 0 : index
    %c0_11 = arith.constant 0 : index
    %c0_12 = arith.constant 0 : index
    %17 = vector.load %arg8[%c0_10, %c0_11, %c0_12] : memref<10x10x128xf32, #tpu.memory_space<vmem>>, vector<1x10x128xf32>
    tpu.vector_store %arg8[%c0_10, %c0_11, %c0_12], %15 {strides = array<i32>} : memref<10x10x128xf32, #tpu.memory_space<vmem>>, vector<1x10x128xf32>,
    %c9 = arith.constant 9 : index
    %c0_13 = arith.constant 0 : index
    %c0_14 = arith.constant 0 : index
    %18 = vector.load %arg8[%c9, %c0_13, %c0_14] : memref<10x10x128xf32, #tpu.memory_space<vmem>>, vector<1x10x128xf32>
    tpu.vector_store %arg8[%c9, %c0_13, %c0_14], %15 {strides = array<i32>} : memref<10x10x128xf32, #tpu.memory_space<vmem>>, vector<1x10x128xf32>,
    %c0_15 = arith.constant 0 : index
    %c0_16 = arith.constant 0 : index
    %c0_17 = arith.constant 0 : index
    %19 = vector.load %arg8[%c0_15, %c0_16, %c0_17] : memref<10x10x128xf32, #tpu.memory_space<vmem>>, vector<10x1x128xf32>
    tpu.vector_store %arg8[%c0_15, %c0_16, %c0_17], %16 {strides = array<i32>} : memref<10x10x128xf32, #tpu.memory_space<vmem>>, vector<10x1x128xf32>,
    %c0_18 = arith.constant 0 : index
    %c9_19 = arith.constant 9 : index
    %c0_20 = arith.constant 0 : index
    %20 = vector.load %arg8[%c0_18, %c9_19, %c0_20] : memref<10x10x128xf32, #tpu.memory_space<vmem>>, vector<10x1x128xf32>
    tpu.vector_store %arg8[%c0_18, %c9_19, %c0_20], %16 {strides = array<i32>} : memref<10x10x128xf32, #tpu.memory_space<vmem>>, vector<10x1x128xf32>,
    %21 = vector.shape_cast %14 : vector<64x128xf32> to vector<8x8x128xf32>
    %c1_21 = arith.constant 1 : index
    %c1_22 = arith.constant 1 : index
    %c0_23 = arith.constant 0 : index
    %22 = vector.load %arg8[%c1_21, %c1_22, %c0_23] : memref<10x10x128xf32, #tpu.memory_space<vmem>>, vector<8x8x128xf32>
    tpu.vector_store %arg8[%c1_21, %c1_22, %c0_23], %21 {strides = array<i32>} : memref<10x10x128xf32, #tpu.memory_space<vmem>>, vector<8x8x128xf32>,
    %c0_24 = arith.constant 0 : index
    %c0_25 = arith.constant 0 : index
    %c0_26 = arith.constant 0 : index
    %23 = vector.load %arg8[%c0_24, %c0_25, %c0_26] : memref<10x10x128xf32, #tpu.memory_space<vmem>>, vector<8x8x128xf32>
    %24 = vector.shape_cast %23 : vector<8x8x128xf32> to vector<64x128xf32>
    %c0_27 = arith.constant 0 : index
    %c0_28 = arith.constant 0 : index
    %c0_29 = arith.constant 0 : index
    %25 = vector.load %arg5[%c0_27, %c0_28, %c0_29] : memref<9x128x128xf32, #tpu.memory_space<vmem>>, vector<1x128x128xf32>
    %26 = vector.shape_cast %25 : vector<1x128x128xf32> to vector<128x128xf32>
    %cst_30 = arith.constant dense<0.000000e+00> : vector<64x128xf32>
    %27 = tpu.matmul %24, %26, %cst_30 {dimension_numbers = #tpu.dot_dimension_numbers<[1], [0], [0], [1], [0, 0, 1, 1], [], []>} : vector<64x128xf32>, vector<128x128xf32>, vector<64x128xf32> -> vector<64x128xf32>
    %c0_31 = arith.constant 0 : index
    %c0_32 = arith.constant 0 : index
    %28 = vector.load %arg9[%c0_31, %c0_32] : memref<64x128xf32, #tpu.memory_space<vmem>>, vector<64x128xf32>
    tpu.vector_store %arg9[%c0_31, %c0_32], %27 {strides = array<i32>} : memref<64x128xf32, #tpu.memory_space<vmem>>, vector<64x128xf32>,
    %c0_33 = arith.constant 0 : index
    %c1_34 = arith.constant 1 : index
    %c0_35 = arith.constant 0 : index
    %29 = vector.load %arg8[%c0_33, %c1_34, %c0_35] : memref<10x10x128xf32, #tpu.memory_space<vmem>>, vector<8x8x128xf32>
    %30 = vector.shape_cast %29 : vector<8x8x128xf32> to vector<64x128xf32>
    %c1_36 = arith.constant 1 : index
    %c0_37 = arith.constant 0 : index
    %c0_38 = arith.constant 0 : index
    %31 = vector.load %arg5[%c1_36, %c0_37, %c0_38] : memref<9x128x128xf32, #tpu.memory_space<vmem>>, vector<1x128x128xf32>
    %32 = vector.shape_cast %31 : vector<1x128x128xf32> to vector<128x128xf32>
    %cst_39 = arith.constant dense<0.000000e+00> : vector<64x128xf32>
    %33 = tpu.matmul %30, %32, %cst_39 {dimension_numbers = #tpu.dot_dimension_numbers<[1], [0], [0], [1], [0, 0, 1, 1], [], []>} : vector<64x128xf32>, vector<128x128xf32>, vector<64x128xf32> -> vector<64x128xf32>
    %c0_40 = arith.constant 0 : index
    %c0_41 = arith.constant 0 : index
    %34 = vector.load %arg9[%c0_40, %c0_41] : memref<64x128xf32, #tpu.memory_space<vmem>>, vector<64x128xf32>
    %35 = arith.addf %34, %33 : vector<64x128xf32>
    %c0_42 = arith.constant 0 : index
    %c0_43 = arith.constant 0 : index
    %36 = vector.load %arg9[%c0_42, %c0_43] : memref<64x128xf32, #tpu.memory_space<vmem>>, vector<64x128xf32>
    tpu.vector_store %arg9[%c0_42, %c0_43], %35 {strides = array<i32>} : memref<64x128xf32, #tpu.memory_space<vmem>>, vector<64x128xf32>,
    %c0_44 = arith.constant 0 : index
    %c2 = arith.constant 2 : index
    %c0_45 = arith.constant 0 : index
    %37 = vector.load %arg8[%c0_44, %c2, %c0_45] : memref<10x10x128xf32, #tpu.memory_space<vmem>>, vector<8x8x128xf32>
    %38 = vector.shape_cast %37 : vector<8x8x128xf32> to vector<64x128xf32>
    %c2_46 = arith.constant 2 : index
    %c0_47 = arith.constant 0 : index
    %c0_48 = arith.constant 0 : index
    %39 = vector.load %arg5[%c2_46, %c0_47, %c0_48] : memref<9x128x128xf32, #tpu.memory_space<vmem>>, vector<1x128x128xf32>
    %40 = vector.shape_cast %39 : vector<1x128x128xf32> to vector<128x128xf32>
    %cst_49 = arith.constant dense<0.000000e+00> : vector<64x128xf32>
    %41 = tpu.matmul %38, %40, %cst_49 {dimension_numbers = #tpu.dot_dimension_numbers<[1], [0], [0], [1], [0, 0, 1, 1], [], []>} : vector<64x128xf32>, vector<128x128xf32>, vector<64x128xf32> -> vector<64x128xf32>
    %c0_50 = arith.constant 0 : index
    %c0_51 = arith.constant 0 : index
    %42 = vector.load %arg9[%c0_50, %c0_51] : memref<64x128xf32, #tpu.memory_space<vmem>>, vector<64x128xf32>
    %43 = arith.addf %42, %41 : vector<64x128xf32>
    %c0_52 = arith.constant 0 : index
    %c0_53 = arith.constant 0 : index
    %44 = vector.load %arg9[%c0_52, %c0_53] : memref<64x128xf32, #tpu.memory_space<vmem>>, vector<64x128xf32>
    tpu.vector_store %arg9[%c0_52, %c0_53], %43 {strides = array<i32>} : memref<64x128xf32, #tpu.memory_space<vmem>>, vector<64x128xf32>,
    %c1_54 = arith.constant 1 : index
    %c0_55 = arith.constant 0 : index
    %c0_56 = arith.constant 0 : index
    %45 = vector.load %arg8[%c1_54, %c0_55, %c0_56] : memref<10x10x128xf32, #tpu.memory_space<vmem>>, vector<8x8x128xf32>
    %46 = vector.shape_cast %45 : vector<8x8x128xf32> to vector<64x128xf32>
    %c3 = arith.constant 3 : index
    %c0_57 = arith.constant 0 : index
    %c0_58 = arith.constant 0 : index
    %47 = vector.load %arg5[%c3, %c0_57, %c0_58] : memref<9x128x128xf32, #tpu.memory_space<vmem>>, vector<1x128x128xf32>
    %48 = vector.shape_cast %47 : vector<1x128x128xf32> to vector<128x128xf32>
    %cst_59 = arith.constant dense<0.000000e+00> : vector<64x128xf32>
    %49 = tpu.matmul %46, %48, %cst_59 {dimension_numbers = #tpu.dot_dimension_numbers<[1], [0], [0], [1], [0, 0, 1, 1], [], []>} : vector<64x128xf32>, vector<128x128xf32>, vector<64x128xf32> -> vector<64x128xf32>
    %c0_60 = arith.constant 0 : index
    %c0_61 = arith.constant 0 : index
    %50 = vector.load %arg9[%c0_60, %c0_61] : memref<64x128xf32, #tpu.memory_space<vmem>>, vector<64x128xf32>
    %51 = arith.addf %50, %49 : vector<64x128xf32>
    %c0_62 = arith.constant 0 : index
    %c0_63 = arith.constant 0 : index
    %52 = vector.load %arg9[%c0_62, %c0_63] : memref<64x128xf32, #tpu.memory_space<vmem>>, vector<64x128xf32>
    tpu.vector_store %arg9[%c0_62, %c0_63], %51 {strides = array<i32>} : memref<64x128xf32, #tpu.memory_space<vmem>>, vector<64x128xf32>,
    %c1_64 = arith.constant 1 : index
    %c1_65 = arith.constant 1 : index
    %c0_66 = arith.constant 0 : index
    %53 = vector.load %arg8[%c1_64, %c1_65, %c0_66] : memref<10x10x128xf32, #tpu.memory_space<vmem>>, vector<8x8x128xf32>
    %54 = vector.shape_cast %53 : vector<8x8x128xf32> to vector<64x128xf32>
    %c4 = arith.constant 4 : index
    %c0_67 = arith.constant 0 : index
    %c0_68 = arith.constant 0 : index
    %55 = vector.load %arg5[%c4, %c0_67, %c0_68] : memref<9x128x128xf32, #tpu.memory_space<vmem>>, vector<1x128x128xf32>
    %56 = vector.shape_cast %55 : vector<1x128x128xf32> to vector<128x128xf32>
    %cst_69 = arith.constant dense<0.000000e+00> : vector<64x128xf32>
    %57 = tpu.matmul %54, %56, %cst_69 {dimension_numbers = #tpu.dot_dimension_numbers<[1], [0], [0], [1], [0, 0, 1, 1], [], []>} : vector<64x128xf32>, vector<128x128xf32>, vector<64x128xf32> -> vector<64x128xf32>
    %c0_70 = arith.constant 0 : index
    %c0_71 = arith.constant 0 : index
    %58 = vector.load %arg9[%c0_70, %c0_71] : memref<64x128xf32, #tpu.memory_space<vmem>>, vector<64x128xf32>
    %59 = arith.addf %58, %57 : vector<64x128xf32>
    %c0_72 = arith.constant 0 : index
    %c0_73 = arith.constant 0 : index
    %60 = vector.load %arg9[%c0_72, %c0_73] : memref<64x128xf32, #tpu.memory_space<vmem>>, vector<64x128xf32>
    tpu.vector_store %arg9[%c0_72, %c0_73], %59 {strides = array<i32>} : memref<64x128xf32, #tpu.memory_space<vmem>>, vector<64x128xf32>,
    %c1_74 = arith.constant 1 : index
    %c2_75 = arith.constant 2 : index
    %c0_76 = arith.constant 0 : index
    %61 = vector.load %arg8[%c1_74, %c2_75, %c0_76] : memref<10x10x128xf32, #tpu.memory_space<vmem>>, vector<8x8x128xf32>
    %62 = vector.shape_cast %61 : vector<8x8x128xf32> to vector<64x128xf32>
    %c5 = arith.constant 5 : index
    %c0_77 = arith.constant 0 : index
    %c0_78 = arith.constant 0 : index
    %63 = vector.load %arg5[%c5, %c0_77, %c0_78] : memref<9x128x128xf32, #tpu.memory_space<vmem>>, vector<1x128x128xf32>
    %64 = vector.shape_cast %63 : vector<1x128x128xf32> to vector<128x128xf32>
    %cst_79 = arith.constant dense<0.000000e+00> : vector<64x128xf32>
    %65 = tpu.matmul %62, %64, %cst_79 {dimension_numbers = #tpu.dot_dimension_numbers<[1], [0], [0], [1], [0, 0, 1, 1], [], []>} : vector<64x128xf32>, vector<128x128xf32>, vector<64x128xf32> -> vector<64x128xf32>
    %c0_80 = arith.constant 0 : index
    %c0_81 = arith.constant 0 : index
    %66 = vector.load %arg9[%c0_80, %c0_81] : memref<64x128xf32, #tpu.memory_space<vmem>>, vector<64x128xf32>
    %67 = arith.addf %66, %65 : vector<64x128xf32>
    %c0_82 = arith.constant 0 : index
    %c0_83 = arith.constant 0 : index
    %68 = vector.load %arg9[%c0_82, %c0_83] : memref<64x128xf32, #tpu.memory_space<vmem>>, vector<64x128xf32>
    tpu.vector_store %arg9[%c0_82, %c0_83], %67 {strides = array<i32>} : memref<64x128xf32, #tpu.memory_space<vmem>>, vector<64x128xf32>,
    %c2_84 = arith.constant 2 : index
    %c0_85 = arith.constant 0 : index
    %c0_86 = arith.constant 0 : index
    %69 = vector.load %arg8[%c2_84, %c0_85, %c0_86] : memref<10x10x128xf32, #tpu.memory_space<vmem>>, vector<8x8x128xf32>
    %70 = vector.shape_cast %69 : vector<8x8x128xf32> to vector<64x128xf32>
    %c6 = arith.constant 6 : index
    %c0_87 = arith.constant 0 : index
    %c0_88 = arith.constant 0 : index
    %71 = vector.load %arg5[%c6, %c0_87, %c0_88] : memref<9x128x128xf32, #tpu.memory_space<vmem>>, vector<1x128x128xf32>
    %72 = vector.shape_cast %71 : vector<1x128x128xf32> to vector<128x128xf32>
    %cst_89 = arith.constant dense<0.000000e+00> : vector<64x128xf32>
    %73 = tpu.matmul %70, %72, %cst_89 {dimension_numbers = #tpu.dot_dimension_numbers<[1], [0], [0], [1], [0, 0, 1, 1], [], []>} : vector<64x128xf32>, vector<128x128xf32>, vector<64x128xf32> -> vector<64x128xf32>
    %c0_90 = arith.constant 0 : index
    %c0_91 = arith.constant 0 : index
    %74 = vector.load %arg9[%c0_90, %c0_91] : memref<64x128xf32, #tpu.memory_space<vmem>>, vector<64x128xf32>
    %75 = arith.addf %74, %73 : vector<64x128xf32>
    %c0_92 = arith.constant 0 : index
    %c0_93 = arith.constant 0 : index
    %76 = vector.load %arg9[%c0_92, %c0_93] : memref<64x128xf32, #tpu.memory_space<vmem>>, vector<64x128xf32>
    tpu.vector_store %arg9[%c0_92, %c0_93], %75 {strides = array<i32>} : memref<64x128xf32, #tpu.memory_space<vmem>>, vector<64x128xf32>,
    %c2_94 = arith.constant 2 : index
    %c1_95 = arith.constant 1 : index
    %c0_96 = arith.constant 0 : index
    %77 = vector.load %arg8[%c2_94, %c1_95, %c0_96] : memref<10x10x128xf32, #tpu.memory_space<vmem>>, vector<8x8x128xf32>
    %78 = vector.shape_cast %77 : vector<8x8x128xf32> to vector<64x128xf32>
    %c7 = arith.constant 7 : index
    %c0_97 = arith.constant 0 : index
    %c0_98 = arith.constant 0 : index
    %79 = vector.load %arg5[%c7, %c0_97, %c0_98] : memref<9x128x128xf32, #tpu.memory_space<vmem>>, vector<1x128x128xf32>
    %80 = vector.shape_cast %79 : vector<1x128x128xf32> to vector<128x128xf32>
    %cst_99 = arith.constant dense<0.000000e+00> : vector<64x128xf32>
    %81 = tpu.matmul %78, %80, %cst_99 {dimension_numbers = #tpu.dot_dimension_numbers<[1], [0], [0], [1], [0, 0, 1, 1], [], []>} : vector<64x128xf32>, vector<128x128xf32>, vector<64x128xf32> -> vector<64x128xf32>
    %c0_100 = arith.constant 0 : index
    %c0_101 = arith.constant 0 : index
    %82 = vector.load %arg9[%c0_100, %c0_101] : memref<64x128xf32, #tpu.memory_space<vmem>>, vector<64x128xf32>
    %83 = arith.addf %82, %81 : vector<64x128xf32>
    %c0_102 = arith.constant 0 : index
    %c0_103 = arith.constant 0 : index
    %84 = vector.load %arg9[%c0_102, %c0_103] : memref<64x128xf32, #tpu.memory_space<vmem>>, vector<64x128xf32>
    tpu.vector_store %arg9[%c0_102, %c0_103], %83 {strides = array<i32>} : memref<64x128xf32, #tpu.memory_space<vmem>>, vector<64x128xf32>,
    %c2_104 = arith.constant 2 : index
    %c2_105 = arith.constant 2 : index
    %c0_106 = arith.constant 0 : index
    %85 = vector.load %arg8[%c2_104, %c2_105, %c0_106] : memref<10x10x128xf32, #tpu.memory_space<vmem>>, vector<8x8x128xf32>
    %86 = vector.shape_cast %85 : vector<8x8x128xf32> to vector<64x128xf32>
    %c8 = arith.constant 8 : index
    %c0_107 = arith.constant 0 : index
    %c0_108 = arith.constant 0 : index
    %87 = vector.load %arg5[%c8, %c0_107, %c0_108] : memref<9x128x128xf32, #tpu.memory_space<vmem>>, vector<1x128x128xf32>
    %88 = vector.shape_cast %87 : vector<1x128x128xf32> to vector<128x128xf32>
    %cst_109 = arith.constant dense<0.000000e+00> : vector<64x128xf32>
    %89 = tpu.matmul %86, %88, %cst_109 {dimension_numbers = #tpu.dot_dimension_numbers<[1], [0], [0], [1], [0, 0, 1, 1], [], []>} : vector<64x128xf32>, vector<128x128xf32>, vector<64x128xf32> -> vector<64x128xf32>
    %c0_110 = arith.constant 0 : index
    %c0_111 = arith.constant 0 : index
    %90 = vector.load %arg9[%c0_110, %c0_111] : memref<64x128xf32, #tpu.memory_space<vmem>>, vector<64x128xf32>
    %91 = arith.addf %90, %89 : vector<64x128xf32>
    %c0_112 = arith.constant 0 : index
    %c0_113 = arith.constant 0 : index
    %92 = vector.load %arg9[%c0_112, %c0_113] : memref<64x128xf32, #tpu.memory_space<vmem>>, vector<64x128xf32>
    tpu.vector_store %arg9[%c0_112, %c0_113], %91 {strides = array<i32>} : memref<64x128xf32, #tpu.memory_space<vmem>>, vector<64x128xf32>,
    %c0_114 = arith.constant 0 : index
    %c0_115 = arith.constant 0 : index
    %93 = vector.load %arg9[%c0_114, %c0_115] : memref<64x128xf32, #tpu.memory_space<vmem>>, vector<64x128xf32>
    %c0_116 = arith.constant 0 : index
    %c0_117 = arith.constant 0 : index
    %94 = vector.load %arg6[%c0_116, %c0_117] : memref<64x128xf32, #tpu.memory_space<vmem>>, vector<64x128xf32>
    tpu.vector_store %arg6[%c0_116, %c0_117], %93 {strides = array<i32>} : memref<64x128xf32, #tpu.memory_space<vmem>>, vector<64x128xf32>,
    %cst_118 = arith.constant dense<0.000000e+00> : vector<128xf32>
    %95 = vector.multi_reduction <add>, %93, %cst_118 [0] : vector<64x128xf32> to vector<128xf32>
    %96 = vector.shape_cast %95 : vector<128xf32> to vector<1x128xf32>
    %97 = arith.mulf %93, %93 : vector<64x128xf32>
    %cst_119 = arith.constant dense<0.000000e+00> : vector<128xf32>
    %98 = vector.multi_reduction <add>, %97, %cst_119 [0] : vector<64x128xf32> to vector<128xf32>
    %99 = vector.shape_cast %98 : vector<128xf32> to vector<1x128xf32>
    %100 = tpu.concatenate %96, %99 in 0 : vector<1x128xf32>, vector<1x128xf32> -> vector<2x128xf32>
    %c0_120 = arith.constant 0 : index
    %c0_121 = arith.constant 0 : index
    %c0_122 = arith.constant 0 : index
    %101 = vector.load %arg7[%c0_120, %c0_121, %c0_122] : memref<1x2x128xf32, #tpu.memory_space<vmem>>, vector<1x2x128xf32>
    %102 = vector.shape_cast %101 : vector<1x2x128xf32> to vector<2x128xf32>
    %103 = vector.shape_cast %100 : vector<2x128xf32> to vector<1x2x128xf32>
    tpu.vector_store %arg7[%c0_120, %c0_121, %c0_122], %103 {strides = array<i32>} : memref<1x2x128xf32, #tpu.memory_space<vmem>>, vector<1x2x128xf32>,
    return
  }
  func.func @transform_0(%arg0: i32) -> (i32, i32) {
    %c0_i32 = arith.constant 0 : i32
    %c0_i32_0 = arith.constant 0 : i32
    return %arg0, %c0_i32 : i32, i32
  }
  func.func @transform_1(%arg0: i32) -> (i32, i32) {
    %c0_i32 = arith.constant 0 : i32
    %c0_i32_0 = arith.constant 0 : i32
    %c0_i32_1 = arith.constant 0 : i32
    return %c0_i32, %c0_i32_0 : i32, i32
  }
  func.func @transform_2(%arg0: i32) -> (i32, i32) {
    %c0_i32 = arith.constant 0 : i32
    %c0_i32_0 = arith.constant 0 : i32
    %c0_i32_1 = arith.constant 0 : i32
    return %c0_i32, %c0_i32_0 : i32, i32
  }
  func.func @transform_3(%arg0: i32) -> (i32, i32) {
    %c0_i32 = arith.constant 0 : i32
    %c0_i32_0 = arith.constant 0 : i32
    %c0_i32_1 = arith.constant 0 : i32
    return %c0_i32, %c0_i32_0 : i32, i32
  }
  func.func @transform_4(%arg0: i32) -> (i32, i32, i32) {
    %c0_i32 = arith.constant 0 : i32
    %c0_i32_0 = arith.constant 0 : i32
    %c0_i32_1 = arith.constant 0 : i32
    %c0_i32_2 = arith.constant 0 : i32
    return %c0_i32, %c0_i32_0, %c0_i32_1 : i32, i32, i32
  }
  func.func @transform_5(%arg0: i32) -> (i32, i32) {
    %c0_i32 = arith.constant 0 : i32
    %c0_i32_0 = arith.constant 0 : i32
    return %arg0, %c0_i32 : i32, i32
  }
  func.func @transform_6(%arg0: i32) -> (i32, i32, i32) {
    %c0_i32 = arith.constant 0 : i32
    %c0_i32_0 = arith.constant 0 : i32
    %c0_i32_1 = arith.constant 0 : i32
    return %arg0, %c0_i32, %c0_i32_0 : i32, i32, i32
  }
}

</mosaic_0001>

<llo_original>
// kernel: bottleneck_forward.6
$region0: #{bottleneck_forward.6}
  #allocation0 [shape = 'u32[]', space=smem, size = 0x4, offset = 0x4, fixed_abs, tag = 'smem constant byte address 0x4 - core index']
  #allocation1 [shape = 'u32[144,128]{1,0:T(1,128)}', space=vmem, size = 0x12000, scoped, tag = 'internal scratch']
  %s0 = inlined_call_operand.hbm [shape: f32[128,128], index: 0, kind: input, shape index: {}]
  %s1 = inlined_call_operand.hbm [shape: f32[2,128], index: 1, kind: input, shape index: {}]
  %s2 = inlined_call_operand.hbm [shape: f32[1,128], index: 2, kind: input, shape index: {}]
  %s3 = inlined_call_operand.hbm [shape: f32[1,128], index: 3, kind: input, shape index: {}]
  %s4 = inlined_call_operand.hbm [shape: f32[128,128], index: 4, kind: input, shape index: {}]
  %s5 = inlined_call_operand.hbm [shape: f32[128,128], index: 5, kind: output, shape index: {0}]
  %s6 = inlined_call_operand.hbm [shape: f32[1,2,128], index: 6, kind: output, shape index: {1}]
  %7 = xla_tuple %s5, %s6
  %s8 = sld [smem:[#allocation0]]
  $region58: #{bottleneck_forward.6} parent=0
    _
  %s10 = ssub.s32 1, %s8
  %s11 = scalar_select 0, %s10, %s8
  $region1: #{bottleneck_forward.6} parent=0
    #allocation2 [shape = 'u8[65536]{0}', space=vmem, size = 0x10000, scoped, tag = 'input window, operand 0, single buffered']
    #allocation3 [shape = 's32[1]{0}', space=sflag, size = 0x4, scoped, tag = 'scoped memory for bottleneck_forward.6']
    #allocation4 [shape = 's32[1]{0}', space=sflag, size = 0x4, scoped, tag = 'scoped memory for bottleneck_forward.6']
    #allocation5 [shape = 'u8[1024]{0}', space=vmem, size = 0x400, scoped, tag = 'input window, operand 1, single buffered']
    #allocation6 [shape = 's32[1]{0}', space=sflag, size = 0x4, scoped, tag = 'scoped memory for bottleneck_forward.6']
    #allocation7 [shape = 'u8[512]{0}', space=vmem, size = 0x400, scoped, tag = 'input window, operand 2, single buffered']
    #allocation8 [shape = 'u8[512]{0}', space=vmem, size = 0x400, scoped, tag = 'input window, operand 3, single buffered']
    #allocation9 [shape = 's32[1]{0}', space=sflag, size = 0x4, scoped, tag = 'scoped memory for bottleneck_forward.6']
    #allocation10 [shape = 'u8[65536]{0}', space=vmem, size = 0x10000, scoped, tag = 'input window, operand 4, single buffered']
    #allocation11 [shape = 'u8[65536]{0}', space=vmem, size = 0x10000, scoped, tag = 'output window, operand 0, single buffered']
    #allocation12 [shape = 'u8[1024]{0}', space=vmem, size = 0x400, scoped, tag = 'output window, operand 1, single buffered']
    #allocation13 [shape = 's32[1]{0}', space=sflag, size = 0x4, scoped, tag = 'scoped memory for bottleneck_forward.6']
    %12 = vsyncpa [#allocation3], 0
    %13 = vsyncpa [#allocation6], 0
    %14 = vsyncpa [#allocation9], 0
    %15 = vsyncpa [#allocation4], 0
    %16 = vsyncpa [#allocation13], 0
    // Predicated region
    $region2: #{bottleneck_forward.6} parent=1 // pred_check
      _
    $region3: #{bottleneck_forward.6} parent=1 // pred_check_branch
      %18 = sbr.rel (0) target = $region5
    $region4: #{bottleneck_forward.6} parent=1 // pred_region
      %s20 = ssub.s32 2048, 2048
      %21 = vsyncadd [#allocation3], %s20
      %s22 = sshll.u32 [#allocation2], 4
      %s23 = int_to_ptr.vmem [resolvable:$true] %s22
      %28 = dma.hbm_to_vmem [thread:$0]  %s0, 2048, %s23, [#allocation3], 128, 128, 8
    $region5: #{bottleneck_forward.6} parent=1 // pred_fallthru
      _
    // Predicated region
    $region6: #{bottleneck_forward.6} parent=1 // pred_check
      _
    $region7: #{bottleneck_forward.6} parent=1 // pred_check_branch
      %30 = sbr.rel (0) target = $region9
    $region8: #{bottleneck_forward.6} parent=1 // pred_region
      %s32 = ssub.s32 32, 32
      %33 = vsyncadd [#allocation6], %s32
      %s35 = sshll.u32 [#allocation5], 4
      %s36 = int_to_ptr.vmem [resolvable:$true] %s35
      %38 = dma.hbm_to_vmem [thread:$0]  %s1, 32, %s36, [#allocation6]
    $region9: #{bottleneck_forward.6} parent=1 // pred_fallthru
      _
    // Predicated region
    $region10: #{bottleneck_forward.6} parent=1 // pred_check
      _
    $region11: #{bottleneck_forward.6} parent=1 // pred_check_branch
      %40 = sbr.rel (0) target = $region13
    $region12: #{bottleneck_forward.6} parent=1 // pred_region
      %s42 = ssub.s32 16, 16
      %43 = vsyncadd [#allocation6], %s42
      %s45 = sshll.u32 [#allocation7], 4
      %s46 = int_to_ptr.vmem [resolvable:$true] %s45
      %48 = dma.hbm_to_vmem [thread:$0]  %s2, 16, %s46, [#allocation6]
    $region13: #{bottleneck_forward.6} parent=1 // pred_fallthru
      _
    // Predicated region
    $region14: #{bottleneck_forward.6} parent=1 // pred_check
      _
    $region15: #{bottleneck_forward.6} parent=1 // pred_check_branch
      %50 = sbr.rel (0) target = $region17
    $region16: #{bottleneck_forward.6} parent=1 // pred_region
      %s52 = ssub.s32 16, 16
      %53 = vsyncadd [#allocation9], %s52
      %s55 = sshll.u32 [#allocation8], 4
      %s56 = int_to_ptr.vmem [resolvable:$true] %s55
      %58 = dma.hbm_to_vmem [thread:$0]  %s3, 16, %s56, [#allocation9]
    $region17: #{bottleneck_forward.6} parent=1 // pred_fallthru
      _
    // Predicated region
    $region18: #{bottleneck_forward.6} parent=1 // pred_check
      _
    $region19: #{bottleneck_forward.6} parent=1 // pred_check_branch
      %60 = sbr.rel (0) target = $region21
    $region20: #{bottleneck_forward.6} parent=1 // pred_region
      %s62 = ssub.s32 2048, 2048
      %63 = vsyncadd [#allocation9], %s62
      %s64 = sshll.u32 [#allocation10], 4
      %s65 = int_to_ptr.vmem [resolvable:$true] %s64
      %70 = dma.hbm_to_vmem [thread:$0]  %s4, 2048, %s65, [#allocation9], 128, 128, 8
    $region21: #{bottleneck_forward.6} parent=1 // pred_fallthru
      _
    // Predicated region
    $region22: #{bottleneck_forward.6} parent=1 // pred_check
      _
    $region23: #{bottleneck_forward.6} parent=1 // pred_check_branch
      %72 = sbr.rel (0) target = $region25
    $region24: #{bottleneck_forward.6} parent=1 // pred_region
      %73 = dma.done [#allocation3], 2048
    $region25: #{bottleneck_forward.6} parent=1 // pred_fallthru
      _
    // Predicated region
    $region26: #{bottleneck_forward.6} parent=1 // pred_check
      _
    $region27: #{bottleneck_forward.6} parent=1 // pred_check_branch
      %75 = sbr.rel (0) target = $region29
    $region28: #{bottleneck_forward.6} parent=1 // pred_region
      %76 = dma.done [#allocation6], 32
    $region29: #{bottleneck_forward.6} parent=1 // pred_fallthru
      _
    // Predicated region
    $region30: #{bottleneck_forward.6} parent=1 // pred_check
      _
    $region31: #{bottleneck_forward.6} parent=1 // pred_check_branch
      %78 = sbr.rel (0) target = $region33
    $region32: #{bottleneck_forward.6} parent=1 // pred_region
      %79 = dma.done [#allocation6], 16
    $region33: #{bottleneck_forward.6} parent=1 // pred_fallthru
      _
    // Predicated region
    $region34: #{bottleneck_forward.6} parent=1 // pred_check
      _
    $region35: #{bottleneck_forward.6} parent=1 // pred_check_branch
      %81 = sbr.rel (0) target = $region37
    $region36: #{bottleneck_forward.6} parent=1 // pred_region
      %82 = dma.done [#allocation9], 16
    $region37: #{bottleneck_forward.6} parent=1 // pred_fallthru
      _
    // Predicated region
    $region38: #{bottleneck_forward.6} parent=1 // pred_check
      _
    $region39: #{bottleneck_forward.6} parent=1 // pred_check_branch
      %84 = sbr.rel (0) target = $region41
    $region40: #{bottleneck_forward.6} parent=1 // pred_region
      %85 = dma.done [#allocation9], 2048
    $region41: #{bottleneck_forward.6} parent=1 // pred_fallthru
      _
    %v86 = vld [vmem:[#allocation2] sm:$0xff]
    %v87 = vld [vmem:[#allocation2 + $0x8] sm:$0xff]
    %v88 = vld [vmem:[#allocation2 + $0x10] sm:$0xff]
    %v89 = vld [vmem:[#allocation2 + $0x18] sm:$0xff]
    %v90 = vld [vmem:[#allocation2 + $0x20] sm:$0xff]
    %v91 = vld [vmem:[#allocation2 + $0x28] sm:$0xff]
    %v92 = vld [vmem:[#allocation2 + $0x30] sm:$0xff]
    %v93 = vld [vmem:[#allocation2 + $0x38] sm:$0xff]
    %v94 = vld [vmem:[#allocation2 + $0x40] sm:$0xff]
    %v95 = vld [vmem:[#allocation2 + $0x48] sm:$0xff]
    %v96 = vld [vmem:[#allocation2 + $0x50] sm:$0xff]
    %v97 = vld [vmem:[#allocation2 + $0x58] sm:$0xff]
    %v98 = vld [vmem:[#allocation2 + $0x60] sm:$0xff]
    %v99 = vld [vmem:[#allocation2 + $0x68] sm:$0xff]
    %v100 = vld [vmem:[#allocation2 + $0x70] sm:$0xff]
    %v101 = vld [vmem:[#allocation2 + $0x78] sm:$0xff]
    %v102 = vld [vmem:[#allocation5] sm:$0x1]
    %v103 = vld [vmem:[#allocation5 + $0x1] sm:$0x1]
    %v104 = vlaneseq
    %v105 = vshrl.u32 %v104, 7
    %v106 = vsub.s32 0, %v105
    %v107 = vrot.slane %v102, %v106
    %v108 = vsub.f32 %v86, %v107
    %v109 = vsub.f32 %v87, %v107
    %v110 = vsub.f32 %v88, %v107
    %v111 = vsub.f32 %v89, %v107
    %v112 = vsub.f32 %v90, %v107
    %v113 = vsub.f32 %v91, %v107
    %v114 = vsub.f32 %v92, %v107
    %v115 = vsub.f32 %v93, %v107
    %v116 = vsub.f32 %v94, %v107
    %v117 = vsub.f32 %v95, %v107
    %v118 = vsub.f32 %v96, %v107
    %v119 = vsub.f32 %v97, %v107
    %v120 = vsub.f32 %v98, %v107
    %v121 = vsub.f32 %v99, %v107
    %v122 = vsub.f32 %v100, %v107
    %v123 = vsub.f32 %v101, %v107
    %v124 = vlaneseq
    %v125 = vshrl.u32 %v124, 7
    %v126 = vsub.s32 0, %v125
    %v127 = vrot.slane %v103, %v126
    %v128 = vmul.f32 %v108, %v127
    %v129 = vmul.f32 %v109, %v127
    %v130 = vmul.f32 %v110, %v127
    %v131 = vmul.f32 %v111, %v127
    %v132 = vmul.f32 %v112, %v127
    %v133 = vmul.f32 %v113, %v127
    %v134 = vmul.f32 %v114, %v127
    %v135 = vmul.f32 %v115, %v127
    %v136 = vmul.f32 %v116, %v127
    %v137 = vmul.f32 %v117, %v127
    %v138 = vmul.f32 %v118, %v127
    %v139 = vmul.f32 %v119, %v127
    %v140 = vmul.f32 %v120, %v127
    %v141 = vmul.f32 %v121, %v127
    %v142 = vmul.f32 %v122, %v127
    %v143 = vmul.f32 %v123, %v127
    %v144 = vld [vmem:[#allocation7] sm:$0x1]
    %v146 = vlaneseq
    %v147 = vshrl.u32 %v146, 7
    %v148 = vsub.s32 0, %v147
    %v149 = vrot.slane %v144, %v148
    %v151 = vmul.f32 %v128, %v149
    %v152 = vmul.f32 %v129, %v149
    %v153 = vmul.f32 %v130, %v149
    %v154 = vmul.f32 %v131, %v149
    %v155 = vmul.f32 %v132, %v149
    %v156 = vmul.f32 %v133, %v149
    %v157 = vmul.f32 %v134, %v149
    %v158 = vmul.f32 %v135, %v149
    %v159 = vmul.f32 %v136, %v149
    %v160 = vmul.f32 %v137, %v149
    %v161 = vmul.f32 %v138, %v149
    %v162 = vmul.f32 %v139, %v149
    %v163 = vmul.f32 %v140, %v149
    %v164 = vmul.f32 %v141, %v149
    %v165 = vmul.f32 %v142, %v149
    %v166 = vmul.f32 %v143, %v149
    %v167 = vld [vmem:[#allocation8] sm:$0x1]
    %v169 = vlaneseq
    %v170 = vshrl.u32 %v169, 7
    %v171 = vsub.s32 0, %v170
    %v172 = vrot.slane %v167, %v171
    %v174 = vadd.f32 %v151, %v172
    %v175 = vadd.f32 %v152, %v172
    %v176 = vadd.f32 %v153, %v172
    %v177 = vadd.f32 %v154, %v172
    %v178 = vadd.f32 %v155, %v172
    %v179 = vadd.f32 %v156, %v172
    %v180 = vadd.f32 %v157, %v172
    %v181 = vadd.f32 %v158, %v172
    %v182 = vadd.f32 %v159, %v172
    %v183 = vadd.f32 %v160, %v172
    %v184 = vadd.f32 %v161, %v172
    %v185 = vadd.f32 %v162, %v172
    %v186 = vadd.f32 %v163, %v172
    %v187 = vadd.f32 %v164, %v172
    %v188 = vadd.f32 %v165, %v172
    %v189 = vadd.f32 %v166, %v172
    %v190 = vmax.f32 %v174, 0.0
    %v191 = vmax.f32 %v175, 0.0
    %v192 = vmax.f32 %v176, 0.0
    %v193 = vmax.f32 %v177, 0.0
    %v194 = vmax.f32 %v178, 0.0
    %v195 = vmax.f32 %v179, 0.0
    %v196 = vmax.f32 %v180, 0.0
    %v197 = vmax.f32 %v181, 0.0
    %v198 = vmax.f32 %v182, 0.0
    %v199 = vmax.f32 %v183, 0.0
    %v200 = vmax.f32 %v184, 0.0
    %v201 = vmax.f32 %v185, 0.0
    %v202 = vmax.f32 %v186, 0.0
    %v203 = vmax.f32 %v187, 0.0
    %v204 = vmax.f32 %v188, 0.0
    %v205 = vmax.f32 %v189, 0.0
    %v206 = vld [vmem:[#allocation10] sm:$0xff]
    %v207 = vld [vmem:[#allocation10 + $0x8] sm:$0xff]
    %v208 = vld [vmem:[#allocation10 + $0x10] sm:$0xff]
    %v209 = vld [vmem:[#allocation10 + $0x18] sm:$0xff]
    %v210 = vld [vmem:[#allocation10 + $0x20] sm:$0xff]
    %v211 = vld [vmem:[#allocation10 + $0x28] sm:$0xff]
    %v212 = vld [vmem:[#allocation10 + $0x30] sm:$0xff]
    %v213 = vld [vmem:[#allocation10 + $0x38] sm:$0xff]
    %v214 = vld [vmem:[#allocation10 + $0x40] sm:$0xff]
    %v215 = vld [vmem:[#allocation10 + $0x48] sm:$0xff]
    %v216 = vld [vmem:[#allocation10 + $0x50] sm:$0xff]
    %v217 = vld [vmem:[#allocation10 + $0x58] sm:$0xff]
    %v218 = vld [vmem:[#allocation10 + $0x60] sm:$0xff]
    %v219 = vld [vmem:[#allocation10 + $0x68] sm:$0xff]
    %v220 = vld [vmem:[#allocation10 + $0x70] sm:$0xff]
    %v221 = vld [vmem:[#allocation10 + $0x78] sm:$0xff]
    %222 = vmatprep.subr.mxu0 0.0
    %223 = vmatpush1.msra.mxu0 %v206
    %224 = vmatprep.subr.mxu0 0.0
    %225 = vmatpush1.msra.mxu0 %v207
    %226 = vmatprep.subr.mxu0 0.0
    %227 = vmatpush1.msra.mxu0 %v208
    %228 = vmatprep.subr.mxu0 0.0
    %229 = vmatpush1.msra.mxu0 %v209
    %230 = vmatprep.subr.mxu0 0.0
    %231 = vmatpush1.msra.mxu0 %v210
    %232 = vmatprep.subr.mxu0 0.0
    %233 = vmatpush1.msra.mxu0 %v211
    %234 = vmatprep.subr.mxu0 0.0
    %235 = vmatpush1.msra.mxu0 %v212
    %236 = vmatprep.subr.mxu0 0.0
    %237 = vmatpush1.msra.mxu0 %v213
    %238 = vmatprep.subr.mxu0 0.0
    %239 = vmatpush1.msra.mxu0 %v214
    %240 = vmatprep.subr.mxu0 0.0
    %241 = vmatpush1.msra.mxu0 %v215
    %242 = vmatprep.subr.mxu0 0.0
    %243 = vmatpush1.msra.mxu0 %v216
    %244 = vmatprep.subr.mxu0 0.0
    %245 = vmatpush1.msra.mxu0 %v217
    %246 = vmatprep.subr.mxu0 0.0
    %247 = vmatpush1.msra.mxu0 %v218
    %248 = vmatprep.subr.mxu0 0.0
    %249 = vmatpush1.msra.mxu0 %v219
    %250 = vmatprep.subr.mxu0 0.0
    %251 = vmatpush1.msra.mxu0 %v220
    %252 = vmatprep.subr.mxu0 0.0
    %253 = vmatpush1.msra.mxu0 %v221
    %254 = vmatprep.subr.mxu0 0.0
    %255 = vmatpush1.msra.mxu0 0.0
    %256 = vmatprep.subr.mxu0 0.0
    %257 = vmatpush1.msra.mxu0 0.0
    %258 = vmatprep.subr.mxu0 0.0
    %259 = vmatpush1.msra.mxu0 0.0
    %260 = vmatprep.subr.mxu0 0.0
    %261 = vmatpush1.msra.mxu0 0.0
    %262 = vmatprep.subr.mxu0 0.0
    %263 = vmatpush1.msra.mxu0 0.0
    %264 = vmatprep.subr.mxu0 0.0
    %265 = vmatpush1.msra.mxu0 0.0
    %266 = vmatprep.subr.mxu0 0.0
    %267 = vmatpush1.msra.mxu0 0.0
    %268 = vmatprep.subr.mxu0 0.0
    %269 = vmatpush1.msra.mxu0 0.0
    %270 = vmatprep.subr.mxu0 0.0
    %271 = vmatpush1.msra.mxu0 0.0
    %272 = vmatprep.subr.mxu0 0.0
    %273 = vmatpush1.msra.mxu0 0.0
    %274 = vmatprep.subr.mxu0 0.0
    %275 = vmatpush1.msra.mxu0 0.0
    %276 = vmatprep.subr.mxu0 0.0
    %277 = vmatpush1.msra.mxu0 0.0
    %278 = vmatprep.subr.mxu0 0.0
    %279 = vmatpush1.msra.mxu0 0.0
    %280 = vmatprep.subr.mxu0 0.0
    %281 = vmatpush1.msra.mxu0 0.0
    %282 = vmatprep.subr.mxu0 0.0
    %283 = vmatpush1.msra.mxu0 0.0
    %284 = vmatprep.subr.mxu0 0.0
    %285 = vmatpush1.msra.mxu0 0.0
    %286 = vmatprep.mubr.f32.mxu0 0.0
    %287 = vmatmul.mubr.f32.gmra.mrb[0].mxu0 %v190
    %v288 = vpop.f32.mrb[0].mxu0
    %v289 = vadd.f32 0.0, %v288
    %v290 = vpop.f32.mrb[0].mxu0
    %291 = vmatprep.mubr.f32.mxu0 0.0
    %292 = vmatmul.mubr.f32.gmra.mrb[0].mxu0 %v191
    %v293 = vpop.f32.mrb[0].mxu0
    %v294 = vadd.f32 0.0, %v293
    %v295 = vpop.f32.mrb[0].mxu0
    %296 = vmatprep.mubr.f32.mxu0 0.0
    %297 = vmatmul.mubr.f32.gmra.mrb[0].mxu0 %v192
    %v298 = vpop.f32.mrb[0].mxu0
    %v299 = vadd.f32 0.0, %v298
    %v300 = vpop.f32.mrb[0].mxu0
    %301 = vmatprep.mubr.f32.mxu0 0.0
    %302 = vmatmul.mubr.f32.gmra.mrb[0].mxu0 %v193
    %v303 = vpop.f32.mrb[0].mxu0
    %v304 = vadd.f32 0.0, %v303
    %v305 = vpop.f32.mrb[0].mxu0
    %306 = vmatprep.mubr.f32.mxu0 0.0
    %307 = vmatmul.mubr.f32.gmra.mrb[0].mxu0 %v194
    %v308 = vpop.f32.mrb[0].mxu0
    %v309 = vadd.f32 0.0, %v308
    %v310 = vpop.f32.mrb[0].mxu0
    %311 = vmatprep.mubr.f32.mxu0 0.0
    %312 = vmatmul.mubr.f32.gmra.mrb[0].mxu0 %v195
    %v313 = vpop.f32.mrb[0].mxu0
    %v314 = vadd.f32 0.0, %v313
    %v315 = vpop.f32.mrb[0].mxu0
    %316 = vmatprep.mubr.f32.mxu0 0.0
    %317 = vmatmul.mubr.f32.gmra.mrb[0].mxu0 %v196
    %v318 = vpop.f32.mrb[0].mxu0
    %v319 = vadd.f32 0.0, %v318
    %v320 = vpop.f32.mrb[0].mxu0
    %321 = vmatprep.mubr.f32.mxu0 0.0
    %322 = vmatmul.mubr.f32.gmra.mrb[0].mxu0 %v197
    %v323 = vpop.f32.mrb[0].mxu0
    %v324 = vadd.f32 0.0, %v323
    %v325 = vpop.f32.mrb[0].mxu0
    %326 = vmatprep.mubr.f32.mxu0 0.0
    %327 = vmatmul.mubr.f32.gmra.mrb[0].mxu0 %v198
    %v328 = vpop.f32.mrb[0].mxu0
    %v329 = vadd.f32 0.0, %v328
    %v330 = vpop.f32.mrb[0].mxu0
    %331 = vmatprep.mubr.f32.mxu0 0.0
    %332 = vmatmul.mubr.f32.gmra.mrb[0].mxu0 %v199
    %v333 = vpop.f32.mrb[0].mxu0
    %v334 = vadd.f32 0.0, %v333
    %v335 = vpop.f32.mrb[0].mxu0
    %336 = vmatprep.mubr.f32.mxu0 0.0
    %337 = vmatmul.mubr.f32.gmra.mrb[0].mxu0 %v200
    %v338 = vpop.f32.mrb[0].mxu0
    %v339 = vadd.f32 0.0, %v338
    %v340 = vpop.f32.mrb[0].mxu0
    %341 = vmatprep.mubr.f32.mxu0 0.0
    %342 = vmatmul.mubr.f32.gmra.mrb[0].mxu0 %v201
    %v343 = vpop.f32.mrb[0].mxu0
    %v344 = vadd.f32 0.0, %v343
    %v345 = vpop.f32.mrb[0].mxu0
    %346 = vmatprep.mubr.f32.mxu0 0.0
    %347 = vmatmul.mubr.f32.gmra.mrb[0].mxu0 %v202
    %v348 = vpop.f32.mrb[0].mxu0
    %v349 = vadd.f32 0.0, %v348
    %v350 = vpop.f32.mrb[0].mxu0
    %351 = vmatprep.mubr.f32.mxu0 0.0
    %352 = vmatmul.mubr.f32.gmra.mrb[0].mxu0 %v203
    %v353 = vpop.f32.mrb[0].mxu0
    %v354 = vadd.f32 0.0, %v353
    %v355 = vpop.f32.mrb[0].mxu0
    %356 = vmatprep.mubr.f32.mxu0 0.0
    %357 = vmatmul.mubr.f32.gmra.mrb[0].mxu0 %v204
    %v358 = vpop.f32.mrb[0].mxu0
    %v359 = vadd.f32 0.0, %v358
    %v360 = vpop.f32.mrb[0].mxu0
    %361 = vmatprep.mubr.f32.mxu0 0.0
    %362 = vmatmul.mubr.f32.gmra.mrb[0].mxu0 %v205
    %v363 = vpop.f32.mrb[0].mxu0
    %v364 = vadd.f32 0.0, %v363
    %v365 = vpop.f32.mrb[0].mxu0
    %366 = vdwg.mxu0
    %367 = vst [vmem:[#allocation11] sm:$0xff] %v289
    %368 = vst [vmem:[#allocation11 + $0x8] sm:$0xff] %v294
    %369 = vst [vmem:[#allocation11 + $0x10] sm:$0xff] %v299
    %370 = vst [vmem:[#allocation11 + $0x18] sm:$0xff] %v304
    %371 = vst [vmem:[#allocation11 + $0x20] sm:$0xff] %v309
    %372 = vst [vmem:[#allocation11 + $0x28] sm:$0xff] %v314
    %373 = vst [vmem:[#allocation11 + $0x30] sm:$0xff] %v319
    %374 = vst [vmem:[#allocation11 + $0x38] sm:$0xff] %v324
    %375 = vst [vmem:[#allocation11 + $0x40] sm:$0xff] %v329
    %376 = vst [vmem:[#allocation11 + $0x48] sm:$0xff] %v334
    %377 = vst [vmem:[#allocation11 + $0x50] sm:$0xff] %v339
    %378 = vst [vmem:[#allocation11 + $0x58] sm:$0xff] %v344
    %379 = vst [vmem:[#allocation11 + $0x60] sm:$0xff] %v349
    %380 = vst [vmem:[#allocation11 + $0x68] sm:$0xff] %v354
    %381 = vst [vmem:[#allocation11 + $0x70] sm:$0xff] %v359
    %382 = vst [vmem:[#allocation11 + $0x78] sm:$0xff] %v364
    %v383 = vadd.f32 %v289, %v294
    %v384 = vadd.f32 %v383, %v299
    %v385 = vadd.f32 %v384, %v304
    %v386 = vadd.f32 %v385, %v309
    %v387 = vadd.f32 %v386, %v314
    %v388 = vadd.f32 %v387, %v319
    %v389 = vadd.f32 %v388, %v324
    %v390 = vadd.f32 %v389, %v329
    %v391 = vadd.f32 %v390, %v334
    %v392 = vadd.f32 %v391, %v339
    %v393 = vadd.f32 %v392, %v344
    %v394 = vadd.f32 %v393, %v349
    %v395 = vadd.f32 %v394, %v354
    %v396 = vadd.f32 %v395, %v359
    %v397 = vadd.f32 %v396, %v364
    %v398 = vrot.slane %v397, 4
    %v399 = vadd.f32 %v397, %v398
    %v400 = vrot.slane %v399, 2
    %v401 = vadd.f32 %v399, %v400
    %v402 = vrot.slane %v401, 1
    %v403 = vadd.f32 %v401, %v402
    %v404 = vmul.f32 %v289, %v289
    %v405 = vmul.f32 %v294, %v294
    %v406 = vmul.f32 %v299, %v299
    %v407 = vmul.f32 %v304, %v304
    %v408 = vmul.f32 %v309, %v309
    %v409 = vmul.f32 %v314, %v314
    %v410 = vmul.f32 %v319, %v319
    %v411 = vmul.f32 %v324, %v324
    %v412 = vmul.f32 %v329, %v329
    %v413 = vmul.f32 %v334, %v334
    %v414 = vmul.f32 %v339, %v339
    %v415 = vmul.f32 %v344, %v344
    %v416 = vmul.f32 %v349, %v349
    %v417 = vmul.f32 %v354, %v354
    %v418 = vmul.f32 %v359, %v359
    %v419 = vmul.f32 %v364, %v364
    %v420 = vadd.f32 %v404, %v405
    %v421 = vadd.f32 %v420, %v406
    %v422 = vadd.f32 %v421, %v407
    %v423 = vadd.f32 %v422, %v408
    %v424 = vadd.f32 %v423, %v409
    %v425 = vadd.f32 %v424, %v410
    %v426 = vadd.f32 %v425, %v411
    %v427 = vadd.f32 %v426, %v412
    %v428 = vadd.f32 %v427, %v413
    %v429 = vadd.f32 %v428, %v414
    %v430 = vadd.f32 %v429, %v415
    %v431 = vadd.f32 %v430, %v416
    %v432 = vadd.f32 %v431, %v417
    %v433 = vadd.f32 %v432, %v418
    %v434 = vadd.f32 %v433, %v419
    %v435 = vrot.slane %v434, 4
    %v436 = vadd.f32 %v434, %v435
    %v437 = vrot.slane %v436, 2
    %v438 = vadd.f32 %v436, %v437
    %v439 = vrot.slane %v438, 1
    %v440 = vadd.f32 %v438, %v439
    %vm441 = vcmask 1040384
    %v442 = vsel %vm441, %v403, %v440
    %443 = vst [vmem:[#allocation12] sm:$0x3] %v442
    // Predicated region
    $region42: #{bottleneck_forward.6} parent=1 // pred_check
      _
    $region43: #{bottleneck_forward.6} parent=1 // pred_check_branch
      %445 = sbr.rel (0) target = $region45
    $region44: #{bottleneck_forward.6} parent=1 // pred_region
      %s447 = ssub.s32 2048, 2048
      %448 = vsyncadd [#allocation4], %s447
      %s449 = sshll.u32 [#allocation11], 4
      %s450 = int_to_ptr.vmem [resolvable:$true] %s449
      %455 = dma.vmem_to_hbm [thread:$0]  %s450, 2048, %s5, [#allocation4], 128, 128, 8
    $region45: #{bottleneck_forward.6} parent=1 // pred_fallthru
      _
    // Predicated region
    $region46: #{bottleneck_forward.6} parent=1 // pred_check
      _
    $region47: #{bottleneck_forward.6} parent=1 // pred_check_branch
      %457 = sbr.rel (0) target = $region49
    $region48: #{bottleneck_forward.6} parent=1 // pred_region
      %s459 = ssub.s32 32, 32
      %460 = vsyncadd [#allocation13], %s459
      %s462 = sshll.u32 [#allocation12], 4
      %s463 = int_to_ptr.vmem [resolvable:$true] %s462
      %465 = dma.vmem_to_hbm [thread:$0]  %s463, 32, %s6, [#allocation13]
    $region49: #{bottleneck_forward.6} parent=1 // pred_fallthru
      _
    // Predicated region
    $region50: #{bottleneck_forward.6} parent=1 // pred_check
      _
    $region51: #{bottleneck_forward.6} parent=1 // pred_check_branch
      %467 = sbr.rel (0) target = $region53
    $region52: #{bottleneck_forward.6} parent=1 // pred_region
      %468 = dma.done [#allocation4], 2048
    $region53: #{bottleneck_forward.6} parent=1 // pred_fallthru
      _
    // Predicated region
    $region54: #{bottleneck_forward.6} parent=1 // pred_check
      _
    $region55: #{bottleneck_forward.6} parent=1 // pred_check_branch
      %470 = sbr.rel (0) target = $region57
    $region56: #{bottleneck_forward.6} parent=1 // pred_region
      %471 = dma.done [#allocation13], 32
    $region57: #{bottleneck_forward.6} parent=1 // pred_fallthru
      _
    %472 = vsyncpa [#allocation3], 1
    %473 = vsyncpa [#allocation6], 1
    %474 = vsyncpa [#allocation9], 1
    %475 = vsyncpa [#allocation4], 1
    %476 = vsyncpa [#allocation13], 1

// kernel: bottleneck_forward.4
$region0: #{bottleneck_forward.4}
  #allocation0 [shape = 'u32[]', space=smem, size = 0x4, offset = 0x4, fixed_abs, tag = 'smem constant byte address 0x4 - core index']
  #allocation1 [shape = 'u32[144,128]{1,0:T(1,128)}', space=vmem, size = 0x12000, scoped, tag = 'internal scratch']
  %s0 = inlined_call_operand.hbm [shape: f32[128,128], index: 0, kind: input, shape index: {}]
  %s1 = inlined_call_operand.hbm [shape: f32[128,128], index: 1, kind: input, shape index: {}]
  %s2 = inlined_call_operand.hbm [shape: f32[128,128], index: 2, kind: output, shape index: {0}]
  %s3 = inlined_call_operand.hbm [shape: f32[1,2,128], index: 3, kind: output, shape index: {1}]
  %4 = xla_tuple %s2, %s3
  %s5 = sld [smem:[#allocation0]]
  $region34: #{bottleneck_forward.4} parent=0
    _
  %s7 = ssub.s32 1, %s5
  %s8 = scalar_select 0, %s7, %s5
  $region1: #{bottleneck_forward.4} parent=0
    #allocation2 [shape = 'u8[65536]{0}', space=vmem, size = 0x10000, scoped, tag = 'input window, operand 0, single buffered']
    #allocation3 [shape = 's32[1]{0}', space=sflag, size = 0x4, scoped, tag = 'scoped memory for bottleneck_forward.4']
    #allocation4 [shape = 's32[1]{0}', space=sflag, size = 0x4, scoped, tag = 'scoped memory for bottleneck_forward.4']
    #allocation5 [shape = 'u8[65536]{0}', space=vmem, size = 0x10000, scoped, tag = 'input window, operand 1, single buffered']
    #allocation6 [shape = 's32[1]{0}', space=sflag, size = 0x4, scoped, tag = 'scoped memory for bottleneck_forward.4']
    #allocation7 [shape = 'u8[65536]{0}', space=vmem, size = 0x10000, scoped, tag = 'output window, operand 0, single buffered']
    #allocation8 [shape = 'u8[1024]{0}', space=vmem, size = 0x400, scoped, tag = 'output window, operand 1, single buffered']
    #allocation9 [shape = 's32[1]{0}', space=sflag, size = 0x4, scoped, tag = 'scoped memory for bottleneck_forward.4']
    %9 = vsyncpa [#allocation3], 0
    %10 = vsyncpa [#allocation6], 0
    %11 = vsyncpa [#allocation4], 0
    %12 = vsyncpa [#allocation9], 0
    // Predicated region
    $region2: #{bottleneck_forward.4} parent=1 // pred_check
      _
    $region3: #{bottleneck_forward.4} parent=1 // pred_check_branch
      %14 = sbr.rel (0) target = $region5
    $region4: #{bottleneck_forward.4} parent=1 // pred_region
      %s16 = ssub.s32 2048, 2048
      %17 = vsyncadd [#allocation3], %s16
      %s18 = sshll.u32 [#allocation2], 4
      %s19 = int_to_ptr.vmem [resolvable:$true] %s18
      %24 = dma.hbm_to_vmem [thread:$0]  %s0, 2048, %s19, [#allocation3], 128, 128, 8
    $region5: #{bottleneck_forward.4} parent=1 // pred_fallthru
      _
    // Predicated region
    $region6: #{bottleneck_forward.4} parent=1 // pred_check
      _
    $region7: #{bottleneck_forward.4} parent=1 // pred_check_branch
      %26 = sbr.rel (0) target = $region9
    $region8: #{bottleneck_forward.4} parent=1 // pred_region
      %s28 = ssub.s32 2048, 2048
      %29 = vsyncadd [#allocation6], %s28
      %s30 = sshll.u32 [#allocation5], 4
      %s31 = int_to_ptr.vmem [resolvable:$true] %s30
      %36 = dma.hbm_to_vmem [thread:$0]  %s1, 2048, %s31, [#allocation6], 128, 128, 8
    $region9: #{bottleneck_forward.4} parent=1 // pred_fallthru
      _
    // Predicated region
    $region10: #{bottleneck_forward.4} parent=1 // pred_check
      _
    $region11: #{bottleneck_forward.4} parent=1 // pred_check_branch
      %38 = sbr.rel (0) target = $region13
    $region12: #{bottleneck_forward.4} parent=1 // pred_region
      %39 = dma.done [#allocation3], 2048
    $region13: #{bottleneck_forward.4} parent=1 // pred_fallthru
      _
    // Predicated region
    $region14: #{bottleneck_forward.4} parent=1 // pred_check
      _
    $region15: #{bottleneck_forward.4} parent=1 // pred_check_branch
      %41 = sbr.rel (0) target = $region17
    $region16: #{bottleneck_forward.4} parent=1 // pred_region
      %42 = dma.done [#allocation6], 2048
    $region17: #{bottleneck_forward.4} parent=1 // pred_fallthru
      _
    %v43 = vld [vmem:[#allocation2] sm:$0xff]
    %v44 = vld [vmem:[#allocation2 + $0x8] sm:$0xff]
    %v45 = vld [vmem:[#allocation2 + $0x10] sm:$0xff]
    %v46 = vld [vmem:[#allocation2 + $0x18] sm:$0xff]
    %v47 = vld [vmem:[#allocation2 + $0x20] sm:$0xff]
    %v48 = vld [vmem:[#allocation2 + $0x28] sm:$0xff]
    %v49 = vld [vmem:[#allocation2 + $0x30] sm:$0xff]
    %v50 = vld [vmem:[#allocation2 + $0x38] sm:$0xff]
    %v51 = vld [vmem:[#allocation2 + $0x40] sm:$0xff]
    %v52 = vld [vmem:[#allocation2 + $0x48] sm:$0xff]
    %v53 = vld [vmem:[#allocation2 + $0x50] sm:$0xff]
    %v54 = vld [vmem:[#allocation2 + $0x58] sm:$0xff]
    %v55 = vld [vmem:[#allocation2 + $0x60] sm:$0xff]
    %v56 = vld [vmem:[#allocation2 + $0x68] sm:$0xff]
    %v57 = vld [vmem:[#allocation2 + $0x70] sm:$0xff]
    %v58 = vld [vmem:[#allocation2 + $0x78] sm:$0xff]
    %v59 = vld [vmem:[#allocation5] sm:$0xff]
    %v60 = vld [vmem:[#allocation5 + $0x8] sm:$0xff]
    %v61 = vld [vmem:[#allocation5 + $0x10] sm:$0xff]
    %v62 = vld [vmem:[#allocation5 + $0x18] sm:$0xff]
    %v63 = vld [vmem:[#allocation5 + $0x20] sm:$0xff]
    %v64 = vld [vmem:[#allocation5 + $0x28] sm:$0xff]
    %v65 = vld [vmem:[#allocation5 + $0x30] sm:$0xff]
    %v66 = vld [vmem:[#allocation5 + $0x38] sm:$0xff]
    %v67 = vld [vmem:[#allocation5 + $0x40] sm:$0xff]
    %v68 = vld [vmem:[#allocation5 + $0x48] sm:$0xff]
    %v69 = vld [vmem:[#allocation5 + $0x50] sm:$0xff]
    %v70 = vld [vmem:[#allocation5 + $0x58] sm:$0xff]
    %v71 = vld [vmem:[#allocation5 + $0x60] sm:$0xff]
    %v72 = vld [vmem:[#allocation5 + $0x68] sm:$0xff]
    %v73 = vld [vmem:[#allocation5 + $0x70] sm:$0xff]
    %v74 = vld [vmem:[#allocation5 + $0x78] sm:$0xff]
    %75 = vmatprep.subr.mxu0 0.0
    %76 = vmatpush1.msra.mxu0 %v59
    %77 = vmatprep.subr.mxu0 0.0
    %78 = vmatpush1.msra.mxu0 %v60
    %79 = vmatprep.subr.mxu0 0.0
    %80 = vmatpush1.msra.mxu0 %v61
    %81 = vmatprep.subr.mxu0 0.0
    %82 = vmatpush1.msra.mxu0 %v62
    %83 = vmatprep.subr.mxu0 0.0
    %84 = vmatpush1.msra.mxu0 %v63
    %85 = vmatprep.subr.mxu0 0.0
    %86 = vmatpush1.msra.mxu0 %v64
    %87 = vmatprep.subr.mxu0 0.0
    %88 = vmatpush1.msra.mxu0 %v65
    %89 = vmatprep.subr.mxu0 0.0
    %90 = vmatpush1.msra.mxu0 %v66
    %91 = vmatprep.subr.mxu0 0.0
    %92 = vmatpush1.msra.mxu0 %v67
    %93 = vmatprep.subr.mxu0 0.0
    %94 = vmatpush1.msra.mxu0 %v68
    %95 = vmatprep.subr.mxu0 0.0
    %96 = vmatpush1.msra.mxu0 %v69
    %97 = vmatprep.subr.mxu0 0.0
    %98 = vmatpush1.msra.mxu0 %v70
    %99 = vmatprep.subr.mxu0 0.0
    %100 = vmatpush1.msra.mxu0 %v71
    %101 = vmatprep.subr.mxu0 0.0
    %102 = vmatpush1.msra.mxu0 %v72
    %103 = vmatprep.subr.mxu0 0.0
    %104 = vmatpush1.msra.mxu0 %v73
    %105 = vmatprep.subr.mxu0 0.0
    %106 = vmatpush1.msra.mxu0 %v74
    %107 = vmatprep.subr.mxu0 0.0
    %108 = vmatpush1.msra.mxu0 0.0
    %109 = vmatprep.subr.mxu0 0.0
    %110 = vmatpush1.msra.mxu0 0.0
    %111 = vmatprep.subr.mxu0 0.0
    %112 = vmatpush1.msra.mxu0 0.0
    %113 = vmatprep.subr.mxu0 0.0
    %114 = vmatpush1.msra.mxu0 0.0
    %115 = vmatprep.subr.mxu0 0.0
    %116 = vmatpush1.msra.mxu0 0.0
    %117 = vmatprep.subr.mxu0 0.0
    %118 = vmatpush1.msra.mxu0 0.0
    %119 = vmatprep.subr.mxu0 0.0
    %120 = vmatpush1.msra.mxu0 0.0
    %121 = vmatprep.subr.mxu0 0.0
    %122 = vmatpush1.msra.mxu0 0.0
    %123 = vmatprep.subr.mxu0 0.0
    %124 = vmatpush1.msra.mxu0 0.0
    %125 = vmatprep.subr.mxu0 0.0
    %126 = vmatpush1.msra.mxu0 0.0
    %127 = vmatprep.subr.mxu0 0.0
    %128 = vmatpush1.msra.mxu0 0.0
    %129 = vmatprep.subr.mxu0 0.0
    %130 = vmatpush1.msra.mxu0 0.0
    %131 = vmatprep.subr.mxu0 0.0
    %132 = vmatpush1.msra.mxu0 0.0
    %133 = vmatprep.subr.mxu0 0.0
    %134 = vmatpush1.msra.mxu0 0.0
    %135 = vmatprep.subr.mxu0 0.0
    %136 = vmatpush1.msra.mxu0 0.0
    %137 = vmatprep.subr.mxu0 0.0
    %138 = vmatpush1.msra.mxu0 0.0
    %139 = vmatprep.mubr.f32.mxu0 0.0
    %140 = vmatmul.mubr.f32.gmra.mrb[0].mxu0 %v43
    %v141 = vpop.f32.mrb[0].mxu0
    %v142 = vadd.f32 0.0, %v141
    %v143 = vpop.f32.mrb[0].mxu0
    %144 = vmatprep.mubr.f32.mxu0 0.0
    %145 = vmatmul.mubr.f32.gmra.mrb[0].mxu0 %v44
    %v146 = vpop.f32.mrb[0].mxu0
    %v147 = vadd.f32 0.0, %v146
    %v148 = vpop.f32.mrb[0].mxu0
    %149 = vmatprep.mubr.f32.mxu0 0.0
    %150 = vmatmul.mubr.f32.gmra.mrb[0].mxu0 %v45
    %v151 = vpop.f32.mrb[0].mxu0
    %v152 = vadd.f32 0.0, %v151
    %v153 = vpop.f32.mrb[0].mxu0
    %154 = vmatprep.mubr.f32.mxu0 0.0
    %155 = vmatmul.mubr.f32.gmra.mrb[0].mxu0 %v46
    %v156 = vpop.f32.mrb[0].mxu0
    %v157 = vadd.f32 0.0, %v156
    %v158 = vpop.f32.mrb[0].mxu0
    %159 = vmatprep.mubr.f32.mxu0 0.0
    %160 = vmatmul.mubr.f32.gmra.mrb[0].mxu0 %v47
    %v161 = vpop.f32.mrb[0].mxu0
    %v162 = vadd.f32 0.0, %v161
    %v163 = vpop.f32.mrb[0].mxu0
    %164 = vmatprep.mubr.f32.mxu0 0.0
    %165 = vmatmul.mubr.f32.gmra.mrb[0].mxu0 %v48
    %v166 = vpop.f32.mrb[0].mxu0
    %v167 = vadd.f32 0.0, %v166
    %v168 = vpop.f32.mrb[0].mxu0
    %169 = vmatprep.mubr.f32.mxu0 0.0
    %170 = vmatmul.mubr.f32.gmra.mrb[0].mxu0 %v49
    %v171 = vpop.f32.mrb[0].mxu0
    %v172 = vadd.f32 0.0, %v171
    %v173 = vpop.f32.mrb[0].mxu0
    %174 = vmatprep.mubr.f32.mxu0 0.0
    %175 = vmatmul.mubr.f32.gmra.mrb[0].mxu0 %v50
    %v176 = vpop.f32.mrb[0].mxu0
    %v177 = vadd.f32 0.0, %v176
    %v178 = vpop.f32.mrb[0].mxu0
    %179 = vmatprep.mubr.f32.mxu0 0.0
    %180 = vmatmul.mubr.f32.gmra.mrb[0].mxu0 %v51
    %v181 = vpop.f32.mrb[0].mxu0
    %v182 = vadd.f32 0.0, %v181
    %v183 = vpop.f32.mrb[0].mxu0
    %184 = vmatprep.mubr.f32.mxu0 0.0
    %185 = vmatmul.mubr.f32.gmra.mrb[0].mxu0 %v52
    %v186 = vpop.f32.mrb[0].mxu0
    %v187 = vadd.f32 0.0, %v186
    %v188 = vpop.f32.mrb[0].mxu0
    %189 = vmatprep.mubr.f32.mxu0 0.0
    %190 = vmatmul.mubr.f32.gmra.mrb[0].mxu0 %v53
    %v191 = vpop.f32.mrb[0].mxu0
    %v192 = vadd.f32 0.0, %v191
    %v193 = vpop.f32.mrb[0].mxu0
    %194 = vmatprep.mubr.f32.mxu0 0.0
    %195 = vmatmul.mubr.f32.gmra.mrb[0].mxu0 %v54
    %v196 = vpop.f32.mrb[0].mxu0
    %v197 = vadd.f32 0.0, %v196
    %v198 = vpop.f32.mrb[0].mxu0
    %199 = vmatprep.mubr.f32.mxu0 0.0
    %200 = vmatmul.mubr.f32.gmra.mrb[0].mxu0 %v55
    %v201 = vpop.f32.mrb[0].mxu0
    %v202 = vadd.f32 0.0, %v201
    %v203 = vpop.f32.mrb[0].mxu0
    %204 = vmatprep.mubr.f32.mxu0 0.0
    %205 = vmatmul.mubr.f32.gmra.mrb[0].mxu0 %v56
    %v206 = vpop.f32.mrb[0].mxu0
    %v207 = vadd.f32 0.0, %v206
    %v208 = vpop.f32.mrb[0].mxu0
    %209 = vmatprep.mubr.f32.mxu0 0.0
    %210 = vmatmul.mubr.f32.gmra.mrb[0].mxu0 %v57
    %v211 = vpop.f32.mrb[0].mxu0
    %v212 = vadd.f32 0.0, %v211
    %v213 = vpop.f32.mrb[0].mxu0
    %214 = vmatprep.mubr.f32.mxu0 0.0
    %215 = vmatmul.mubr.f32.gmra.mrb[0].mxu0 %v58
    %v216 = vpop.f32.mrb[0].mxu0
    %v217 = vadd.f32 0.0, %v216
    %v218 = vpop.f32.mrb[0].mxu0
    %219 = vdwg.mxu0
    %220 = vst [vmem:[#allocation7] sm:$0xff] %v142
    %221 = vst [vmem:[#allocation7 + $0x8] sm:$0xff] %v147
    %222 = vst [vmem:[#allocation7 + $0x10] sm:$0xff] %v152
    %223 = vst [vmem:[#allocation7 + $0x18] sm:$0xff] %v157
    %224 = vst [vmem:[#allocation7 + $0x20] sm:$0xff] %v162
    %225 = vst [vmem:[#allocation7 + $0x28] sm:$0xff] %v167
    %226 = vst [vmem:[#allocation7 + $0x30] sm:$0xff] %v172
    %227 = vst [vmem:[#allocation7 + $0x38] sm:$0xff] %v177
    %228 = vst [vmem:[#allocation7 + $0x40] sm:$0xff] %v182
    %229 = vst [vmem:[#allocation7 + $0x48] sm:$0xff] %v187
    %230 = vst [vmem:[#allocation7 + $0x50] sm:$0xff] %v192
    %231 = vst [vmem:[#allocation7 + $0x58] sm:$0xff] %v197
    %232 = vst [vmem:[#allocation7 + $0x60] sm:$0xff] %v202
    %233 = vst [vmem:[#allocation7 + $0x68] sm:$0xff] %v207
    %234 = vst [vmem:[#allocation7 + $0x70] sm:$0xff] %v212
    %235 = vst [vmem:[#allocation7 + $0x78] sm:$0xff] %v217
    %v236 = vadd.f32 %v142, %v147
    %v237 = vadd.f32 %v236, %v152
    %v238 = vadd.f32 %v237, %v157
    %v239 = vadd.f32 %v238, %v162
    %v240 = vadd.f32 %v239, %v167
    %v241 = vadd.f32 %v240, %v172
    %v242 = vadd.f32 %v241, %v177
    %v243 = vadd.f32 %v242, %v182
    %v244 = vadd.f32 %v243, %v187
    %v245 = vadd.f32 %v244, %v192
    %v246 = vadd.f32 %v245, %v197
    %v247 = vadd.f32 %v246, %v202
    %v248 = vadd.f32 %v247, %v207
    %v249 = vadd.f32 %v248, %v212
    %v250 = vadd.f32 %v249, %v217
    %v251 = vrot.slane %v250, 4
    %v252 = vadd.f32 %v250, %v251
    %v253 = vrot.slane %v252, 2
    %v254 = vadd.f32 %v252, %v253
    %v255 = vrot.slane %v254, 1
    %v256 = vadd.f32 %v254, %v255
    %v257 = vmul.f32 %v142, %v142
    %v258 = vmul.f32 %v147, %v147
    %v259 = vmul.f32 %v152, %v152
    %v260 = vmul.f32 %v157, %v157
    %v261 = vmul.f32 %v162, %v162
    %v262 = vmul.f32 %v167, %v167
    %v263 = vmul.f32 %v172, %v172
    %v264 = vmul.f32 %v177, %v177
    %v265 = vmul.f32 %v182, %v182
    %v266 = vmul.f32 %v187, %v187
    %v267 = vmul.f32 %v192, %v192
    %v268 = vmul.f32 %v197, %v197
    %v269 = vmul.f32 %v202, %v202
    %v270 = vmul.f32 %v207, %v207
    %v271 = vmul.f32 %v212, %v212
    %v272 = vmul.f32 %v217, %v217
    %v273 = vadd.f32 %v257, %v258
    %v274 = vadd.f32 %v273, %v259
    %v275 = vadd.f32 %v274, %v260
    %v276 = vadd.f32 %v275, %v261
    %v277 = vadd.f32 %v276, %v262
    %v278 = vadd.f32 %v277, %v263
    %v279 = vadd.f32 %v278, %v264
    %v280 = vadd.f32 %v279, %v265
    %v281 = vadd.f32 %v280, %v266
    %v282 = vadd.f32 %v281, %v267
    %v283 = vadd.f32 %v282, %v268
    %v284 = vadd.f32 %v283, %v269
    %v285 = vadd.f32 %v284, %v270
    %v286 = vadd.f32 %v285, %v271
    %v287 = vadd.f32 %v286, %v272
    %v288 = vrot.slane %v287, 4
    %v289 = vadd.f32 %v287, %v288
    %v290 = vrot.slane %v289, 2
    %v291 = vadd.f32 %v289, %v290
    %v292 = vrot.slane %v291, 1
    %v293 = vadd.f32 %v291, %v292
    %vm294 = vcmask 1040384
    %v295 = vsel %vm294, %v256, %v293
    %296 = vst [vmem:[#allocation8] sm:$0x3] %v295
    // Predicated region
    $region18: #{bottleneck_forward.4} parent=1 // pred_check
      _
    $region19: #{bottleneck_forward.4} parent=1 // pred_check_branch
      %298 = sbr.rel (0) target = $region21
    $region20: #{bottleneck_forward.4} parent=1 // pred_region
      %s300 = ssub.s32 2048, 2048
      %301 = vsyncadd [#allocation4], %s300
      %s302 = sshll.u32 [#allocation7], 4
      %s303 = int_to_ptr.vmem [resolvable:$true] %s302
      %308 = dma.vmem_to_hbm [thread:$0]  %s303, 2048, %s2, [#allocation4], 128, 128, 8
    $region21: #{bottleneck_forward.4} parent=1 // pred_fallthru
      _
    // Predicated region
    $region22: #{bottleneck_forward.4} parent=1 // pred_check
      _
    $region23: #{bottleneck_forward.4} parent=1 // pred_check_branch
      %310 = sbr.rel (0) target = $region25
    $region24: #{bottleneck_forward.4} parent=1 // pred_region
      %s312 = ssub.s32 32, 32
      %313 = vsyncadd [#allocation9], %s312
      %s315 = sshll.u32 [#allocation8], 4
      %s316 = int_to_ptr.vmem [resolvable:$true] %s315
      %318 = dma.vmem_to_hbm [thread:$0]  %s316, 32, %s3, [#allocation9]
    $region25: #{bottleneck_forward.4} parent=1 // pred_fallthru
      _
    // Predicated region
    $region26: #{bottleneck_forward.4} parent=1 // pred_check
      _
    $region27: #{bottleneck_forward.4} parent=1 // pred_check_branch
      %320 = sbr.rel (0) target = $region29
    $region28: #{bottleneck_forward.4} parent=1 // pred_region
      %321 = dma.done [#allocation4], 2048
    $region29: #{bottleneck_forward.4} parent=1 // pred_fallthru
      _
    // Predicated region
    $region30: #{bottleneck_forward.4} parent=1 // pred_check
      _
    $region31: #{bottleneck_forward.4} parent=1 // pred_check_branch
      %323 = sbr.rel (0) target = $region33
    $region32: #{bottleneck_forward.4} parent=1 // pred_region
      %324 = dma.done [#allocation9], 32
    $region33: #{bottleneck_forward.4} parent=1 // pred_fallthru
      _
    %325 = vsyncpa [#allocation3], 1
    %326 = vsyncpa [#allocation6], 1
    %327 = vsyncpa [#allocation4], 1
    %328 = vsyncpa [#allocation9], 1

// kernel: bottleneck_forward.7
$region0: #{bottleneck_forward.7}
  #allocation0 [shape = 'u32[]', space=smem, size = 0x4, offset = 0x4, fixed_abs, tag = 'smem constant byte address 0x4 - core index']
  #allocation1 [shape = 'u32[144,128]{1,0:T(1,128)}', space=vmem, size = 0x12000, scoped, tag = 'internal scratch']
  %s0 = inlined_call_operand.hbm [shape: f32[128,128], index: 0, kind: input, shape index: {}]
  %s1 = inlined_call_operand.hbm [shape: f32[128,128], index: 1, kind: input, shape index: {}, may-alias: {1,5}]
  %s2 = inlined_call_operand.hbm [shape: f32[2,128], index: 2, kind: input, shape index: {}]
  %s3 = inlined_call_operand.hbm [shape: f32[1,128], index: 3, kind: input, shape index: {}]
  %s4 = inlined_call_operand.hbm [shape: f32[1,128], index: 4, kind: input, shape index: {}]
  %s5 = inlined_call_operand.hbm [shape: f32[128,128], index: 5, kind: output, shape index: {}, may-alias: {1,5}]
  %s6 = sld [smem:[#allocation0]]
  $region50: #{bottleneck_forward.7} parent=0
    _
  %s8 = ssub.s32 1, %s6
  %s9 = scalar_select 0, %s8, %s6
  $region1: #{bottleneck_forward.7} parent=0
    #allocation2 [shape = 'u8[65536]{0}', space=vmem, size = 0x10000, scoped, tag = 'input window, operand 0, single buffered']
    #allocation3 [shape = 's32[1]{0}', space=sflag, size = 0x4, scoped, tag = 'scoped memory for bottleneck_forward.7']
    #allocation4 [shape = 's32[1]{0}', space=sflag, size = 0x4, scoped, tag = 'scoped memory for bottleneck_forward.7']
    #allocation5 [shape = 'u8[65536]{0}', space=vmem, size = 0x10000, scoped, tag = 'input window, operand 1, single buffered']
    #allocation6 [shape = 's32[1]{0}', space=sflag, size = 0x4, scoped, tag = 'scoped memory for bottleneck_forward.7']
    #allocation7 [shape = 'u8[1024]{0}', space=vmem, size = 0x400, scoped, tag = 'input window, operand 2, single buffered']
    #allocation8 [shape = 'u8[512]{0}', space=vmem, size = 0x400, scoped, tag = 'input window, operand 3, single buffered']
    #allocation9 [shape = 's32[1]{0}', space=sflag, size = 0x4, scoped, tag = 'scoped memory for bottleneck_forward.7']
    #allocation10 [shape = 'u8[512]{0}', space=vmem, size = 0x400, scoped, tag = 'input window, operand 4, single buffered']
    #allocation11 [shape = 'u8[65536]{0}', space=vmem, size = 0x10000, scoped, tag = 'output window, operand 0, single buffered']
    %10 = vsyncpa [#allocation3], 0
    %11 = vsyncpa [#allocation6], 0
    %12 = vsyncpa [#allocation9], 0
    %13 = vsyncpa [#allocation4], 0
    // Predicated region
    $region2: #{bottleneck_forward.7} parent=1 // pred_check
      _
    $region3: #{bottleneck_forward.7} parent=1 // pred_check_branch
      %15 = sbr.rel (0) target = $region5
    $region4: #{bottleneck_forward.7} parent=1 // pred_region
      %s17 = ssub.s32 2048, 2048
      %18 = vsyncadd [#allocation3], %s17
      %s19 = sshll.u32 [#allocation2], 4
      %s20 = int_to_ptr.vmem [resolvable:$true] %s19
      %25 = dma.hbm_to_vmem [thread:$0]  %s0, 2048, %s20, [#allocation3], 128, 128, 8
    $region5: #{bottleneck_forward.7} parent=1 // pred_fallthru
      _
    // Predicated region
    $region6: #{bottleneck_forward.7} parent=1 // pred_check
      _
    $region7: #{bottleneck_forward.7} parent=1 // pred_check_branch
      %27 = sbr.rel (0) target = $region9
    $region8: #{bottleneck_forward.7} parent=1 // pred_region
      %s29 = ssub.s32 2048, 2048
      %30 = vsyncadd [#allocation6], %s29
      %s31 = sshll.u32 [#allocation5], 4
      %s32 = int_to_ptr.vmem [resolvable:$true] %s31
      %37 = dma.hbm_to_vmem [thread:$0]  %s1, 2048, %s32, [#allocation6], 128, 128, 8
    $region9: #{bottleneck_forward.7} parent=1 // pred_fallthru
      _
    // Predicated region
    $region10: #{bottleneck_forward.7} parent=1 // pred_check
      _
    $region11: #{bottleneck_forward.7} parent=1 // pred_check_branch
      %39 = sbr.rel (0) target = $region13
    $region12: #{bottleneck_forward.7} parent=1 // pred_region
      %s41 = ssub.s32 32, 32
      %42 = vsyncadd [#allocation6], %s41
      %s44 = sshll.u32 [#allocation7], 4
      %s45 = int_to_ptr.vmem [resolvable:$true] %s44
      %47 = dma.hbm_to_vmem [thread:$0]  %s2, 32, %s45, [#allocation6]
    $region13: #{bottleneck_forward.7} parent=1 // pred_fallthru
      _
    // Predicated region
    $region14: #{bottleneck_forward.7} parent=1 // pred_check
      _
    $region15: #{bottleneck_forward.7} parent=1 // pred_check_branch
      %49 = sbr.rel (0) target = $region17
    $region16: #{bottleneck_forward.7} parent=1 // pred_region
      %s51 = ssub.s32 16, 16
      %52 = vsyncadd [#allocation9], %s51
      %s54 = sshll.u32 [#allocation8], 4
      %s55 = int_to_ptr.vmem [resolvable:$true] %s54
      %57 = dma.hbm_to_vmem [thread:$0]  %s3, 16, %s55, [#allocation9]
    $region17: #{bottleneck_forward.7} parent=1 // pred_fallthru
      _
    // Predicated region
    $region18: #{bottleneck_forward.7} parent=1 // pred_check
      _
    $region19: #{bottleneck_forward.7} parent=1 // pred_check_branch
      %59 = sbr.rel (0) target = $region21
    $region20: #{bottleneck_forward.7} parent=1 // pred_region
      %s61 = ssub.s32 16, 16
      %62 = vsyncadd [#allocation9], %s61
      %s64 = sshll.u32 [#allocation10], 4
      %s65 = int_to_ptr.vmem [resolvable:$true] %s64
      %67 = dma.hbm_to_vmem [thread:$0]  %s4, 16, %s65, [#allocation9]
    $region21: #{bottleneck_forward.7} parent=1 // pred_fallthru
      _
    // Predicated region
    $region22: #{bottleneck_forward.7} parent=1 // pred_check
      _
    $region23: #{bottleneck_forward.7} parent=1 // pred_check_branch
      %69 = sbr.rel (0) target = $region25
    $region24: #{bottleneck_forward.7} parent=1 // pred_region
      %70 = dma.done [#allocation3], 2048
    $region25: #{bottleneck_forward.7} parent=1 // pred_fallthru
      _
    // Predicated region
    $region26: #{bottleneck_forward.7} parent=1 // pred_check
      _
    $region27: #{bottleneck_forward.7} parent=1 // pred_check_branch
      %72 = sbr.rel (0) target = $region29
    $region28: #{bottleneck_forward.7} parent=1 // pred_region
      %73 = dma.done [#allocation6], 2048
    $region29: #{bottleneck_forward.7} parent=1 // pred_fallthru
      _
    // Predicated region
    $region30: #{bottleneck_forward.7} parent=1 // pred_check
      _
    $region31: #{bottleneck_forward.7} parent=1 // pred_check_branch
      %75 = sbr.rel (0) target = $region33
    $region32: #{bottleneck_forward.7} parent=1 // pred_region
      %76 = dma.done [#allocation6], 32
    $region33: #{bottleneck_forward.7} parent=1 // pred_fallthru
      _
    // Predicated region
    $region34: #{bottleneck_forward.7} parent=1 // pred_check
      _
    $region35: #{bottleneck_forward.7} parent=1 // pred_check_branch
      %78 = sbr.rel (0) target = $region37
    $region36: #{bottleneck_forward.7} parent=1 // pred_region
      %79 = dma.done [#allocation9], 16
    $region37: #{bottleneck_forward.7} parent=1 // pred_fallthru
      _
    // Predicated region
    $region38: #{bottleneck_forward.7} parent=1 // pred_check
      _
    $region39: #{bottleneck_forward.7} parent=1 // pred_check_branch
      %81 = sbr.rel (0) target = $region41
    $region40: #{bottleneck_forward.7} parent=1 // pred_region
      %82 = dma.done [#allocation9], 16
    $region41: #{bottleneck_forward.7} parent=1 // pred_fallthru
      _
    %v83 = vld [vmem:[#allocation2] sm:$0xff]
    %v84 = vld [vmem:[#allocation2 + $0x8] sm:$0xff]
    %v85 = vld [vmem:[#allocation2 + $0x10] sm:$0xff]
    %v86 = vld [vmem:[#allocation2 + $0x18] sm:$0xff]
    %v87 = vld [vmem:[#allocation2 + $0x20] sm:$0xff]
    %v88 = vld [vmem:[#allocation2 + $0x28] sm:$0xff]
    %v89 = vld [vmem:[#allocation2 + $0x30] sm:$0xff]
    %v90 = vld [vmem:[#allocation2 + $0x38] sm:$0xff]
    %v91 = vld [vmem:[#allocation2 + $0x40] sm:$0xff]
    %v92 = vld [vmem:[#allocation2 + $0x48] sm:$0xff]
    %v93 = vld [vmem:[#allocation2 + $0x50] sm:$0xff]
    %v94 = vld [vmem:[#allocation2 + $0x58] sm:$0xff]
    %v95 = vld [vmem:[#allocation2 + $0x60] sm:$0xff]
    %v96 = vld [vmem:[#allocation2 + $0x68] sm:$0xff]
    %v97 = vld [vmem:[#allocation2 + $0x70] sm:$0xff]
    %v98 = vld [vmem:[#allocation2 + $0x78] sm:$0xff]
    %v99 = vld [vmem:[#allocation7] sm:$0x1]
    %v100 = vld [vmem:[#allocation7 + $0x1] sm:$0x1]
    %v101 = vlaneseq
    %v102 = vshrl.u32 %v101, 7
    %v103 = vsub.s32 0, %v102
    %v104 = vrot.slane %v99, %v103
    %v105 = vsub.f32 %v83, %v104
    %v106 = vsub.f32 %v84, %v104
    %v107 = vsub.f32 %v85, %v104
    %v108 = vsub.f32 %v86, %v104
    %v109 = vsub.f32 %v87, %v104
    %v110 = vsub.f32 %v88, %v104
    %v111 = vsub.f32 %v89, %v104
    %v112 = vsub.f32 %v90, %v104
    %v113 = vsub.f32 %v91, %v104
    %v114 = vsub.f32 %v92, %v104
    %v115 = vsub.f32 %v93, %v104
    %v116 = vsub.f32 %v94, %v104
    %v117 = vsub.f32 %v95, %v104
    %v118 = vsub.f32 %v96, %v104
    %v119 = vsub.f32 %v97, %v104
    %v120 = vsub.f32 %v98, %v104
    %v121 = vlaneseq
    %v122 = vshrl.u32 %v121, 7
    %v123 = vsub.s32 0, %v122
    %v124 = vrot.slane %v100, %v123
    %v125 = vmul.f32 %v105, %v124
    %v126 = vmul.f32 %v106, %v124
    %v127 = vmul.f32 %v107, %v124
    %v128 = vmul.f32 %v108, %v124
    %v129 = vmul.f32 %v109, %v124
    %v130 = vmul.f32 %v110, %v124
    %v131 = vmul.f32 %v111, %v124
    %v132 = vmul.f32 %v112, %v124
    %v133 = vmul.f32 %v113, %v124
    %v134 = vmul.f32 %v114, %v124
    %v135 = vmul.f32 %v115, %v124
    %v136 = vmul.f32 %v116, %v124
    %v137 = vmul.f32 %v117, %v124
    %v138 = vmul.f32 %v118, %v124
    %v139 = vmul.f32 %v119, %v124
    %v140 = vmul.f32 %v120, %v124
    %v141 = vld [vmem:[#allocation8] sm:$0x1]
    %v143 = vlaneseq
    %v144 = vshrl.u32 %v143, 7
    %v145 = vsub.s32 0, %v144
    %v146 = vrot.slane %v141, %v145
    %v148 = vmul.f32 %v125, %v146
    %v149 = vmul.f32 %v126, %v146
    %v150 = vmul.f32 %v127, %v146
    %v151 = vmul.f32 %v128, %v146
    %v152 = vmul.f32 %v129, %v146
    %v153 = vmul.f32 %v130, %v146
    %v154 = vmul.f32 %v131, %v146
    %v155 = vmul.f32 %v132, %v146
    %v156 = vmul.f32 %v133, %v146
    %v157 = vmul.f32 %v134, %v146
    %v158 = vmul.f32 %v135, %v146
    %v159 = vmul.f32 %v136, %v146
    %v160 = vmul.f32 %v137, %v146
    %v161 = vmul.f32 %v138, %v146
    %v162 = vmul.f32 %v139, %v146
    %v163 = vmul.f32 %v140, %v146
    %v164 = vld [vmem:[#allocation10] sm:$0x1]
    %v166 = vlaneseq
    %v167 = vshrl.u32 %v166, 7
    %v168 = vsub.s32 0, %v167
    %v169 = vrot.slane %v164, %v168
    %v171 = vadd.f32 %v148, %v169
    %v172 = vadd.f32 %v149, %v169
    %v173 = vadd.f32 %v150, %v169
    %v174 = vadd.f32 %v151, %v169
    %v175 = vadd.f32 %v152, %v169
    %v176 = vadd.f32 %v153, %v169
    %v177 = vadd.f32 %v154, %v169
    %v178 = vadd.f32 %v155, %v169
    %v179 = vadd.f32 %v156, %v169
    %v180 = vadd.f32 %v157, %v169
    %v181 = vadd.f32 %v158, %v169
    %v182 = vadd.f32 %v159, %v169
    %v183 = vadd.f32 %v160, %v169
    %v184 = vadd.f32 %v161, %v169
    %v185 = vadd.f32 %v162, %v169
    %v186 = vadd.f32 %v163, %v169
    %v187 = vld [vmem:[#allocation5] sm:$0xff]
    %v188 = vld [vmem:[#allocation5 + $0x8] sm:$0xff]
    %v189 = vld [vmem:[#allocation5 + $0x10] sm:$0xff]
    %v190 = vld [vmem:[#allocation5 + $0x18] sm:$0xff]
    %v191 = vld [vmem:[#allocation5 + $0x20] sm:$0xff]
    %v192 = vld [vmem:[#allocation5 + $0x28] sm:$0xff]
    %v193 = vld [vmem:[#allocation5 + $0x30] sm:$0xff]
    %v194 = vld [vmem:[#allocation5 + $0x38] sm:$0xff]
    %v195 = vld [vmem:[#allocation5 + $0x40] sm:$0xff]
    %v196 = vld [vmem:[#allocation5 + $0x48] sm:$0xff]
    %v197 = vld [vmem:[#allocation5 + $0x50] sm:$0xff]
    %v198 = vld [vmem:[#allocation5 + $0x58] sm:$0xff]
    %v199 = vld [vmem:[#allocation5 + $0x60] sm:$0xff]
    %v200 = vld [vmem:[#allocation5 + $0x68] sm:$0xff]
    %v201 = vld [vmem:[#allocation5 + $0x70] sm:$0xff]
    %v202 = vld [vmem:[#allocation5 + $0x78] sm:$0xff]
    %v203 = vadd.f32 %v171, %v187
    %v204 = vadd.f32 %v172, %v188
    %v205 = vadd.f32 %v173, %v189
    %v206 = vadd.f32 %v174, %v190
    %v207 = vadd.f32 %v175, %v191
    %v208 = vadd.f32 %v176, %v192
    %v209 = vadd.f32 %v177, %v193
    %v210 = vadd.f32 %v178, %v194
    %v211 = vadd.f32 %v179, %v195
    %v212 = vadd.f32 %v180, %v196
    %v213 = vadd.f32 %v181, %v197
    %v214 = vadd.f32 %v182, %v198
    %v215 = vadd.f32 %v183, %v199
    %v216 = vadd.f32 %v184, %v200
    %v217 = vadd.f32 %v185, %v201
    %v218 = vadd.f32 %v186, %v202
    %v219 = vmax.f32 %v203, 0.0
    %v220 = vmax.f32 %v204, 0.0
    %v221 = vmax.f32 %v205, 0.0
    %v222 = vmax.f32 %v206, 0.0
    %v223 = vmax.f32 %v207, 0.0
    %v224 = vmax.f32 %v208, 0.0
    %v225 = vmax.f32 %v209, 0.0
    %v226 = vmax.f32 %v210, 0.0
    %v227 = vmax.f32 %v211, 0.0
    %v228 = vmax.f32 %v212, 0.0
    %v229 = vmax.f32 %v213, 0.0
    %v230 = vmax.f32 %v214, 0.0
    %v231 = vmax.f32 %v215, 0.0
    %v232 = vmax.f32 %v216, 0.0
    %v233 = vmax.f32 %v217, 0.0
    %v234 = vmax.f32 %v218, 0.0
    %235 = vst [vmem:[#allocation11] sm:$0xff] %v219
    %236 = vst [vmem:[#allocation11 + $0x8] sm:$0xff] %v220
    %237 = vst [vmem:[#allocation11 + $0x10] sm:$0xff] %v221
    %238 = vst [vmem:[#allocation11 + $0x18] sm:$0xff] %v222
    %239 = vst [vmem:[#allocation11 + $0x20] sm:$0xff] %v223
    %240 = vst [vmem:[#allocation11 + $0x28] sm:$0xff] %v224
    %241 = vst [vmem:[#allocation11 + $0x30] sm:$0xff] %v225
    %242 = vst [vmem:[#allocation11 + $0x38] sm:$0xff] %v226
    %243 = vst [vmem:[#allocation11 + $0x40] sm:$0xff] %v227
    %244 = vst [vmem:[#allocation11 + $0x48] sm:$0xff] %v228
    %245 = vst [vmem:[#allocation11 + $0x50] sm:$0xff] %v229
    %246 = vst [vmem:[#allocation11 + $0x58] sm:$0xff] %v230
    %247 = vst [vmem:[#allocation11 + $0x60] sm:$0xff] %v231
    %248 = vst [vmem:[#allocation11 + $0x68] sm:$0xff] %v232
    %249 = vst [vmem:[#allocation11 + $0x70] sm:$0xff] %v233
    %250 = vst [vmem:[#allocation11 + $0x78] sm:$0xff] %v234
    // Predicated region
    $region42: #{bottleneck_forward.7} parent=1 // pred_check
      _
    $region43: #{bottleneck_forward.7} parent=1 // pred_check_branch
      %252 = sbr.rel (0) target = $region45
    $region44: #{bottleneck_forward.7} parent=1 // pred_region
      %s254 = ssub.s32 2048, 2048
      %255 = vsyncadd [#allocation4], %s254
      %s256 = sshll.u32 [#allocation11], 4
      %s257 = int_to_ptr.vmem [resolvable:$true] %s256
      %262 = dma.vmem_to_hbm [thread:$0]  %s257, 2048, %s5, [#allocation4], 128, 128, 8
    $region45: #{bottleneck_forward.7} parent=1 // pred_fallthru
      _
    // Predicated region
    $region46: #{bottleneck_forward.7} parent=1 // pred_check
      _
    $region47: #{bottleneck_forward.7} parent=1 // pred_check_branch
      %264 = sbr.rel (0) target = $region49
    $region48: #{bottleneck_forward.7} parent=1 // pred_region
      %265 = dma.done [#allocation4], 2048
    $region49: #{bottleneck_forward.7} parent=1 // pred_fallthru
      _
    %266 = vsyncpa [#allocation3], 1
    %267 = vsyncpa [#allocation6], 1
    %268 = vsyncpa [#allocation9], 1
    %269 = vsyncpa [#allocation4], 1

// kernel: bottleneck_forward.5
$region0: #{bottleneck_forward.5}
  #allocation0 [shape = 'u32[]', space=smem, size = 0x4, offset = 0x4, fixed_abs, tag = 'smem constant byte address 0x4 - core index']
  #allocation1 [shape = 'u32[144,128]{1,0:T(1,128)}', space=vmem, size = 0x12000, scoped, tag = 'internal scratch']
  #allocation2 [shape = 'f32[10,10,128]{2,1,0:T(8,128)}', space=vmem, size = 0x14000, scoped, tag = 'scratch operand']
  #allocation3 [shape = 'f32[64,128]{1,0:T(8,128)}', space=vmem, size = 0x8000, scoped, tag = 'scratch operand']
  %s0 = inlined_call_operand.hbm [shape: f32[128,128], index: 0, kind: input, shape index: {}]
  %s1 = inlined_call_operand.hbm [shape: f32[2,128], index: 1, kind: input, shape index: {}]
  %s2 = inlined_call_operand.hbm [shape: f32[1,128], index: 2, kind: input, shape index: {}]
  %s3 = inlined_call_operand.hbm [shape: f32[1,128], index: 3, kind: input, shape index: {}]
  %s4 = inlined_call_operand.hbm [shape: f32[9,128,128], index: 4, kind: input, shape index: {}]
  %s5 = inlined_call_operand.hbm [shape: f32[128,128], index: 5, kind: output, shape index: {0}]
  %s6 = inlined_call_operand.hbm [shape: f32[2,2,128], index: 6, kind: output, shape index: {1}]
  %7 = xla_tuple %s5, %s6
  %s8 = sld [smem:[#allocation0]]
  $region81: #{bottleneck_forward.5} parent=0
    _
  %s10 = ssub.s32 1, %s8
  %s11 = scalar_select 0, %s10, %s8
  $region1: #{bottleneck_forward.5} parent=0
    #allocation4 [shape = 'u8[65536]{0}', space=vmem, size = 0x10000, scoped, tag = 'input window, operand 0']
    #allocation5 [shape = 's32[2]{0}', space=sflag, size = 0x8, scoped, tag = 'scoped memory for bottleneck_forward.5']
    #allocation6 [shape = 's32[2]{0}', space=sflag, size = 0x8, scoped, tag = 'scoped memory for bottleneck_forward.5']
    #allocation7 [shape = 'u8[1024]{0}', space=vmem, size = 0x400, scoped, tag = 'input window, operand 1, single buffered']
    #allocation8 [shape = 's32[1]{0}', space=sflag, size = 0x4, scoped, tag = 'scoped memory for bottleneck_forward.5']
    #allocation9 [shape = 'u8[512]{0}', space=vmem, size = 0x400, scoped, tag = 'input window, operand 2, single buffered']
    #allocation10 [shape = 'u8[512]{0}', space=vmem, size = 0x400, scoped, tag = 'input window, operand 3, single buffered']
    #allocation11 [shape = 's32[1]{0}', space=sflag, size = 0x4, scoped, tag = 'scoped memory for bottleneck_forward.5']
    #allocation12 [shape = 'u8[589824]{0}', space=vmem, size = 0x90000, scoped, tag = 'input window, operand 4, single buffered']
    #allocation13 [shape = 'u8[65536]{0}', space=vmem, size = 0x10000, scoped, tag = 'output window, operand 0']
    #allocation14 [shape = 'u8[2048]{0}', space=vmem, size = 0x800, scoped, tag = 'output window, operand 1']
    #allocation15 [shape = 's32[2]{0}', space=sflag, size = 0x8, scoped, tag = 'scoped memory for bottleneck_forward.5']
    %12 = vsyncpa [#allocation5], 0
    %s13 = scalar_lea.sflag [#allocation5], 1
    %14 = vsyncpa %s13, 0
    %15 = vsyncpa [#allocation8], 0
    %16 = vsyncpa [#allocation11], 0
    %17 = vsyncpa [#allocation6], 0
    %s18 = scalar_lea.sflag [#allocation6], 1
    %19 = vsyncpa %s18, 0
    %20 = vsyncpa [#allocation15], 0
    %s21 = scalar_lea.sflag [#allocation15], 1
    %22 = vsyncpa %s21, 0
    loop: start=0, step=1, limit=4
    $region2: #{bottleneck_forward.5} parent=1 // loop_pre_header
      _
    $region3: #{bottleneck_forward.5} parent=1 // loop_header
      %s24 = sphi 0, %s28
      %p25 = scmp.ge.s32.totalorder %s24, 4
      %s34 = sphi 0, %s36
      %s37 = sphi 0, %s34
      %s38 = sphi 0, %s37
      %s54 = sphi 0, %s38
      %s58 = sphi 0, %s58
      %s60 = sphi 0, %s58
      %s61 = sphi 0, %s60
      %s75 = sphi 0, %s61
      %s79 = sphi 0, %s79
      %s81 = sphi 0, %s79
      %s82 = sphi 0, %s81
      %s96 = sphi 0, %s82
      %s100 = sphi 0, %s100
      %s102 = sphi 0, %s100
      %s103 = sphi 0, %s102
      %s117 = sphi 0, %s103
      %s121 = sphi 0, %s121
      %s123 = sphi 0, %s121
      %s124 = sphi 0, %s123
      %s138 = sphi 0, %s124
      %s144 = sphi 0, %s146
      %s147 = sphi 0, %s144
      %s148 = sphi 0, %s147
      %s164 = sphi 0, %s148
      %s170 = sphi 0, %s172
      %s173 = sphi 0, %s170
      %s174 = sphi 0, %s173
      %s190 = sphi 0, %s174
    $region4: #{bottleneck_forward.5} parent=1 // loop_header_branch
      %27 = sbr.rel (%p25) target = $region8
    $region5: #{bottleneck_forward.5} parent=1 // loop_body
      %s29 = ssub.s32 %s24, 1
      %s30 = ssub.s32 %s24, 2
      %s31 = sadd.s32 %s24, 1
      %s32 = ssub.s32 %s24, %s31
      %p33 = scmp.eq.s32.totalorder %s32, 0
      %s35 = sadd.s32 %s34, 1
      %s36 = scalar_select %p33, %s34, %s35
      %p39 = pneg %p33
      %p40 = scmp.eq.s32.totalorder %s24, 1
      %p41 = por %p39, %p40
      %p42 = scmp.ne.s32.totalorder %s34, %s37
      %p43 = scmp.eq.s32.totalorder %s24, 0
      %p44 = por %p42, %p43
      %p45 = scmp.ne.s32.totalorder %s34, %s37
      %p46 = scmp.eq.s32.totalorder %s29, 1
      %p47 = por %p45, %p46
      %p48 = scmp.ne.s32.totalorder %s37, %s38
      %p49 = scmp.eq.s32.totalorder %s29, 0
      %p50 = por %p48, %p49
      %p51 = scmp.ne.s32.totalorder %s37, %s38
      %p52 = scmp.eq.s32.totalorder %s30, 1
      %p53 = por %p51, %p52
      %p55 = scmp.ne.s32.totalorder %s38, %s54
      %p56 = scmp.eq.s32.totalorder %s30, 0
      %p57 = por %p55, %p56
      %s59 = sadd.s32 %s58, 1
      %p62 = scmp.eq.s32.totalorder %s24, 1
      %p63 = scmp.ne.s32.totalorder %s58, %s60
      %p64 = scmp.eq.s32.totalorder %s24, 0
      %p65 = por %p63, %p64
      %p66 = scmp.ne.s32.totalorder %s58, %s60
      %p67 = scmp.eq.s32.totalorder %s29, 1
      %p68 = por %p66, %p67
      %p69 = scmp.ne.s32.totalorder %s60, %s61
      %p70 = scmp.eq.s32.totalorder %s29, 0
      %p71 = por %p69, %p70
      %p72 = scmp.ne.s32.totalorder %s60, %s61
      %p73 = scmp.eq.s32.totalorder %s30, 1
      %p74 = por %p72, %p73
      %p76 = scmp.ne.s32.totalorder %s61, %s75
      %p77 = scmp.eq.s32.totalorder %s30, 0
      %p78 = por %p76, %p77
      %s80 = sadd.s32 %s79, 1
      %p83 = scmp.eq.s32.totalorder %s24, 1
      %p84 = scmp.ne.s32.totalorder %s79, %s81
      %p85 = scmp.eq.s32.totalorder %s24, 0
      %p86 = por %p84, %p85
      %p87 = scmp.ne.s32.totalorder %s79, %s81
      %p88 = scmp.eq.s32.totalorder %s29, 1
      %p89 = por %p87, %p88
      %p90 = scmp.ne.s32.totalorder %s81, %s82
      %p91 = scmp.eq.s32.totalorder %s29, 0
      %p92 = por %p90, %p91
      %p93 = scmp.ne.s32.totalorder %s81, %s82
      %p94 = scmp.eq.s32.totalorder %s30, 1
      %p95 = por %p93, %p94
      %p97 = scmp.ne.s32.totalorder %s82, %s96
      %p98 = scmp.eq.s32.totalorder %s30, 0
      %p99 = por %p97, %p98
      %s101 = sadd.s32 %s100, 1
      %p104 = scmp.eq.s32.totalorder %s24, 1
      %p105 = scmp.ne.s32.totalorder %s100, %s102
      %p106 = scmp.eq.s32.totalorder %s24, 0
      %p107 = por %p105, %p106
      %p108 = scmp.ne.s32.totalorder %s100, %s102
      %p109 = scmp.eq.s32.totalorder %s29, 1
      %p110 = por %p108, %p109
      %p111 = scmp.ne.s32.totalorder %s102, %s103
      %p112 = scmp.eq.s32.totalorder %s29, 0
      %p113 = por %p111, %p112
      %p114 = scmp.ne.s32.totalorder %s102, %s103
      %p115 = scmp.eq.s32.totalorder %s30, 1
      %p116 = por %p114, %p115
      %p118 = scmp.ne.s32.totalorder %s103, %s117
      %p119 = scmp.eq.s32.totalorder %s30, 0
      %p120 = por %p118, %p119
      %s122 = sadd.s32 %s121, 1
      %p125 = scmp.eq.s32.totalorder %s24, 1
      %p126 = scmp.ne.s32.totalorder %s121, %s123
      %p127 = scmp.eq.s32.totalorder %s24, 0
      %p128 = por %p126, %p127
      %p129 = scmp.ne.s32.totalorder %s121, %s123
      %p130 = scmp.eq.s32.totalorder %s29, 1
      %p131 = por %p129, %p130
      %p132 = scmp.ne.s32.totalorder %s123, %s124
      %p133 = scmp.eq.s32.totalorder %s29, 0
      %p134 = por %p132, %p133
      %p135 = scmp.ne.s32.totalorder %s123, %s124
      %p136 = scmp.eq.s32.totalorder %s30, 1
      %p137 = por %p135, %p136
      %p139 = scmp.ne.s32.totalorder %s124, %s138
      %p140 = scmp.eq.s32.totalorder %s30, 0
      %p141 = por %p139, %p140
      %s142 = ssub.s32 %s24, %s31
      %p143 = scmp.eq.s32.totalorder %s142, 0
      %s145 = sadd.s32 %s144, 1
      %s146 = scalar_select %p143, %s144, %s145
      %p149 = pneg %p143
      %p150 = scmp.eq.s32.totalorder %s24, 1
      %p151 = por %p149, %p150
      %p152 = scmp.ne.s32.totalorder %s144, %s147
      %p153 = scmp.eq.s32.totalorder %s24, 0
      %p154 = por %p152, %p153
      %p155 = scmp.ne.s32.totalorder %s144, %s147
      %p156 = scmp.eq.s32.totalorder %s29, 1
      %p157 = por %p155, %p156
      %p158 = scmp.ne.s32.totalorder %s147, %s148
      %p159 = scmp.eq.s32.totalorder %s29, 0
      %p160 = por %p158, %p159
      %p161 = scmp.ne.s32.totalorder %s147, %s148
      %p162 = scmp.eq.s32.totalorder %s30, 1
      %p163 = por %p161, %p162
      %p165 = scmp.ne.s32.totalorder %s148, %s164
      %p166 = scmp.eq.s32.totalorder %s30, 0
      %p167 = por %p165, %p166
      %s168 = ssub.s32 %s24, %s31
      %p169 = scmp.eq.s32.totalorder %s168, 0
      %s171 = sadd.s32 %s170, 1
      %s172 = scalar_select %p169, %s170, %s171
      %p175 = pneg %p169
      %p176 = scmp.eq.s32.totalorder %s24, 1
      %p177 = por %p175, %p176
      %p178 = scmp.ne.s32.totalorder %s170, %s173
      %p179 = scmp.eq.s32.totalorder %s24, 0
      %p180 = por %p178, %p179
      %p181 = scmp.ne.s32.totalorder %s170, %s173
      %p182 = scmp.eq.s32.totalorder %s29, 1
      %p183 = por %p181, %p182
      %p184 = scmp.ne.s32.totalorder %s173, %s174
      %p185 = scmp.eq.s32.totalorder %s29, 0
      %p186 = por %p184, %p185
      %p187 = scmp.ne.s32.totalorder %s173, %s174
      %p188 = scmp.eq.s32.totalorder %s30, 1
      %p189 = por %p187, %p188
      %p191 = scmp.ne.s32.totalorder %s174, %s190
      %p192 = scmp.eq.s32.totalorder %s30, 0
      %p193 = por %p191, %p192
      %p194 = scmp.le.s32.totalorder 1, %s24
      %p195 = scmp.lt.s32.totalorder %s24, 3
      %p196 = pnand %p194, %p195
      %p197 = pneg %p196
      // Predicated region
      $region9: #{bottleneck_forward.5} parent=5 // pred_check
        _
      $region10: #{bottleneck_forward.5} parent=5 // pred_check_branch
        %199 = sbr.rel (%p196) target = $region12
      $region11: #{bottleneck_forward.5} parent=5 // pred_region
        %s200 = ssub.s32 %s24, 1
        // Predicated region
        $region13: #{bottleneck_forward.5} parent=11 // pred_check
          %p201 = pneg %p71
        $region14: #{bottleneck_forward.5} parent=11 // pred_check_branch
          %203 = sbr.rel (%p201) target = $region16
        $region15: #{bottleneck_forward.5} parent=11 // pred_region
          %s205 = ssub.s32 32, 32
          %206 = vsyncadd [#allocation8], %s205
          %s208 = sshll.u32 [#allocation7], 4
          %s209 = int_to_ptr.vmem [resolvable:$true] %s208
          %211 = dma.hbm_to_vmem [thread:$0]  %s1, 32, %s209, [#allocation8]
        $region16: #{bottleneck_forward.5} parent=11 // pred_fallthru
          _
        // Predicated region
        $region17: #{bottleneck_forward.5} parent=11 // pred_check
          %p212 = pneg %p92
        $region18: #{bottleneck_forward.5} parent=11 // pred_check_branch
          %214 = sbr.rel (%p212) target = $region20
        $region19: #{bottleneck_forward.5} parent=11 // pred_region
          %s216 = ssub.s32 16, 16
          %217 = vsyncadd [#allocation8], %s216
          %s219 = sshll.u32 [#allocation9], 4
          %s220 = int_to_ptr.vmem [resolvable:$true] %s219
          %222 = dma.hbm_to_vmem [thread:$0]  %s2, 16, %s220, [#allocation8]
        $region20: #{bottleneck_forward.5} parent=11 // pred_fallthru
          _
        // Predicated region
        $region21: #{bottleneck_forward.5} parent=11 // pred_check
          %p223 = pneg %p113
        $region22: #{bottleneck_forward.5} parent=11 // pred_check_branch
          %225 = sbr.rel (%p223) target = $region24
        $region23: #{bottleneck_forward.5} parent=11 // pred_region
          %s227 = ssub.s32 16, 16
          %228 = vsyncadd [#allocation11], %s227
          %s230 = sshll.u32 [#allocation10], 4
          %s231 = int_to_ptr.vmem [resolvable:$true] %s230
          %233 = dma.hbm_to_vmem [thread:$0]  %s3, 16, %s231, [#allocation11]
        $region24: #{bottleneck_forward.5} parent=11 // pred_fallthru
          _
        // Predicated region
        $region25: #{bottleneck_forward.5} parent=11 // pred_check
          %p234 = pneg %p134
        $region26: #{bottleneck_forward.5} parent=11 // pred_check_branch
          %236 = sbr.rel (%p234) target = $region28
        $region27: #{bottleneck_forward.5} parent=11 // pred_region
          %s238 = ssub.s32 18432, 18432
          %239 = vsyncadd [#allocation11], %s238
          %s240 = sshll.u32 [#allocation12], 4
          %s241 = int_to_ptr.vmem [resolvable:$true] %s240
          %246 = dma.hbm_to_vmem [thread:$0]  %s4, 18432, %s241, [#allocation11], 128, 128, 8
        $region28: #{bottleneck_forward.5} parent=11 // pred_fallthru
          _
      $region12: #{bottleneck_forward.5} parent=5 // pred_fallthru
        _
      %p247 = scmp.lt.s32.totalorder %s24, 2
      // Predicated region
      $region29: #{bottleneck_forward.5} parent=5 // pred_check
        %p248 = pneg %p247
      $region30: #{bottleneck_forward.5} parent=5 // pred_check_branch
        %250 = sbr.rel (%p248) target = $region32
      $region31: #{bottleneck_forward.5} parent=5 // pred_region
        // Predicated region
        $region33: #{bottleneck_forward.5} parent=31 // pred_check
          %p251 = pneg %p44
        $region34: #{bottleneck_forward.5} parent=31 // pred_check_branch
          %253 = sbr.rel (%p251) target = $region36
        $region35: #{bottleneck_forward.5} parent=31 // pred_region
          %s254 = sand.u32 %s34, 1
          %s255 = scalar_lea.sflag [#allocation5], %s254
          %s256 = sand.u32 %s34, 1
          %s257 = smul.addr %s256, 64
          %s258 = scalar_lea.vmem [#allocation4], %s257
          %s259 = smul.u32 8, %s24
          %s261 = ssub.s32 1024, 1024
          %262 = vsyncadd %s255, %s261
          %s263 = smul.addr %s259, 128
          %s264 = scalar_lea.hbm %s0, %s263
          %s265 = sshll.u32 %s258, 4
          %s266 = int_to_ptr.vmem [resolvable:$true] %s265
          %271 = dma.hbm_to_vmem [thread:$0]  %s264, 1024, %s266, %s255, 128, 128, 8
        $region36: #{bottleneck_forward.5} parent=31 // pred_fallthru
          _
      $region32: #{bottleneck_forward.5} parent=5 // pred_fallthru
        _
      %p272 = scmp.le.s32.totalorder 1, %s24
      %p273 = scmp.lt.s32.totalorder %s24, 3
      %p274 = pnand %p272, %p273
      %p275 = pneg %p274
      // Predicated region
      $region37: #{bottleneck_forward.5} parent=5 // pred_check
        _
      $region38: #{bottleneck_forward.5} parent=5 // pred_check_branch
        %277 = sbr.rel (%p274) target = $region40
      $region39: #{bottleneck_forward.5} parent=5 // pred_region
        %s278 = ssub.s32 %s24, 1
        %s279 = sand.u32 %s37, 1
        %s280 = scalar_lea.sflag [#allocation5], %s279
        %s281 = sand.u32 %s37, 1
        %s282 = smul.addr %s281, 64
        %s283 = scalar_lea.vmem [#allocation4], %s282
        // Predicated region
        $region41: #{bottleneck_forward.5} parent=39 // pred_check
          %p284 = pneg %p50
        $region42: #{bottleneck_forward.5} parent=39 // pred_check_branch
          %286 = sbr.rel (%p284) target = $region44
        $region43: #{bottleneck_forward.5} parent=39 // pred_region
          %287 = dma.done %s280, 1024
        $region44: #{bottleneck_forward.5} parent=39 // pred_fallthru
          _
        // Predicated region
        $region45: #{bottleneck_forward.5} parent=39 // pred_check
          %p288 = pneg %p71
        $region46: #{bottleneck_forward.5} parent=39 // pred_check_branch
          %290 = sbr.rel (%p288) target = $region48
        $region47: #{bottleneck_forward.5} parent=39 // pred_region
          %291 = dma.done [#allocation8], 32
        $region48: #{bottleneck_forward.5} parent=39 // pred_fallthru
          _
        // Predicated region
        $region49: #{bottleneck_forward.5} parent=39 // pred_check
          %p292 = pneg %p92
        $region50: #{bottleneck_forward.5} parent=39 // pred_check_branch
          %294 = sbr.rel (%p292) target = $region52
        $region51: #{bottleneck_forward.5} parent=39 // pred_region
          %295 = dma.done [#allocation8], 16
        $region52: #{bottleneck_forward.5} parent=39 // pred_fallthru
          _
        // Predicated region
        $region53: #{bottleneck_forward.5} parent=39 // pred_check
          %p296 = pneg %p113
        $region54: #{bottleneck_forward.5} parent=39 // pred_check_branch
          %298 = sbr.rel (%p296) target = $region56
        $region55: #{bottleneck_forward.5} parent=39 // pred_region
          %299 = dma.done [#allocation11], 16
        $region56: #{bottleneck_forward.5} parent=39 // pred_fallthru
          _
        // Predicated region
        $region57: #{bottleneck_forward.5} parent=39 // pred_check
          %p300 = pneg %p134
        $region58: #{bottleneck_forward.5} parent=39 // pred_check_branch
          %302 = sbr.rel (%p300) target = $region60
        $region59: #{bottleneck_forward.5} parent=39 // pred_region
          %303 = dma.done [#allocation11], 18432
        $region60: #{bottleneck_forward.5} parent=39 // pred_fallthru
          _
        %s304 = sand.u32 %s37, 1
        %s305 = scalar_lea.sflag [#allocation5], %s304
        %s306 = sand.u32 %s37, 1
        %s307 = smul.addr %s306, 64
        %s308 = scalar_lea.vmem [#allocation4], %s307
        %p309 = pneg %p50
        %p310 = pneg %p47
        %p311 = pneg %p71
        %p312 = pneg %p68
        %p313 = pneg %p92
        %p314 = pneg %p89
        %p315 = pneg %p113
        %p316 = pneg %p110
        %p317 = pneg %p134
        %p318 = pneg %p131
        %p319 = pneg %p160
        %p320 = pneg %p157
        %s321 = sand.u32 %s147, 1
        %s322 = scalar_lea.sflag [#allocation6], %s321
        %s323 = sand.u32 %s147, 1
        %s324 = smul.addr %s323, 64
        %s325 = scalar_lea.vmem [#allocation13], %s324
        %p326 = pneg %p186
        %p327 = pneg %p183
        %s328 = sand.u32 %s173, 1
        %s329 = scalar_lea.sflag [#allocation15], %s328
        %s330 = sand.u32 %s173, 1
        %s331 = smul.addr %s330, 2
        %s332 = scalar_lea.vmem [#allocation14], %s331
        %s333 = smul.u32 8, %s29
        %s334 = smul.u32 8, %s29
        %v335 = vld [vmem:[%s283] sm:$0xff]
        %v336 = vld [vmem:[%s283 + $0x8] sm:$0xff]
        %v337 = vld [vmem:[%s283 + $0x10] sm:$0xff]
        %v338 = vld [vmem:[%s283 + $0x18] sm:$0xff]
        %v339 = vld [vmem:[%s283 + $0x20] sm:$0xff]
        %v340 = vld [vmem:[%s283 + $0x28] sm:$0xff]
        %v341 = vld [vmem:[%s283 + $0x30] sm:$0xff]
        %v342 = vld [vmem:[%s283 + $0x38] sm:$0xff]
        %v343 = vld [vmem:[#allocation7] sm:$0x1]
        %v344 = vld [vmem:[#allocation7 + $0x1] sm:$0x1]
        %v345 = vlaneseq
        %v346 = vshrl.u32 %v345, 7
        %v347 = vsub.s32 0, %v346
        %v348 = vrot.slane %v343, %v347
        %v349 = vsub.f32 %v335, %v348
        %v350 = vsub.f32 %v336, %v348
        %v351 = vsub.f32 %v337, %v348
        %v352 = vsub.f32 %v338, %v348
        %v353 = vsub.f32 %v339, %v348
        %v354 = vsub.f32 %v340, %v348
        %v355 = vsub.f32 %v341, %v348
        %v356 = vsub.f32 %v342, %v348
        %v357 = vlaneseq
        %v358 = vshrl.u32 %v357, 7
        %v359 = vsub.s32 0, %v358
        %v360 = vrot.slane %v344, %v359
        %v361 = vmul.f32 %v349, %v360
        %v362 = vmul.f32 %v350, %v360
        %v363 = vmul.f32 %v351, %v360
        %v364 = vmul.f32 %v352, %v360
        %v365 = vmul.f32 %v353, %v360
        %v366 = vmul.f32 %v354, %v360
        %v367 = vmul.f32 %v355, %v360
        %v368 = vmul.f32 %v356, %v360
        %v369 = vld [vmem:[#allocation9] sm:$0x1]
        %v371 = vlaneseq
        %v372 = vshrl.u32 %v371, 7
        %v373 = vsub.s32 0, %v372
        %v374 = vrot.slane %v369, %v373
        %v376 = vmul.f32 %v361, %v374
        %v377 = vmul.f32 %v362, %v374
        %v378 = vmul.f32 %v363, %v374
        %v379 = vmul.f32 %v364, %v374
        %v380 = vmul.f32 %v365, %v374
        %v381 = vmul.f32 %v366, %v374
        %v382 = vmul.f32 %v367, %v374
        %v383 = vmul.f32 %v368, %v374
        %v384 = vld [vmem:[#allocation10] sm:$0x1]
        %v386 = vlaneseq
        %v387 = vshrl.u32 %v386, 7
        %v388 = vsub.s32 0, %v387
        %v389 = vrot.slane %v384, %v388
        %v391 = vadd.f32 %v376, %v389
        %v392 = vadd.f32 %v377, %v389
        %v393 = vadd.f32 %v378, %v389
        %v394 = vadd.f32 %v379, %v389
        %v395 = vadd.f32 %v380, %v389
        %v396 = vadd.f32 %v381, %v389
        %v397 = vadd.f32 %v382, %v389
        %v398 = vadd.f32 %v383, %v389
        %v399 = vmax.f32 %v391, 0.0
        %v400 = vmax.f32 %v392, 0.0
        %v401 = vmax.f32 %v393, 0.0
        %v402 = vmax.f32 %v394, 0.0
        %v403 = vmax.f32 %v395, 0.0
        %v404 = vmax.f32 %v396, 0.0
        %v405 = vmax.f32 %v397, 0.0
        %v406 = vmax.f32 %v398, 0.0
        %407 = vst [vmem:[#allocation2] sm:$0xff] 0.0
        %408 = vst [vmem:[#allocation2 + $0x8] sm:$0x3] 0.0
        %s409 = scalar_lea.vmem [#allocation2], 144
        %410 = vst [vmem:[%s409] sm:$0xff] 0.0
        %411 = vst [vmem:[%s409 + $0x8] sm:$0x3] 0.0
        %412 = vst [vmem:[#allocation2] sm:$0x1] 0.0
        %413 = vst [vmem:[#allocation2 + $0x10] sm:$0x1] 0.0
        %414 = vst [vmem:[#allocation2 + $0x20] sm:$0x1] 0.0
        %415 = vst [vmem:[#allocation2 + $0x30] sm:$0x1] 0.0
        %416 = vst [vmem:[#allocation2 + $0x40] sm:$0x1] 0.0
        %417 = vst [vmem:[#allocation2 + $0x50] sm:$0x1] 0.0
        %418 = vst [vmem:[#allocation2 + $0x60] sm:$0x1] 0.0
        %419 = vst [vmem:[#allocation2 + $0x70] sm:$0x1] 0.0
        %420 = vst [vmem:[#allocation2 + $0x80] sm:$0x1] 0.0
        %421 = vst [vmem:[#allocation2 + $0x90] sm:$0x1] 0.0
        %422 = vst [vmem:[#allocation2 + $0x9] sm:$0x1] 0.0
        %423 = vst [vmem:[#allocation2 + $0x19] sm:$0x1] 0.0
        %424 = vst [vmem:[#allocation2 + $0x29] sm:$0x1] 0.0
        %425 = vst [vmem:[#allocation2 + $0x39] sm:$0x1] 0.0
        %426 = vst [vmem:[#allocation2 + $0x49] sm:$0x1] 0.0
        %427 = vst [vmem:[#allocation2 + $0x59] sm:$0x1] 0.0
        %428 = vst [vmem:[#allocation2 + $0x69] sm:$0x1] 0.0
        %429 = vst [vmem:[#allocation2 + $0x79] sm:$0x1] 0.0
        %430 = vst [vmem:[#allocation2 + $0x89] sm:$0x1] 0.0
        %431 = vst [vmem:[#allocation2 + $0x99] sm:$0x1] 0.0
        %s432 = scalar_lea.vmem [#allocation2], 16
        %433 = vst [vmem:[%s432 + $0x1] sm:$0xff] %v399
        %434 = vst [vmem:[%s432 + $0x11] sm:$0xff] %v400
        %435 = vst [vmem:[%s432 + $0x21] sm:$0xff] %v401
        %436 = vst [vmem:[%s432 + $0x31] sm:$0xff] %v402
        %437 = vst [vmem:[%s432 + $0x41] sm:$0xff] %v403
        %438 = vst [vmem:[%s432 + $0x51] sm:$0xff] %v404
        %439 = vst [vmem:[%s432 + $0x61] sm:$0xff] %v405
        %440 = vst [vmem:[%s432 + $0x71] sm:$0xff] %v406
        %v441 = vld [vmem:[#allocation2] sm:$0xff]
        %v442 = vld [vmem:[#allocation2 + $0x10] sm:$0xff]
        %v443 = vld [vmem:[#allocation2 + $0x20] sm:$0xff]
        %v444 = vld [vmem:[#allocation2 + $0x30] sm:$0xff]
        %v445 = vld [vmem:[#allocation2 + $0x40] sm:$0xff]
        %v446 = vld [vmem:[#allocation2 + $0x50] sm:$0xff]
        %v447 = vld [vmem:[#allocation2 + $0x60] sm:$0xff]
        %v448 = vld [vmem:[#allocation2 + $0x70] sm:$0xff]
        %v449 = vld [vmem:[#allocation12] sm:$0xff]
        %v450 = vld [vmem:[#allocation12 + $0x8] sm:$0xff]
        %v451 = vld [vmem:[#allocation12 + $0x10] sm:$0xff]
        %v452 = vld [vmem:[#allocation12 + $0x18] sm:$0xff]
        %v453 = vld [vmem:[#allocation12 + $0x20] sm:$0xff]
        %v454 = vld [vmem:[#allocation12 + $0x28] sm:$0xff]
        %v455 = vld [vmem:[#allocation12 + $0x30] sm:$0xff]
        %v456 = vld [vmem:[#allocation12 + $0x38] sm:$0xff]
        %v457 = vld [vmem:[#allocation12 + $0x40] sm:$0xff]
        %v458 = vld [vmem:[#allocation12 + $0x48] sm:$0xff]
        %v459 = vld [vmem:[#allocation12 + $0x50] sm:$0xff]
        %v460 = vld [vmem:[#allocation12 + $0x58] sm:$0xff]
        %v461 = vld [vmem:[#allocation12 + $0x60] sm:$0xff]
        %v462 = vld [vmem:[#allocation12 + $0x68] sm:$0xff]
        %v463 = vld [vmem:[#allocation12 + $0x70] sm:$0xff]
        %v464 = vld [vmem:[#allocation12 + $0x78] sm:$0xff]
        %465 = vmatprep.subr.mxu0 0.0
        %466 = vmatpush1.msra.mxu0 %v449
        %467 = vmatprep.subr.mxu0 0.0
        %468 = vmatpush1.msra.mxu0 %v450
        %469 = vmatprep.subr.mxu0 0.0
        %470 = vmatpush1.msra.mxu0 %v451
        %471 = vmatprep.subr.mxu0 0.0
        %472 = vmatpush1.msra.mxu0 %v452
        %473 = vmatprep.subr.mxu0 0.0
        %474 = vmatpush1.msra.mxu0 %v453
        %475 = vmatprep.subr.mxu0 0.0
        %476 = vmatpush1.msra.mxu0 %v454
        %477 = vmatprep.subr.mxu0 0.0
        %478 = vmatpush1.msra.mxu0 %v455
        %479 = vmatprep.subr.mxu0 0.0
        %480 = vmatpush1.msra.mxu0 %v456
        %481 = vmatprep.subr.mxu0 0.0
        %482 = vmatpush1.msra.mxu0 %v457
        %483 = vmatprep.subr.mxu0 0.0
        %484 = vmatpush1.msra.mxu0 %v458
        %485 = vmatprep.subr.mxu0 0.0
        %486 = vmatpush1.msra.mxu0 %v459
        %487 = vmatprep.subr.mxu0 0.0
        %488 = vmatpush1.msra.mxu0 %v460
        %489 = vmatprep.subr.mxu0 0.0
        %490 = vmatpush1.msra.mxu0 %v461
        %491 = vmatprep.subr.mxu0 0.0
        %492 = vmatpush1.msra.mxu0 %v462
        %493 = vmatprep.subr.mxu0 0.0
        %494 = vmatpush1.msra.mxu0 %v463
        %495 = vmatprep.subr.mxu0 0.0
        %496 = vmatpush1.msra.mxu0 %v464
        %497 = vmatprep.subr.mxu0 0.0
        %498 = vmatpush1.msra.mxu0 0.0
        %499 = vmatprep.subr.mxu0 0.0
        %500 = vmatpush1.msra.mxu0 0.0
        %501 = vmatprep.subr.mxu0 0.0
        %502 = vmatpush1.msra.mxu0 0.0
        %503 = vmatprep.subr.mxu0 0.0
        %504 = vmatpush1.msra.mxu0 0.0
        %505 = vmatprep.subr.mxu0 0.0
        %506 = vmatpush1.msra.mxu0 0.0
        %507 = vmatprep.subr.mxu0 0.0
        %508 = vmatpush1.msra.mxu0 0.0
        %509 = vmatprep.subr.mxu0 0.0
        %510 = vmatpush1.msra.mxu0 0.0
        %511 = vmatprep.subr.mxu0 0.0
        %512 = vmatpush1.msra.mxu0 0.0
        %513 = vmatprep.subr.mxu0 0.0
        %514 = vmatpush1.msra.mxu0 0.0
        %515 = vmatprep.subr.mxu0 0.0
        %516 = vmatpush1.msra.mxu0 0.0
        %517 = vmatprep.subr.mxu0 0.0
        %518 = vmatpush1.msra.mxu0 0.0
        %519 = vmatprep.subr.mxu0 0.0
        %520 = vmatpush1.msra.mxu0 0.0
        %521 = vmatprep.subr.mxu0 0.0
        %522 = vmatpush1.msra.mxu0 0.0
        %523 = vmatprep.subr.mxu0 0.0
        %524 = vmatpush1.msra.mxu0 0.0
        %525 = vmatprep.subr.mxu0 0.0
        %526 = vmatpush1.msra.mxu0 0.0
        %527 = vmatprep.subr.mxu0 0.0
        %528 = vmatpush1.msra.mxu0 0.0
        %529 = vmatprep.mubr.f32.mxu0 0.0
        %530 = vmatmul.mubr.f32.gmra.mrb[0].mxu0 %v441
        %v531 = vpop.f32.mrb[0].mxu0
        %v532 = vadd.f32 0.0, %v531
        %v533 = vpop.f32.mrb[0].mxu0
        %534 = vmatprep.mubr.f32.mxu0 0.0
        %535 = vmatmul.mubr.f32.gmra.mrb[0].mxu0 %v442
        %v536 = vpop.f32.mrb[0].mxu0
        %v537 = vadd.f32 0.0, %v536
        %v538 = vpop.f32.mrb[0].mxu0
        %539 = vmatprep.mubr.f32.mxu0 0.0
        %540 = vmatmul.mubr.f32.gmra.mrb[0].mxu0 %v443
        %v541 = vpop.f32.mrb[0].mxu0
        %v542 = vadd.f32 0.0, %v541
        %v543 = vpop.f32.mrb[0].mxu0
        %544 = vmatprep.mubr.f32.mxu0 0.0
        %545 = vmatmul.mubr.f32.gmra.mrb[0].mxu0 %v444
        %v546 = vpop.f32.mrb[0].mxu0
        %v547 = vadd.f32 0.0, %v546
        %v548 = vpop.f32.mrb[0].mxu0
        %549 = vmatprep.mubr.f32.mxu0 0.0
        %550 = vmatmul.mubr.f32.gmra.mrb[0].mxu0 %v445
        %v551 = vpop.f32.mrb[0].mxu0
        %v552 = vadd.f32 0.0, %v551
        %v553 = vpop.f32.mrb[0].mxu0
        %554 = vmatprep.mubr.f32.mxu0 0.0
        %555 = vmatmul.mubr.f32.gmra.mrb[0].mxu0 %v446
        %v556 = vpop.f32.mrb[0].mxu0
        %v557 = vadd.f32 0.0, %v556
        %v558 = vpop.f32.mrb[0].mxu0
        %559 = vmatprep.mubr.f32.mxu0 0.0
        %560 = vmatmul.mubr.f32.gmra.mrb[0].mxu0 %v447
        %v561 = vpop.f32.mrb[0].mxu0
        %v562 = vadd.f32 0.0, %v561
        %v563 = vpop.f32.mrb[0].mxu0
        %564 = vmatprep.mubr.f32.mxu0 0.0
        %565 = vmatmul.mubr.f32.gmra.mrb[0].mxu0 %v448
        %v566 = vpop.f32.mrb[0].mxu0
        %v567 = vadd.f32 0.0, %v566
        %v568 = vpop.f32.mrb[0].mxu0
        %569 = vdwg.mxu0
        %570 = vst [vmem:[#allocation3] sm:$0xff] %v532
        %571 = vst [vmem:[#allocation3 + $0x8] sm:$0xff] %v537
        %572 = vst [vmem:[#allocation3 + $0x10] sm:$0xff] %v542
        %573 = vst [vmem:[#allocation3 + $0x18] sm:$0xff] %v547
        %574 = vst [vmem:[#allocation3 + $0x20] sm:$0xff] %v552
        %575 = vst [vmem:[#allocation3 + $0x28] sm:$0xff] %v557
        %576 = vst [vmem:[#allocation3 + $0x30] sm:$0xff] %v562
        %577 = vst [vmem:[#allocation3 + $0x38] sm:$0xff] %v567
        %v578 = vld [vmem:[#allocation2 + $0x1] sm:$0xff]
        %v579 = vld [vmem:[#allocation2 + $0x11] sm:$0xff]
        %v580 = vld [vmem:[#allocation2 + $0x21] sm:$0xff]
        %v581 = vld [vmem:[#allocation2 + $0x31] sm:$0xff]
        %v582 = vld [vmem:[#allocation2 + $0x41] sm:$0xff]
        %v583 = vld [vmem:[#allocation2 + $0x51] sm:$0xff]
        %v584 = vld [vmem:[#allocation2 + $0x61] sm:$0xff]
        %v585 = vld [vmem:[#allocation2 + $0x71] sm:$0xff]
        %s586 = scalar_lea.vmem [#allocation12], 128
        %v587 = vld [vmem:[%s586] sm:$0xff]
        %v588 = vld [vmem:[%s586 + $0x8] sm:$0xff]
        %v589 = vld [vmem:[%s586 + $0x10] sm:$0xff]
        %v590 = vld [vmem:[%s586 + $0x18] sm:$0xff]
        %v591 = vld [vmem:[%s586 + $0x20] sm:$0xff]
        %v592 = vld [vmem:[%s586 + $0x28] sm:$0xff]
        %v593 = vld [vmem:[%s586 + $0x30] sm:$0xff]
        %v594 = vld [vmem:[%s586 + $0x38] sm:$0xff]
        %v595 = vld [vmem:[%s586 + $0x40] sm:$0xff]
        %v596 = vld [vmem:[%s586 + $0x48] sm:$0xff]
        %v597 = vld [vmem:[%s586 + $0x50] sm:$0xff]
        %v598 = vld [vmem:[%s586 + $0x58] sm:$0xff]
        %v599 = vld [vmem:[%s586 + $0x60] sm:$0xff]
        %v600 = vld [vmem:[%s586 + $0x68] sm:$0xff]
        %v601 = vld [vmem:[%s586 + $0x70] sm:$0xff]
        %v602 = vld [vmem:[%s586 + $0x78] sm:$0xff]
        %603 = vmatprep.subr.mxu0 0.0
        %604 = vmatpush1.msra.mxu0 %v587
        %605 = vmatprep.subr.mxu0 0.0
        %606 = vmatpush1.msra.mxu0 %v588
        %607 = vmatprep.subr.mxu0 0.0
        %608 = vmatpush1.msra.mxu0 %v589
        %609 = vmatprep.subr.mxu0 0.0
        %610 = vmatpush1.msra.mxu0 %v590
        %611 = vmatprep.subr.mxu0 0.0
        %612 = vmatpush1.msra.mxu0 %v591
        %613 = vmatprep.subr.mxu0 0.0
        %614 = vmatpush1.msra.mxu0 %v592
        %615 = vmatprep.subr.mxu0 0.0
        %616 = vmatpush1.msra.mxu0 %v593
        %617 = vmatprep.subr.mxu0 0.0
        %618 = vmatpush1.msra.mxu0 %v594
        %619 = vmatprep.subr.mxu0 0.0
        %620 = vmatpush1.msra.mxu0 %v595
        %621 = vmatprep.subr.mxu0 0.0
        %622 = vmatpush1.msra.mxu0 %v596
        %623 = vmatprep.subr.mxu0 0.0
        %624 = vmatpush1.msra.mxu0 %v597
        %625 = vmatprep.subr.mxu0 0.0
        %626 = vmatpush1.msra.mxu0 %v598
        %627 = vmatprep.subr.mxu0 0.0
        %628 = vmatpush1.msra.mxu0 %v599
        %629 = vmatprep.subr.mxu0 0.0
        %630 = vmatpush1.msra.mxu0 %v600
        %631 = vmatprep.subr.mxu0 0.0
        %632 = vmatpush1.msra.mxu0 %v601
        %633 = vmatprep.subr.mxu0 0.0
        %634 = vmatpush1.msra.mxu0 %v602
        %635 = vmatprep.subr.mxu0 0.0
        %636 = vmatpush1.msra.mxu0 0.0
        %637 = vmatprep.subr.mxu0 0.0
        %638 = vmatpush1.msra.mxu0 0.0
        %639 = vmatprep.subr.mxu0 0.0
        %640 = vmatpush1.msra.mxu0 0.0
        %641 = vmatprep.subr.mxu0 0.0
        %642 = vmatpush1.msra.mxu0 0.0
        %643 = vmatprep.subr.mxu0 0.0
        %644 = vmatpush1.msra.mxu0 0.0
        %645 = vmatprep.subr.mxu0 0.0
        %646 = vmatpush1.msra.mxu0 0.0
        %647 = vmatprep.subr.mxu0 0.0
        %648 = vmatpush1.msra.mxu0 0.0
        %649 = vmatprep.subr.mxu0 0.0
        %650 = vmatpush1.msra.mxu0 0.0
        %651 = vmatprep.subr.mxu0 0.0
        %652 = vmatpush1.msra.mxu0 0.0
        %653 = vmatprep.subr.mxu0 0.0
        %654 = vmatpush1.msra.mxu0 0.0
        %655 = vmatprep.subr.mxu0 0.0
        %656 = vmatpush1.msra.mxu0 0.0
        %657 = vmatprep.subr.mxu0 0.0
        %658 = vmatpush1.msra.mxu0 0.0
        %659 = vmatprep.subr.mxu0 0.0
        %660 = vmatpush1.msra.mxu0 0.0
        %661 = vmatprep.subr.mxu0 0.0
        %662 = vmatpush1.msra.mxu0 0.0
        %663 = vmatprep.subr.mxu0 0.0
        %664 = vmatpush1.msra.mxu0 0.0
        %665 = vmatprep.subr.mxu0 0.0
        %666 = vmatpush1.msra.mxu0 0.0
        %667 = vmatprep.mubr.f32.mxu0 0.0
        %668 = vmatmul.mubr.f32.gmra.mrb[0].mxu0 %v578
        %v669 = vpop.f32.mrb[0].mxu0
        %v670 = vadd.f32 0.0, %v669
        %v671 = vpop.f32.mrb[0].mxu0
        %672 = vmatprep.mubr.f32.mxu0 0.0
        %673 = vmatmul.mubr.f32.gmra.mrb[0].mxu0 %v579
        %v674 = vpop.f32.mrb[0].mxu0
        %v675 = vadd.f32 0.0, %v674
        %v676 = vpop.f32.mrb[0].mxu0
        %677 = vmatprep.mubr.f32.mxu0 0.0
        %678 = vmatmul.mubr.f32.gmra.mrb[0].mxu0 %v580
        %v679 = vpop.f32.mrb[0].mxu0
        %v680 = vadd.f32 0.0, %v679
        %v681 = vpop.f32.mrb[0].mxu0
        %682 = vmatprep.mubr.f32.mxu0 0.0
        %683 = vmatmul.mubr.f32.gmra.mrb[0].mxu0 %v581
        %v684 = vpop.f32.mrb[0].mxu0
        %v685 = vadd.f32 0.0, %v684
        %v686 = vpop.f32.mrb[0].mxu0
        %687 = vmatprep.mubr.f32.mxu0 0.0
        %688 = vmatmul.mubr.f32.gmra.mrb[0].mxu0 %v582
        %v689 = vpop.f32.mrb[0].mxu0
        %v690 = vadd.f32 0.0, %v689
        %v691 = vpop.f32.mrb[0].mxu0
        %692 = vmatprep.mubr.f32.mxu0 0.0
        %693 = vmatmul.mubr.f32.gmra.mrb[0].mxu0 %v583
        %v694 = vpop.f32.mrb[0].mxu0
        %v695 = vadd.f32 0.0, %v694
        %v696 = vpop.f32.mrb[0].mxu0
        %697 = vmatprep.mubr.f32.mxu0 0.0
        %698 = vmatmul.mubr.f32.gmra.mrb[0].mxu0 %v584
        %v699 = vpop.f32.mrb[0].mxu0
        %v700 = vadd.f32 0.0, %v699
        %v701 = vpop.f32.mrb[0].mxu0
        %702 = vmatprep.mubr.f32.mxu0 0.0
        %703 = vmatmul.mubr.f32.gmra.mrb[0].mxu0 %v585
        %v704 = vpop.f32.mrb[0].mxu0
        %v705 = vadd.f32 0.0, %v704
        %v706 = vpop.f32.mrb[0].mxu0
        %707 = vdwg.mxu0
        %v708 = vld [vmem:[#allocation3] sm:$0xff]
        %v709 = vld [vmem:[#allocation3 + $0x8] sm:$0xff]
        %v710 = vld [vmem:[#allocation3 + $0x10] sm:$0xff]
        %v711 = vld [vmem:[#allocation3 + $0x18] sm:$0xff]
        %v712 = vld [vmem:[#allocation3 + $0x20] sm:$0xff]
        %v713 = vld [vmem:[#allocation3 + $0x28] sm:$0xff]
        %v714 = vld [vmem:[#allocation3 + $0x30] sm:$0xff]
        %v715 = vld [vmem:[#allocation3 + $0x38] sm:$0xff]
        %v716 = vadd.f32 %v708, %v670
        %v717 = vadd.f32 %v709, %v675
        %v718 = vadd.f32 %v710, %v680
        %v719 = vadd.f32 %v711, %v685
        %v720 = vadd.f32 %v712, %v690
        %v721 = vadd.f32 %v713, %v695
        %v722 = vadd.f32 %v714, %v700
        %v723 = vadd.f32 %v715, %v705
        %724 = vst [vmem:[#allocation3] sm:$0xff] %v716
        %725 = vst [vmem:[#allocation3 + $0x8] sm:$0xff] %v717
        %726 = vst [vmem:[#allocation3 + $0x10] sm:$0xff] %v718
        %727 = vst [vmem:[#allocation3 + $0x18] sm:$0xff] %v719
        %728 = vst [vmem:[#allocation3 + $0x20] sm:$0xff] %v720
        %729 = vst [vmem:[#allocation3 + $0x28] sm:$0xff] %v721
        %730 = vst [vmem:[#allocation3 + $0x30] sm:$0xff] %v722
        %731 = vst [vmem:[#allocation3 + $0x38] sm:$0xff] %v723
        %v732 = vld [vmem:[#allocation2 + $0x2] sm:$0xff]
        %v733 = vld [vmem:[#allocation2 + $0x12] sm:$0xff]
        %v734 = vld [vmem:[#allocation2 + $0x22] sm:$0xff]
        %v735 = vld [vmem:[#allocation2 + $0x32] sm:$0xff]
        %v736 = vld [vmem:[#allocation2 + $0x42] sm:$0xff]
        %v737 = vld [vmem:[#allocation2 + $0x52] sm:$0xff]
        %v738 = vld [vmem:[#allocation2 + $0x62] sm:$0xff]
        %v739 = vld [vmem:[#allocation2 + $0x72] sm:$0xff]
        %s740 = scalar_lea.vmem [#allocation12], 256
        %v741 = vld [vmem:[%s740] sm:$0xff]
        %v742 = vld [vmem:[%s740 + $0x8] sm:$0xff]
        %v743 = vld [vmem:[%s740 + $0x10] sm:$0xff]
        %v744 = vld [vmem:[%s740 + $0x18] sm:$0xff]
        %v745 = vld [vmem:[%s740 + $0x20] sm:$0xff]
        %v746 = vld [vmem:[%s740 + $0x28] sm:$0xff]
        %v747 = vld [vmem:[%s740 + $0x30] sm:$0xff]
        %v748 = vld [vmem:[%s740 + $0x38] sm:$0xff]
        %v749 = vld [vmem:[%s740 + $0x40] sm:$0xff]
        %v750 = vld [vmem:[%s740 + $0x48] sm:$0xff]
        %v751 = vld [vmem:[%s740 + $0x50] sm:$0xff]
        %v752 = vld [vmem:[%s740 + $0x58] sm:$0xff]
        %v753 = vld [vmem:[%s740 + $0x60] sm:$0xff]
        %v754 = vld [vmem:[%s740 + $0x68] sm:$0xff]
        %v755 = vld [vmem:[%s740 + $0x70] sm:$0xff]
        %v756 = vld [vmem:[%s740 + $0x78] sm:$0xff]
        %757 = vmatprep.subr.mxu0 0.0
        %758 = vmatpush1.msra.mxu0 %v741
        %759 = vmatprep.subr.mxu0 0.0
        %760 = vmatpush1.msra.mxu0 %v742
        %761 = vmatprep.subr.mxu0 0.0
        %762 = vmatpush1.msra.mxu0 %v743
        %763 = vmatprep.subr.mxu0 0.0
        %764 = vmatpush1.msra.mxu0 %v744
        %765 = vmatprep.subr.mxu0 0.0
        %766 = vmatpush1.msra.mxu0 %v745
        %767 = vmatprep.subr.mxu0 0.0
        %768 = vmatpush1.msra.mxu0 %v746
        %769 = vmatprep.subr.mxu0 0.0
        %770 = vmatpush1.msra.mxu0 %v747
        %771 = vmatprep.subr.mxu0 0.0
        %772 = vmatpush1.msra.mxu0 %v748
        %773 = vmatprep.subr.mxu0 0.0
        %774 = vmatpush1.msra.mxu0 %v749
        %775 = vmatprep.subr.mxu0 0.0
        %776 = vmatpush1.msra.mxu0 %v750
        %777 = vmatprep.subr.mxu0 0.0
        %778 = vmatpush1.msra.mxu0 %v751
        %779 = vmatprep.subr.mxu0 0.0
        %780 = vmatpush1.msra.mxu0 %v752
        %781 = vmatprep.subr.mxu0 0.0
        %782 = vmatpush1.msra.mxu0 %v753
        %783 = vmatprep.subr.mxu0 0.0
        %784 = vmatpush1.msra.mxu0 %v754
        %785 = vmatprep.subr.mxu0 0.0
        %786 = vmatpush1.msra.mxu0 %v755
        %787 = vmatprep.subr.mxu0 0.0
        %788 = vmatpush1.msra.mxu0 %v756
        %789 = vmatprep.subr.mxu0 0.0
        %790 = vmatpush1.msra.mxu0 0.0
        %791 = vmatprep.subr.mxu0 0.0
        %792 = vmatpush1.msra.mxu0 0.0
        %793 = vmatprep.subr.mxu0 0.0
        %794 = vmatpush1.msra.mxu0 0.0
        %795 = vmatprep.subr.mxu0 0.0
        %796 = vmatpush1.msra.mxu0 0.0
        %797 = vmatprep.subr.mxu0 0.0
        %798 = vmatpush1.msra.mxu0 0.0
        %799 = vmatprep.subr.mxu0 0.0
        %800 = vmatpush1.msra.mxu0 0.0
        %801 = vmatprep.subr.mxu0 0.0
        %802 = vmatpush1.msra.mxu0 0.0
        %803 = vmatprep.subr.mxu0 0.0
        %804 = vmatpush1.msra.mxu0 0.0
        %805 = vmatprep.subr.mxu0 0.0
        %806 = vmatpush1.msra.mxu0 0.0
        %807 = vmatprep.subr.mxu0 0.0
        %808 = vmatpush1.msra.mxu0 0.0
        %809 = vmatprep.subr.mxu0 0.0
        %810 = vmatpush1.msra.mxu0 0.0
        %811 = vmatprep.subr.mxu0 0.0
        %812 = vmatpush1.msra.mxu0 0.0
        %813 = vmatprep.subr.mxu0 0.0
        %814 = vmatpush1.msra.mxu0 0.0
        %815 = vmatprep.subr.mxu0 0.0
        %816 = vmatpush1.msra.mxu0 0.0
        %817 = vmatprep.subr.mxu0 0.0
        %818 = vmatpush1.msra.mxu0 0.0
        %819 = vmatprep.subr.mxu0 0.0
        %820 = vmatpush1.msra.mxu0 0.0
        %821 = vmatprep.mubr.f32.mxu0 0.0
        %822 = vmatmul.mubr.f32.gmra.mrb[0].mxu0 %v732
        %v823 = vpop.f32.mrb[0].mxu0
        %v824 = vadd.f32 0.0, %v823
        %v825 = vpop.f32.mrb[0].mxu0
        %826 = vmatprep.mubr.f32.mxu0 0.0
        %827 = vmatmul.mubr.f32.gmra.mrb[0].mxu0 %v733
        %v828 = vpop.f32.mrb[0].mxu0
        %v829 = vadd.f32 0.0, %v828
        %v830 = vpop.f32.mrb[0].mxu0
        %831 = vmatprep.mubr.f32.mxu0 0.0
        %832 = vmatmul.mubr.f32.gmra.mrb[0].mxu0 %v734
        %v833 = vpop.f32.mrb[0].mxu0
        %v834 = vadd.f32 0.0, %v833
        %v835 = vpop.f32.mrb[0].mxu0
        %836 = vmatprep.mubr.f32.mxu0 0.0
        %837 = vmatmul.mubr.f32.gmra.mrb[0].mxu0 %v735
        %v838 = vpop.f32.mrb[0].mxu0
        %v839 = vadd.f32 0.0, %v838
        %v840 = vpop.f32.mrb[0].mxu0
        %841 = vmatprep.mubr.f32.mxu0 0.0
        %842 = vmatmul.mubr.f32.gmra.mrb[0].mxu0 %v736
        %v843 = vpop.f32.mrb[0].mxu0
        %v844 = vadd.f32 0.0, %v843
        %v845 = vpop.f32.mrb[0].mxu0
        %846 = vmatprep.mubr.f32.mxu0 0.0
        %847 = vmatmul.mubr.f32.gmra.mrb[0].mxu0 %v737
        %v848 = vpop.f32.mrb[0].mxu0
        %v849 = vadd.f32 0.0, %v848
        %v850 = vpop.f32.mrb[0].mxu0
        %851 = vmatprep.mubr.f32.mxu0 0.0
        %852 = vmatmul.mubr.f32.gmra.mrb[0].mxu0 %v738
        %v853 = vpop.f32.mrb[0].mxu0
        %v854 = vadd.f32 0.0, %v853
        %v855 = vpop.f32.mrb[0].mxu0
        %856 = vmatprep.mubr.f32.mxu0 0.0
        %857 = vmatmul.mubr.f32.gmra.mrb[0].mxu0 %v739
        %v858 = vpop.f32.mrb[0].mxu0
        %v859 = vadd.f32 0.0, %v858
        %v860 = vpop.f32.mrb[0].mxu0
        %861 = vdwg.mxu0
        %v862 = vld [vmem:[#allocation3] sm:$0xff]
        %v863 = vld [vmem:[#allocation3 + $0x8] sm:$0xff]
        %v864 = vld [vmem:[#allocation3 + $0x10] sm:$0xff]
        %v865 = vld [vmem:[#allocation3 + $0x18] sm:$0xff]
        %v866 = vld [vmem:[#allocation3 + $0x20] sm:$0xff]
        %v867 = vld [vmem:[#allocation3 + $0x28] sm:$0xff]
        %v868 = vld [vmem:[#allocation3 + $0x30] sm:$0xff]
        %v869 = vld [vmem:[#allocation3 + $0x38] sm:$0xff]
        %v870 = vadd.f32 %v862, %v824
        %v871 = vadd.f32 %v863, %v829
        %v872 = vadd.f32 %v864, %v834
        %v873 = vadd.f32 %v865, %v839
        %v874 = vadd.f32 %v866, %v844
        %v875 = vadd.f32 %v867, %v849
        %v876 = vadd.f32 %v868, %v854
        %v877 = vadd.f32 %v869, %v859
        %878 = vst [vmem:[#allocation3] sm:$0xff] %v870
        %879 = vst [vmem:[#allocation3 + $0x8] sm:$0xff] %v871
        %880 = vst [vmem:[#allocation3 + $0x10] sm:$0xff] %v872
        %881 = vst [vmem:[#allocation3 + $0x18] sm:$0xff] %v873
        %882 = vst [vmem:[#allocation3 + $0x20] sm:$0xff] %v874
        %883 = vst [vmem:[#allocation3 + $0x28] sm:$0xff] %v875
        %884 = vst [vmem:[#allocation3 + $0x30] sm:$0xff] %v876
        %885 = vst [vmem:[#allocation3 + $0x38] sm:$0xff] %v877
        %v886 = vld [vmem:[%s432] sm:$0xff]
        %v887 = vld [vmem:[%s432 + $0x10] sm:$0xff]
        %v888 = vld [vmem:[%s432 + $0x20] sm:$0xff]
        %v889 = vld [vmem:[%s432 + $0x30] sm:$0xff]
        %v890 = vld [vmem:[%s432 + $0x40] sm:$0xff]
        %v891 = vld [vmem:[%s432 + $0x50] sm:$0xff]
        %v892 = vld [vmem:[%s432 + $0x60] sm:$0xff]
        %v893 = vld [vmem:[%s432 + $0x70] sm:$0xff]
        %s894 = scalar_lea.vmem [#allocation12], 384
        %v895 = vld [vmem:[%s894] sm:$0xff]
        %v896 = vld [vmem:[%s894 + $0x8] sm:$0xff]
        %v897 = vld [vmem:[%s894 + $0x10] sm:$0xff]
        %v898 = vld [vmem:[%s894 + $0x18] sm:$0xff]
        %v899 = vld [vmem:[%s894 + $0x20] sm:$0xff]
        %v900 = vld [vmem:[%s894 + $0x28] sm:$0xff]
        %v901 = vld [vmem:[%s894 + $0x30] sm:$0xff]
        %v902 = vld [vmem:[%s894 + $0x38] sm:$0xff]
        %v903 = vld [vmem:[%s894 + $0x40] sm:$0xff]
        %v904 = vld [vmem:[%s894 + $0x48] sm:$0xff]
        %v905 = vld [vmem:[%s894 + $0x50] sm:$0xff]
        %v906 = vld [vmem:[%s894 + $0x58] sm:$0xff]
        %v907 = vld [vmem:[%s894 + $0x60] sm:$0xff]
        %v908 = vld [vmem:[%s894 + $0x68] sm:$0xff]
        %v909 = vld [vmem:[%s894 + $0x70] sm:$0xff]
        %v910 = vld [vmem:[%s894 + $0x78] sm:$0xff]
        %911 = vmatprep.subr.mxu0 0.0
        %912 = vmatpush1.msra.mxu0 %v895
        %913 = vmatprep.subr.mxu0 0.0
        %914 = vmatpush1.msra.mxu0 %v896
        %915 = vmatprep.subr.mxu0 0.0
        %916 = vmatpush1.msra.mxu0 %v897
        %917 = vmatprep.subr.mxu0 0.0
        %918 = vmatpush1.msra.mxu0 %v898
        %919 = vmatprep.subr.mxu0 0.0
        %920 = vmatpush1.msra.mxu0 %v899
        %921 = vmatprep.subr.mxu0 0.0
        %922 = vmatpush1.msra.mxu0 %v900
        %923 = vmatprep.subr.mxu0 0.0
        %924 = vmatpush1.msra.mxu0 %v901
        %925 = vmatprep.subr.mxu0 0.0
        %926 = vmatpush1.msra.mxu0 %v902
        %927 = vmatprep.subr.mxu0 0.0
        %928 = vmatpush1.msra.mxu0 %v903
        %929 = vmatprep.subr.mxu0 0.0
        %930 = vmatpush1.msra.mxu0 %v904
        %931 = vmatprep.subr.mxu0 0.0
        %932 = vmatpush1.msra.mxu0 %v905
        %933 = vmatprep.subr.mxu0 0.0
        %934 = vmatpush1.msra.mxu0 %v906
        %935 = vmatprep.subr.mxu0 0.0
        %936 = vmatpush1.msra.mxu0 %v907
        %937 = vmatprep.subr.mxu0 0.0
        %938 = vmatpush1.msra.mxu0 %v908
        %939 = vmatprep.subr.mxu0 0.0
        %940 = vmatpush1.msra.mxu0 %v909
        %941 = vmatprep.subr.mxu0 0.0
        %942 = vmatpush1.msra.mxu0 %v910
        %943 = vmatprep.subr.mxu0 0.0
        %944 = vmatpush1.msra.mxu0 0.0
        %945 = vmatprep.subr.mxu0 0.0
        %946 = vmatpush1.msra.mxu0 0.0
        %947 = vmatprep.subr.mxu0 0.0
        %948 = vmatpush1.msra.mxu0 0.0
        %949 = vmatprep.subr.mxu0 0.0
        %950 = vmatpush1.msra.mxu0 0.0
        %951 = vmatprep.subr.mxu0 0.0
        %952 = vmatpush1.msra.mxu0 0.0
        %953 = vmatprep.subr.mxu0 0.0
        %954 = vmatpush1.msra.mxu0 0.0
        %955 = vmatprep.subr.mxu0 0.0
        %956 = vmatpush1.msra.mxu0 0.0
        %957 = vmatprep.subr.mxu0 0.0
        %958 = vmatpush1.msra.mxu0 0.0
        %959 = vmatprep.subr.mxu0 0.0
        %960 = vmatpush1.msra.mxu0 0.0
        %961 = vmatprep.subr.mxu0 0.0
        %962 = vmatpush1.msra.mxu0 0.0
        %963 = vmatprep.subr.mxu0 0.0
        %964 = vmatpush1.msra.mxu0 0.0
        %965 = vmatprep.subr.mxu0 0.0
        %966 = vmatpush1.msra.mxu0 0.0
        %967 = vmatprep.subr.mxu0 0.0
        %968 = vmatpush1.msra.mxu0 0.0
        %969 = vmatprep.subr.mxu0 0.0
        %970 = vmatpush1.msra.mxu0 0.0
        %971 = vmatprep.subr.mxu0 0.0
        %972 = vmatpush1.msra.mxu0 0.0
        %973 = vmatprep.subr.mxu0 0.0
        %974 = vmatpush1.msra.mxu0 0.0
        %975 = vmatprep.mubr.f32.mxu0 0.0
        %976 = vmatmul.mubr.f32.gmra.mrb[0].mxu0 %v886
        %v977 = vpop.f32.mrb[0].mxu0
        %v978 = vadd.f32 0.0, %v977
        %v979 = vpop.f32.mrb[0].mxu0
        %980 = vmatprep.mubr.f32.mxu0 0.0
        %981 = vmatmul.mubr.f32.gmra.mrb[0].mxu0 %v887
        %v982 = vpop.f32.mrb[0].mxu0
        %v983 = vadd.f32 0.0, %v982
        %v984 = vpop.f32.mrb[0].mxu0
        %985 = vmatprep.mubr.f32.mxu0 0.0
        %986 = vmatmul.mubr.f32.gmra.mrb[0].mxu0 %v888
        %v987 = vpop.f32.mrb[0].mxu0
        %v988 = vadd.f32 0.0, %v987
        %v989 = vpop.f32.mrb[0].mxu0
        %990 = vmatprep.mubr.f32.mxu0 0.0
        %991 = vmatmul.mubr.f32.gmra.mrb[0].mxu0 %v889
        %v992 = vpop.f32.mrb[0].mxu0
        %v993 = vadd.f32 0.0, %v992
        %v994 = vpop.f32.mrb[0].mxu0
        %995 = vmatprep.mubr.f32.mxu0 0.0
        %996 = vmatmul.mubr.f32.gmra.mrb[0].mxu0 %v890
        %v997 = vpop.f32.mrb[0].mxu0
        %v998 = vadd.f32 0.0, %v997
        %v999 = vpop.f32.mrb[0].mxu0
        %1000 = vmatprep.mubr.f32.mxu0 0.0
        %1001 = vmatmul.mubr.f32.gmra.mrb[0].mxu0 %v891
        %v1002 = vpop.f32.mrb[0].mxu0
        %v1003 = vadd.f32 0.0, %v1002
        %v1004 = vpop.f32.mrb[0].mxu0
        %1005 = vmatprep.mubr.f32.mxu0 0.0
        %1006 = vmatmul.mubr.f32.gmra.mrb[0].mxu0 %v892
        %v1007 = vpop.f32.mrb[0].mxu0
        %v1008 = vadd.f32 0.0, %v1007
        %v1009 = vpop.f32.mrb[0].mxu0
        %1010 = vmatprep.mubr.f32.mxu0 0.0
        %1011 = vmatmul.mubr.f32.gmra.mrb[0].mxu0 %v893
        %v1012 = vpop.f32.mrb[0].mxu0
        %v1013 = vadd.f32 0.0, %v1012
        %v1014 = vpop.f32.mrb[0].mxu0
        %1015 = vdwg.mxu0
        %v1016 = vld [vmem:[#allocation3] sm:$0xff]
        %v1017 = vld [vmem:[#allocation3 + $0x8] sm:$0xff]
        %v1018 = vld [vmem:[#allocation3 + $0x10] sm:$0xff]
        %v1019 = vld [vmem:[#allocation3 + $0x18] sm:$0xff]
        %v1020 = vld [vmem:[#allocation3 + $0x20] sm:$0xff]
        %v1021 = vld [vmem:[#allocation3 + $0x28] sm:$0xff]
        %v1022 = vld [vmem:[#allocation3 + $0x30] sm:$0xff]
        %v1023 = vld [vmem:[#allocation3 + $0x38] sm:$0xff]
        %v1024 = vadd.f32 %v1016, %v978
        %v1025 = vadd.f32 %v1017, %v983
        %v1026 = vadd.f32 %v1018, %v988
        %v1027 = vadd.f32 %v1019, %v993
        %v1028 = vadd.f32 %v1020, %v998
        %v1029 = vadd.f32 %v1021, %v1003
        %v1030 = vadd.f32 %v1022, %v1008
        %v1031 = vadd.f32 %v1023, %v1013
        %1032 = vst [vmem:[#allocation3] sm:$0xff] %v1024
        %1033 = vst [vmem:[#allocation3 + $0x8] sm:$0xff] %v1025
        %1034 = vst [vmem:[#allocation3 + $0x10] sm:$0xff] %v1026
        %1035 = vst [vmem:[#allocation3 + $0x18] sm:$0xff] %v1027
        %1036 = vst [vmem:[#allocation3 + $0x20] sm:$0xff] %v1028
        %1037 = vst [vmem:[#allocation3 + $0x28] sm:$0xff] %v1029
        %1038 = vst [vmem:[#allocation3 + $0x30] sm:$0xff] %v1030
        %1039 = vst [vmem:[#allocation3 + $0x38] sm:$0xff] %v1031
        %v1040 = vld [vmem:[%s432 + $0x1] sm:$0xff]
        %v1041 = vld [vmem:[%s432 + $0x11] sm:$0xff]
        %v1042 = vld [vmem:[%s432 + $0x21] sm:$0xff]
        %v1043 = vld [vmem:[%s432 + $0x31] sm:$0xff]
        %v1044 = vld [vmem:[%s432 + $0x41] sm:$0xff]
        %v1045 = vld [vmem:[%s432 + $0x51] sm:$0xff]
        %v1046 = vld [vmem:[%s432 + $0x61] sm:$0xff]
        %v1047 = vld [vmem:[%s432 + $0x71] sm:$0xff]
        %s1048 = scalar_lea.vmem [#allocation12], 512
        %v1049 = vld [vmem:[%s1048] sm:$0xff]
        %v1050 = vld [vmem:[%s1048 + $0x8] sm:$0xff]
        %v1051 = vld [vmem:[%s1048 + $0x10] sm:$0xff]
        %v1052 = vld [vmem:[%s1048 + $0x18] sm:$0xff]
        %v1053 = vld [vmem:[%s1048 + $0x20] sm:$0xff]
        %v1054 = vld [vmem:[%s1048 + $0x28] sm:$0xff]
        %v1055 = vld [vmem:[%s1048 + $0x30] sm:$0xff]
        %v1056 = vld [vmem:[%s1048 + $0x38] sm:$0xff]
        %v1057 = vld [vmem:[%s1048 + $0x40] sm:$0xff]
        %v1058 = vld [vmem:[%s1048 + $0x48] sm:$0xff]
        %v1059 = vld [vmem:[%s1048 + $0x50] sm:$0xff]
        %v1060 = vld [vmem:[%s1048 + $0x58] sm:$0xff]
        %v1061 = vld [vmem:[%s1048 + $0x60] sm:$0xff]
        %v1062 = vld [vmem:[%s1048 + $0x68] sm:$0xff]
        %v1063 = vld [vmem:[%s1048 + $0x70] sm:$0xff]
        %v1064 = vld [vmem:[%s1048 + $0x78] sm:$0xff]
        %1065 = vmatprep.subr.mxu0 0.0
        %1066 = vmatpush1.msra.mxu0 %v1049
        %1067 = vmatprep.subr.mxu0 0.0
        %1068 = vmatpush1.msra.mxu0 %v1050
        %1069 = vmatprep.subr.mxu0 0.0
        %1070 = vmatpush1.msra.mxu0 %v1051
        %1071 = vmatprep.subr.mxu0 0.0
        %1072 = vmatpush1.msra.mxu0 %v1052
        %1073 = vmatprep.subr.mxu0 0.0
        %1074 = vmatpush1.msra.mxu0 %v1053
        %1075 = vmatprep.subr.mxu0 0.0
        %1076 = vmatpush1.msra.mxu0 %v1054
        %1077 = vmatprep.subr.mxu0 0.0
        %1078 = vmatpush1.msra.mxu0 %v1055
        %1079 = vmatprep.subr.mxu0 0.0
        %1080 = vmatpush1.msra.mxu0 %v1056
        %1081 = vmatprep.subr.mxu0 0.0
        %1082 = vmatpush1.msra.mxu0 %v1057
        %1083 = vmatprep.subr.mxu0 0.0
        %1084 = vmatpush1.msra.mxu0 %v1058
        %1085 = vmatprep.subr.mxu0 0.0
        %1086 = vmatpush1.msra.mxu0 %v1059
        %1087 = vmatprep.subr.mxu0 0.0
        %1088 = vmatpush1.msra.mxu0 %v1060
        %1089 = vmatprep.subr.mxu0 0.0
        %1090 = vmatpush1.msra.mxu0 %v1061
        %1091 = vmatprep.subr.mxu0 0.0
        %1092 = vmatpush1.msra.mxu0 %v1062
        %1093 = vmatprep.subr.mxu0 0.0
        %1094 = vmatpush1.msra.mxu0 %v1063
        %1095 = vmatprep.subr.mxu0 0.0
        %1096 = vmatpush1.msra.mxu0 %v1064
        %1097 = vmatprep.subr.mxu0 0.0
        %1098 = vmatpush1.msra.mxu0 0.0
        %1099 = vmatprep.subr.mxu0 0.0
        %1100 = vmatpush1.msra.mxu0 0.0
        %1101 = vmatprep.subr.mxu0 0.0
        %1102 = vmatpush1.msra.mxu0 0.0
        %1103 = vmatprep.subr.mxu0 0.0
        %1104 = vmatpush1.msra.mxu0 0.0
        %1105 = vmatprep.subr.mxu0 0.0
        %1106 = vmatpush1.msra.mxu0 0.0
        %1107 = vmatprep.subr.mxu0 0.0
        %1108 = vmatpush1.msra.mxu0 0.0
        %1109 = vmatprep.subr.mxu0 0.0
        %1110 = vmatpush1.msra.mxu0 0.0
        %1111 = vmatprep.subr.mxu0 0.0
        %1112 = vmatpush1.msra.mxu0 0.0
        %1113 = vmatprep.subr.mxu0 0.0
        %1114 = vmatpush1.msra.mxu0 0.0
        %1115 = vmatprep.subr.mxu0 0.0
        %1116 = vmatpush1.msra.mxu0 0.0
        %1117 = vmatprep.subr.mxu0 0.0
        %1118 = vmatpush1.msra.mxu0 0.0
        %1119 = vmatprep.subr.mxu0 0.0
        %1120 = vmatpush1.msra.mxu0 0.0
        %1121 = vmatprep.subr.mxu0 0.0
        %1122 = vmatpush1.msra.mxu0 0.0
        %1123 = vmatprep.subr.mxu0 0.0
        %1124 = vmatpush1.msra.mxu0 0.0
        %1125 = vmatprep.subr.mxu0 0.0
        %1126 = vmatpush1.msra.mxu0 0.0
        %1127 = vmatprep.subr.mxu0 0.0
        %1128 = vmatpush1.msra.mxu0 0.0
        %1129 = vmatprep.mubr.f32.mxu0 0.0
        %1130 = vmatmul.mubr.f32.gmra.mrb[0].mxu0 %v1040
        %v1131 = vpop.f32.mrb[0].mxu0
        %v1132 = vadd.f32 0.0, %v1131
        %v1133 = vpop.f32.mrb[0].mxu0
        %1134 = vmatprep.mubr.f32.mxu0 0.0
        %1135 = vmatmul.mubr.f32.gmra.mrb[0].mxu0 %v1041
        %v1136 = vpop.f32.mrb[0].mxu0
        %v1137 = vadd.f32 0.0, %v1136
        %v1138 = vpop.f32.mrb[0].mxu0
        %1139 = vmatprep.mubr.f32.mxu0 0.0
        %1140 = vmatmul.mubr.f32.gmra.mrb[0].mxu0 %v1042
        %v1141 = vpop.f32.mrb[0].mxu0
        %v1142 = vadd.f32 0.0, %v1141
        %v1143 = vpop.f32.mrb[0].mxu0
        %1144 = vmatprep.mubr.f32.mxu0 0.0
        %1145 = vmatmul.mubr.f32.gmra.mrb[0].mxu0 %v1043
        %v1146 = vpop.f32.mrb[0].mxu0
        %v1147 = vadd.f32 0.0, %v1146
        %v1148 = vpop.f32.mrb[0].mxu0
        %1149 = vmatprep.mubr.f32.mxu0 0.0
        %1150 = vmatmul.mubr.f32.gmra.mrb[0].mxu0 %v1044
        %v1151 = vpop.f32.mrb[0].mxu0
        %v1152 = vadd.f32 0.0, %v1151
        %v1153 = vpop.f32.mrb[0].mxu0
        %1154 = vmatprep.mubr.f32.mxu0 0.0
        %1155 = vmatmul.mubr.f32.gmra.mrb[0].mxu0 %v1045
        %v1156 = vpop.f32.mrb[0].mxu0
        %v1157 = vadd.f32 0.0, %v1156
        %v1158 = vpop.f32.mrb[0].mxu0
        %1159 = vmatprep.mubr.f32.mxu0 0.0
        %1160 = vmatmul.mubr.f32.gmra.mrb[0].mxu0 %v1046
        %v1161 = vpop.f32.mrb[0].mxu0
        %v1162 = vadd.f32 0.0, %v1161
        %v1163 = vpop.f32.mrb[0].mxu0
        %1164 = vmatprep.mubr.f32.mxu0 0.0
        %1165 = vmatmul.mubr.f32.gmra.mrb[0].mxu0 %v1047
        %v1166 = vpop.f32.mrb[0].mxu0
        %v1167 = vadd.f32 0.0, %v1166
        %v1168 = vpop.f32.mrb[0].mxu0
        %1169 = vdwg.mxu0
        %v1170 = vld [vmem:[#allocation3] sm:$0xff]
        %v1171 = vld [vmem:[#allocation3 + $0x8] sm:$0xff]
        %v1172 = vld [vmem:[#allocation3 + $0x10] sm:$0xff]
        %v1173 = vld [vmem:[#allocation3 + $0x18] sm:$0xff]
        %v1174 = vld [vmem:[#allocation3 + $0x20] sm:$0xff]
        %v1175 = vld [vmem:[#allocation3 + $0x28] sm:$0xff]
        %v1176 = vld [vmem:[#allocation3 + $0x30] sm:$0xff]
        %v1177 = vld [vmem:[#allocation3 + $0x38] sm:$0xff]
        %v1178 = vadd.f32 %v1170, %v1132
        %v1179 = vadd.f32 %v1171, %v1137
        %v1180 = vadd.f32 %v1172, %v1142
        %v1181 = vadd.f32 %v1173, %v1147
        %v1182 = vadd.f32 %v1174, %v1152
        %v1183 = vadd.f32 %v1175, %v1157
        %v1184 = vadd.f32 %v1176, %v1162
        %v1185 = vadd.f32 %v1177, %v1167
        %1186 = vst [vmem:[#allocation3] sm:$0xff] %v1178
        %1187 = vst [vmem:[#allocation3 + $0x8] sm:$0xff] %v1179
        %1188 = vst [vmem:[#allocation3 + $0x10] sm:$0xff] %v1180
        %1189 = vst [vmem:[#allocation3 + $0x18] sm:$0xff] %v1181
        %1190 = vst [vmem:[#allocation3 + $0x20] sm:$0xff] %v1182
        %1191 = vst [vmem:[#allocation3 + $0x28] sm:$0xff] %v1183
        %1192 = vst [vmem:[#allocation3 + $0x30] sm:$0xff] %v1184
        %1193 = vst [vmem:[#allocation3 + $0x38] sm:$0xff] %v1185
        %v1194 = vld [vmem:[%s432 + $0x2] sm:$0xff]
        %v1195 = vld [vmem:[%s432 + $0x12] sm:$0xff]
        %v1196 = vld [vmem:[%s432 + $0x22] sm:$0xff]
        %v1197 = vld [vmem:[%s432 + $0x32] sm:$0xff]
        %v1198 = vld [vmem:[%s432 + $0x42] sm:$0xff]
        %v1199 = vld [vmem:[%s432 + $0x52] sm:$0xff]
        %v1200 = vld [vmem:[%s432 + $0x62] sm:$0xff]
        %v1201 = vld [vmem:[%s432 + $0x72] sm:$0xff]
        %s1202 = scalar_lea.vmem [#allocation12], 640
        %v1203 = vld [vmem:[%s1202] sm:$0xff]
        %v1204 = vld [vmem:[%s1202 + $0x8] sm:$0xff]
        %v1205 = vld [vmem:[%s1202 + $0x10] sm:$0xff]
        %v1206 = vld [vmem:[%s1202 + $0x18] sm:$0xff]
        %v1207 = vld [vmem:[%s1202 + $0x20] sm:$0xff]
        %v1208 = vld [vmem:[%s1202 + $0x28] sm:$0xff]
        %v1209 = vld [vmem:[%s1202 + $0x30] sm:$0xff]
        %v1210 = vld [vmem:[%s1202 + $0x38] sm:$0xff]
        %v1211 = vld [vmem:[%s1202 + $0x40] sm:$0xff]
        %v1212 = vld [vmem:[%s1202 + $0x48] sm:$0xff]
        %v1213 = vld [vmem:[%s1202 + $0x50] sm:$0xff]
        %v1214 = vld [vmem:[%s1202 + $0x58] sm:$0xff]
        %v1215 = vld [vmem:[%s1202 + $0x60] sm:$0xff]
        %v1216 = vld [vmem:[%s1202 + $0x68] sm:$0xff]
        %v1217 = vld [vmem:[%s1202 + $0x70] sm:$0xff]
        %v1218 = vld [vmem:[%s1202 + $0x78] sm:$0xff]
        %1219 = vmatprep.subr.mxu0 0.0
        %1220 = vmatpush1.msra.mxu0 %v1203
        %1221 = vmatprep.subr.mxu0 0.0
        %1222 = vmatpush1.msra.mxu0 %v1204
        %1223 = vmatprep.subr.mxu0 0.0
        %1224 = vmatpush1.msra.mxu0 %v1205
        %1225 = vmatprep.subr.mxu0 0.0
        %1226 = vmatpush1.msra.mxu0 %v1206
        %1227 = vmatprep.subr.mxu0 0.0
        %1228 = vmatpush1.msra.mxu0 %v1207
        %1229 = vmatprep.subr.mxu0 0.0
        %1230 = vmatpush1.msra.mxu0 %v1208
        %1231 = vmatprep.subr.mxu0 0.0
        %1232 = vmatpush1.msra.mxu0 %v1209
        %1233 = vmatprep.subr.mxu0 0.0
        %1234 = vmatpush1.msra.mxu0 %v1210
        %1235 = vmatprep.subr.mxu0 0.0
        %1236 = vmatpush1.msra.mxu0 %v1211
        %1237 = vmatprep.subr.mxu0 0.0
        %1238 = vmatpush1.msra.mxu0 %v1212
        %1239 = vmatprep.subr.mxu0 0.0
        %1240 = vmatpush1.msra.mxu0 %v1213
        %1241 = vmatprep.subr.mxu0 0.0
        %1242 = vmatpush1.msra.mxu0 %v1214
        %1243 = vmatprep.subr.mxu0 0.0
        %1244 = vmatpush1.msra.mxu0 %v1215
        %1245 = vmatprep.subr.mxu0 0.0
        %1246 = vmatpush1.msra.mxu0 %v1216
        %1247 = vmatprep.subr.mxu0 0.0
        %1248 = vmatpush1.msra.mxu0 %v1217
        %1249 = vmatprep.subr.mxu0 0.0
        %1250 = vmatpush1.msra.mxu0 %v1218
        %1251 = vmatprep.subr.mxu0 0.0
        %1252 = vmatpush1.msra.mxu0 0.0
        %1253 = vmatprep.subr.mxu0 0.0
        %1254 = vmatpush1.msra.mxu0 0.0
        %1255 = vmatprep.subr.mxu0 0.0
        %1256 = vmatpush1.msra.mxu0 0.0
        %1257 = vmatprep.subr.mxu0 0.0
        %1258 = vmatpush1.msra.mxu0 0.0
        %1259 = vmatprep.subr.mxu0 0.0
        %1260 = vmatpush1.msra.mxu0 0.0
        %1261 = vmatprep.subr.mxu0 0.0
        %1262 = vmatpush1.msra.mxu0 0.0
        %1263 = vmatprep.subr.mxu0 0.0
        %1264 = vmatpush1.msra.mxu0 0.0
        %1265 = vmatprep.subr.mxu0 0.0
        %1266 = vmatpush1.msra.mxu0 0.0
        %1267 = vmatprep.subr.mxu0 0.0
        %1268 = vmatpush1.msra.mxu0 0.0
        %1269 = vmatprep.subr.mxu0 0.0
        %1270 = vmatpush1.msra.mxu0 0.0
        %1271 = vmatprep.subr.mxu0 0.0
        %1272 = vmatpush1.msra.mxu0 0.0
        %1273 = vmatprep.subr.mxu0 0.0
        %1274 = vmatpush1.msra.mxu0 0.0
        %1275 = vmatprep.subr.mxu0 0.0
        %1276 = vmatpush1.msra.mxu0 0.0
        %1277 = vmatprep.subr.mxu0 0.0
        %1278 = vmatpush1.msra.mxu0 0.0
        %1279 = vmatprep.subr.mxu0 0.0
        %1280 = vmatpush1.msra.mxu0 0.0
        %1281 = vmatprep.subr.mxu0 0.0
        %1282 = vmatpush1.msra.mxu0 0.0
        %1283 = vmatprep.mubr.f32.mxu0 0.0
        %1284 = vmatmul.mubr.f32.gmra.mrb[0].mxu0 %v1194
        %v1285 = vpop.f32.mrb[0].mxu0
        %v1286 = vadd.f32 0.0, %v1285
        %v1287 = vpop.f32.mrb[0].mxu0
        %1288 = vmatprep.mubr.f32.mxu0 0.0
        %1289 = vmatmul.mubr.f32.gmra.mrb[0].mxu0 %v1195
        %v1290 = vpop.f32.mrb[0].mxu0
        %v1291 = vadd.f32 0.0, %v1290
        %v1292 = vpop.f32.mrb[0].mxu0
        %1293 = vmatprep.mubr.f32.mxu0 0.0
        %1294 = vmatmul.mubr.f32.gmra.mrb[0].mxu0 %v1196
        %v1295 = vpop.f32.mrb[0].mxu0
        %v1296 = vadd.f32 0.0, %v1295
        %v1297 = vpop.f32.mrb[0].mxu0
        %1298 = vmatprep.mubr.f32.mxu0 0.0
        %1299 = vmatmul.mubr.f32.gmra.mrb[0].mxu0 %v1197
        %v1300 = vpop.f32.mrb[0].mxu0
        %v1301 = vadd.f32 0.0, %v1300
        %v1302 = vpop.f32.mrb[0].mxu0
        %1303 = vmatprep.mubr.f32.mxu0 0.0
        %1304 = vmatmul.mubr.f32.gmra.mrb[0].mxu0 %v1198
        %v1305 = vpop.f32.mrb[0].mxu0
        %v1306 = vadd.f32 0.0, %v1305
        %v1307 = vpop.f32.mrb[0].mxu0
        %1308 = vmatprep.mubr.f32.mxu0 0.0
        %1309 = vmatmul.mubr.f32.gmra.mrb[0].mxu0 %v1199
        %v1310 = vpop.f32.mrb[0].mxu0
        %v1311 = vadd.f32 0.0, %v1310
        %v1312 = vpop.f32.mrb[0].mxu0
        %1313 = vmatprep.mubr.f32.mxu0 0.0
        %1314 = vmatmul.mubr.f32.gmra.mrb[0].mxu0 %v1200
        %v1315 = vpop.f32.mrb[0].mxu0
        %v1316 = vadd.f32 0.0, %v1315
        %v1317 = vpop.f32.mrb[0].mxu0
        %1318 = vmatprep.mubr.f32.mxu0 0.0
        %1319 = vmatmul.mubr.f32.gmra.mrb[0].mxu0 %v1201
        %v1320 = vpop.f32.mrb[0].mxu0
        %v1321 = vadd.f32 0.0, %v1320
        %v1322 = vpop.f32.mrb[0].mxu0
        %1323 = vdwg.mxu0
        %v1324 = vld [vmem:[#allocation3] sm:$0xff]
        %v1325 = vld [vmem:[#allocation3 + $0x8] sm:$0xff]
        %v1326 = vld [vmem:[#allocation3 + $0x10] sm:$0xff]
        %v1327 = vld [vmem:[#allocation3 + $0x18] sm:$0xff]
        %v1328 = vld [vmem:[#allocation3 + $0x20] sm:$0xff]
        %v1329 = vld [vmem:[#allocation3 + $0x28] sm:$0xff]
        %v1330 = vld [vmem:[#allocation3 + $0x30] sm:$0xff]
        %v1331 = vld [vmem:[#allocation3 + $0x38] sm:$0xff]
        %v1332 = vadd.f32 %v1324, %v1286
        %v1333 = vadd.f32 %v1325, %v1291
        %v1334 = vadd.f32 %v1326, %v1296
        %v1335 = vadd.f32 %v1327, %v1301
        %v1336 = vadd.f32 %v1328, %v1306
        %v1337 = vadd.f32 %v1329, %v1311
        %v1338 = vadd.f32 %v1330, %v1316
        %v1339 = vadd.f32 %v1331, %v1321
        %1340 = vst [vmem:[#allocation3] sm:$0xff] %v1332
        %1341 = vst [vmem:[#allocation3 + $0x8] sm:$0xff] %v1333
        %1342 = vst [vmem:[#allocation3 + $0x10] sm:$0xff] %v1334
        %1343 = vst [vmem:[#allocation3 + $0x18] sm:$0xff] %v1335
        %1344 = vst [vmem:[#allocation3 + $0x20] sm:$0xff] %v1336
        %1345 = vst [vmem:[#allocation3 + $0x28] sm:$0xff] %v1337
        %1346 = vst [vmem:[#allocation3 + $0x30] sm:$0xff] %v1338
        %1347 = vst [vmem:[#allocation3 + $0x38] sm:$0xff] %v1339
        %s1348 = scalar_lea.vmem [#allocation2], 32
        %v1349 = vld [vmem:[%s1348] sm:$0xff]
        %v1350 = vld [vmem:[%s1348 + $0x10] sm:$0xff]
        %v1351 = vld [vmem:[%s1348 + $0x20] sm:$0xff]
        %v1352 = vld [vmem:[%s1348 + $0x30] sm:$0xff]
        %v1353 = vld [vmem:[%s1348 + $0x40] sm:$0xff]
        %v1354 = vld [vmem:[%s1348 + $0x50] sm:$0xff]
        %v1355 = vld [vmem:[%s1348 + $0x60] sm:$0xff]
        %v1356 = vld [vmem:[%s1348 + $0x70] sm:$0xff]
        %s1357 = scalar_lea.vmem [#allocation12], 768
        %v1358 = vld [vmem:[%s1357] sm:$0xff]
        %v1359 = vld [vmem:[%s1357 + $0x8] sm:$0xff]
        %v1360 = vld [vmem:[%s1357 + $0x10] sm:$0xff]
        %v1361 = vld [vmem:[%s1357 + $0x18] sm:$0xff]
        %v1362 = vld [vmem:[%s1357 + $0x20] sm:$0xff]
        %v1363 = vld [vmem:[%s1357 + $0x28] sm:$0xff]
        %v1364 = vld [vmem:[%s1357 + $0x30] sm:$0xff]
        %v1365 = vld [vmem:[%s1357 + $0x38] sm:$0xff]
        %v1366 = vld [vmem:[%s1357 + $0x40] sm:$0xff]
        %v1367 = vld [vmem:[%s1357 + $0x48] sm:$0xff]
        %v1368 = vld [vmem:[%s1357 + $0x50] sm:$0xff]
        %v1369 = vld [vmem:[%s1357 + $0x58] sm:$0xff]
        %v1370 = vld [vmem:[%s1357 + $0x60] sm:$0xff]
        %v1371 = vld [vmem:[%s1357 + $0x68] sm:$0xff]
        %v1372 = vld [vmem:[%s1357 + $0x70] sm:$0xff]
        %v1373 = vld [vmem:[%s1357 + $0x78] sm:$0xff]
        %1374 = vmatprep.subr.mxu0 0.0
        %1375 = vmatpush1.msra.mxu0 %v1358
        %1376 = vmatprep.subr.mxu0 0.0
        %1377 = vmatpush1.msra.mxu0 %v1359
        %1378 = vmatprep.subr.mxu0 0.0
        %1379 = vmatpush1.msra.mxu0 %v1360
        %1380 = vmatprep.subr.mxu0 0.0
        %1381 = vmatpush1.msra.mxu0 %v1361
        %1382 = vmatprep.subr.mxu0 0.0
        %1383 = vmatpush1.msra.mxu0 %v1362
        %1384 = vmatprep.subr.mxu0 0.0
        %1385 = vmatpush1.msra.mxu0 %v1363
        %1386 = vmatprep.subr.mxu0 0.0
        %1387 = vmatpush1.msra.mxu0 %v1364
        %1388 = vmatprep.subr.mxu0 0.0
        %1389 = vmatpush1.msra.mxu0 %v1365
        %1390 = vmatprep.subr.mxu0 0.0
        %1391 = vmatpush1.msra.mxu0 %v1366
        %1392 = vmatprep.subr.mxu0 0.0
        %1393 = vmatpush1.msra.mxu0 %v1367
        %1394 = vmatprep.subr.mxu0 0.0
        %1395 = vmatpush1.msra.mxu0 %v1368
        %1396 = vmatprep.subr.mxu0 0.0
        %1397 = vmatpush1.msra.mxu0 %v1369
        %1398 = vmatprep.subr.mxu0 0.0
        %1399 = vmatpush1.msra.mxu0 %v1370
        %1400 = vmatprep.subr.mxu0 0.0
        %1401 = vmatpush1.msra.mxu0 %v1371
        %1402 = vmatprep.subr.mxu0 0.0
        %1403 = vmatpush1.msra.mxu0 %v1372
        %1404 = vmatprep.subr.mxu0 0.0
        %1405 = vmatpush1.msra.mxu0 %v1373
        %1406 = vmatprep.subr.mxu0 0.0
        %1407 = vmatpush1.msra.mxu0 0.0
        %1408 = vmatprep.subr.mxu0 0.0
        %1409 = vmatpush1.msra.mxu0 0.0
        %1410 = vmatprep.subr.mxu0 0.0
        %1411 = vmatpush1.msra.mxu0 0.0
        %1412 = vmatprep.subr.mxu0 0.0
        %1413 = vmatpush1.msra.mxu0 0.0
        %1414 = vmatprep.subr.mxu0 0.0
        %1415 = vmatpush1.msra.mxu0 0.0
        %1416 = vmatprep.subr.mxu0 0.0
        %1417 = vmatpush1.msra.mxu0 0.0
        %1418 = vmatprep.subr.mxu0 0.0
        %1419 = vmatpush1.msra.mxu0 0.0
        %1420 = vmatprep.subr.mxu0 0.0
        %1421 = vmatpush1.msra.mxu0 0.0
        %1422 = vmatprep.subr.mxu0 0.0
        %1423 = vmatpush1.msra.mxu0 0.0
        %1424 = vmatprep.subr.mxu0 0.0
        %1425 = vmatpush1.msra.mxu0 0.0
        %1426 = vmatprep.subr.mxu0 0.0
        %1427 = vmatpush1.msra.mxu0 0.0
        %1428 = vmatprep.subr.mxu0 0.0
        %1429 = vmatpush1.msra.mxu0 0.0
        %1430 = vmatprep.subr.mxu0 0.0
        %1431 = vmatpush1.msra.mxu0 0.0
        %1432 = vmatprep.subr.mxu0 0.0
        %1433 = vmatpush1.msra.mxu0 0.0
        %1434 = vmatprep.subr.mxu0 0.0
        %1435 = vmatpush1.msra.mxu0 0.0
        %1436 = vmatprep.subr.mxu0 0.0
        %1437 = vmatpush1.msra.mxu0 0.0
        %1438 = vmatprep.mubr.f32.mxu0 0.0
        %1439 = vmatmul.mubr.f32.gmra.mrb[0].mxu0 %v1349
        %v1440 = vpop.f32.mrb[0].mxu0
        %v1441 = vadd.f32 0.0, %v1440
        %v1442 = vpop.f32.mrb[0].mxu0
        %1443 = vmatprep.mubr.f32.mxu0 0.0
        %1444 = vmatmul.mubr.f32.gmra.mrb[0].mxu0 %v1350
        %v1445 = vpop.f32.mrb[0].mxu0
        %v1446 = vadd.f32 0.0, %v1445
        %v1447 = vpop.f32.mrb[0].mxu0
        %1448 = vmatprep.mubr.f32.mxu0 0.0
        %1449 = vmatmul.mubr.f32.gmra.mrb[0].mxu0 %v1351
        %v1450 = vpop.f32.mrb[0].mxu0
        %v1451 = vadd.f32 0.0, %v1450
        %v1452 = vpop.f32.mrb[0].mxu0
        %1453 = vmatprep.mubr.f32.mxu0 0.0
        %1454 = vmatmul.mubr.f32.gmra.mrb[0].mxu0 %v1352
        %v1455 = vpop.f32.mrb[0].mxu0
        %v1456 = vadd.f32 0.0, %v1455
        %v1457 = vpop.f32.mrb[0].mxu0
        %1458 = vmatprep.mubr.f32.mxu0 0.0
        %1459 = vmatmul.mubr.f32.gmra.mrb[0].mxu0 %v1353
        %v1460 = vpop.f32.mrb[0].mxu0
        %v1461 = vadd.f32 0.0, %v1460
        %v1462 = vpop.f32.mrb[0].mxu0
        %1463 = vmatprep.mubr.f32.mxu0 0.0
        %1464 = vmatmul.mubr.f32.gmra.mrb[0].mxu0 %v1354
        %v1465 = vpop.f32.mrb[0].mxu0
        %v1466 = vadd.f32 0.0, %v1465
        %v1467 = vpop.f32.mrb[0].mxu0
        %1468 = vmatprep.mubr.f32.mxu0 0.0
        %1469 = vmatmul.mubr.f32.gmra.mrb[0].mxu0 %v1355
        %v1470 = vpop.f32.mrb[0].mxu0
        %v1471 = vadd.f32 0.0, %v1470
        %v1472 = vpop.f32.mrb[0].mxu0
        %1473 = vmatprep.mubr.f32.mxu0 0.0
        %1474 = vmatmul.mubr.f32.gmra.mrb[0].mxu0 %v1356
        %v1475 = vpop.f32.mrb[0].mxu0
        %v1476 = vadd.f32 0.0, %v1475
        %v1477 = vpop.f32.mrb[0].mxu0
        %1478 = vdwg.mxu0
        %v1479 = vld [vmem:[#allocation3] sm:$0xff]
        %v1480 = vld [vmem:[#allocation3 + $0x8] sm:$0xff]
        %v1481 = vld [vmem:[#allocation3 + $0x10] sm:$0xff]
        %v1482 = vld [vmem:[#allocation3 + $0x18] sm:$0xff]
        %v1483 = vld [vmem:[#allocation3 + $0x20] sm:$0xff]
        %v1484 = vld [vmem:[#allocation3 + $0x28] sm:$0xff]
        %v1485 = vld [vmem:[#allocation3 + $0x30] sm:$0xff]
        %v1486 = vld [vmem:[#allocation3 + $0x38] sm:$0xff]
        %v1487 = vadd.f32 %v1479, %v1441
        %v1488 = vadd.f32 %v1480, %v1446
        %v1489 = vadd.f32 %v1481, %v1451
        %v1490 = vadd.f32 %v1482, %v1456
        %v1491 = vadd.f32 %v1483, %v1461
        %v1492 = vadd.f32 %v1484, %v1466
        %v1493 = vadd.f32 %v1485, %v1471
        %v1494 = vadd.f32 %v1486, %v1476
        %1495 = vst [vmem:[#allocation3] sm:$0xff] %v1487
        %1496 = vst [vmem:[#allocation3 + $0x8] sm:$0xff] %v1488
        %1497 = vst [vmem:[#allocation3 + $0x10] sm:$0xff] %v1489
        %1498 = vst [vmem:[#allocation3 + $0x18] sm:$0xff] %v1490
        %1499 = vst [vmem:[#allocation3 + $0x20] sm:$0xff] %v1491
        %1500 = vst [vmem:[#allocation3 + $0x28] sm:$0xff] %v1492
        %1501 = vst [vmem:[#allocation3 + $0x30] sm:$0xff] %v1493
        %1502 = vst [vmem:[#allocation3 + $0x38] sm:$0xff] %v1494
        %v1503 = vld [vmem:[%s1348 + $0x1] sm:$0xff]
        %v1504 = vld [vmem:[%s1348 + $0x11] sm:$0xff]
        %v1505 = vld [vmem:[%s1348 + $0x21] sm:$0xff]
        %v1506 = vld [vmem:[%s1348 + $0x31] sm:$0xff]
        %v1507 = vld [vmem:[%s1348 + $0x41] sm:$0xff]
        %v1508 = vld [vmem:[%s1348 + $0x51] sm:$0xff]
        %v1509 = vld [vmem:[%s1348 + $0x61] sm:$0xff]
        %v1510 = vld [vmem:[%s1348 + $0x71] sm:$0xff]
        %s1511 = scalar_lea.vmem [#allocation12], 896
        %v1512 = vld [vmem:[%s1511] sm:$0xff]
        %v1513 = vld [vmem:[%s1511 + $0x8] sm:$0xff]
        %v1514 = vld [vmem:[%s1511 + $0x10] sm:$0xff]
        %v1515 = vld [vmem:[%s1511 + $0x18] sm:$0xff]
        %v1516 = vld [vmem:[%s1511 + $0x20] sm:$0xff]
        %v1517 = vld [vmem:[%s1511 + $0x28] sm:$0xff]
        %v1518 = vld [vmem:[%s1511 + $0x30] sm:$0xff]
        %v1519 = vld [vmem:[%s1511 + $0x38] sm:$0xff]
        %v1520 = vld [vmem:[%s1511 + $0x40] sm:$0xff]
        %v1521 = vld [vmem:[%s1511 + $0x48] sm:$0xff]
        %v1522 = vld [vmem:[%s1511 + $0x50] sm:$0xff]
        %v1523 = vld [vmem:[%s1511 + $0x58] sm:$0xff]
        %v1524 = vld [vmem:[%s1511 + $0x60] sm:$0xff]
        %v1525 = vld [vmem:[%s1511 + $0x68] sm:$0xff]
        %v1526 = vld [vmem:[%s1511 + $0x70] sm:$0xff]
        %v1527 = vld [vmem:[%s1511 + $0x78] sm:$0xff]
        %1528 = vmatprep.subr.mxu0 0.0
        %1529 = vmatpush1.msra.mxu0 %v1512
        %1530 = vmatprep.subr.mxu0 0.0
        %1531 = vmatpush1.msra.mxu0 %v1513
        %1532 = vmatprep.subr.mxu0 0.0
        %1533 = vmatpush1.msra.mxu0 %v1514
        %1534 = vmatprep.subr.mxu0 0.0
        %1535 = vmatpush1.msra.mxu0 %v1515
        %1536 = vmatprep.subr.mxu0 0.0
        %1537 = vmatpush1.msra.mxu0 %v1516
        %1538 = vmatprep.subr.mxu0 0.0
        %1539 = vmatpush1.msra.mxu0 %v1517
        %1540 = vmatprep.subr.mxu0 0.0
        %1541 = vmatpush1.msra.mxu0 %v1518
        %1542 = vmatprep.subr.mxu0 0.0
        %1543 = vmatpush1.msra.mxu0 %v1519
        %1544 = vmatprep.subr.mxu0 0.0
        %1545 = vmatpush1.msra.mxu0 %v1520
        %1546 = vmatprep.subr.mxu0 0.0
        %1547 = vmatpush1.msra.mxu0 %v1521
        %1548 = vmatprep.subr.mxu0 0.0
        %1549 = vmatpush1.msra.mxu0 %v1522
        %1550 = vmatprep.subr.mxu0 0.0
        %1551 = vmatpush1.msra.mxu0 %v1523
        %1552 = vmatprep.subr.mxu0 0.0
        %1553 = vmatpush1.msra.mxu0 %v1524
        %1554 = vmatprep.subr.mxu0 0.0
        %1555 = vmatpush1.msra.mxu0 %v1525
        %1556 = vmatprep.subr.mxu0 0.0
        %1557 = vmatpush1.msra.mxu0 %v1526
        %1558 = vmatprep.subr.mxu0 0.0
        %1559 = vmatpush1.msra.mxu0 %v1527
        %1560 = vmatprep.subr.mxu0 0.0
        %1561 = vmatpush1.msra.mxu0 0.0
        %1562 = vmatprep.subr.mxu0 0.0
        %1563 = vmatpush1.msra.mxu0 0.0
        %1564 = vmatprep.subr.mxu0 0.0
        %1565 = vmatpush1.msra.mxu0 0.0
        %1566 = vmatprep.subr.mxu0 0.0
        %1567 = vmatpush1.msra.mxu0 0.0
        %1568 = vmatprep.subr.mxu0 0.0
        %1569 = vmatpush1.msra.mxu0 0.0
        %1570 = vmatprep.subr.mxu0 0.0
        %1571 = vmatpush1.msra.mxu0 0.0
        %1572 = vmatprep.subr.mxu0 0.0
        %1573 = vmatpush1.msra.mxu0 0.0
        %1574 = vmatprep.subr.mxu0 0.0
        %1575 = vmatpush1.msra.mxu0 0.0
        %1576 = vmatprep.subr.mxu0 0.0
        %1577 = vmatpush1.msra.mxu0 0.0
        %1578 = vmatprep.subr.mxu0 0.0
        %1579 = vmatpush1.msra.mxu0 0.0
        %1580 = vmatprep.subr.mxu0 0.0
        %1581 = vmatpush1.msra.mxu0 0.0
        %1582 = vmatprep.subr.mxu0 0.0
        %1583 = vmatpush1.msra.mxu0 0.0
        %1584 = vmatprep.subr.mxu0 0.0
        %1585 = vmatpush1.msra.mxu0 0.0
        %1586 = vmatprep.subr.mxu0 0.0
        %1587 = vmatpush1.msra.mxu0 0.0
        %1588 = vmatprep.subr.mxu0 0.0
        %1589 = vmatpush1.msra.mxu0 0.0
        %1590 = vmatprep.subr.mxu0 0.0
        %1591 = vmatpush1.msra.mxu0 0.0
        %1592 = vmatprep.mubr.f32.mxu0 0.0
        %1593 = vmatmul.mubr.f32.gmra.mrb[0].mxu0 %v1503
        %v1594 = vpop.f32.mrb[0].mxu0
        %v1595 = vadd.f32 0.0, %v1594
        %v1596 = vpop.f32.mrb[0].mxu0
        %1597 = vmatprep.mubr.f32.mxu0 0.0
        %1598 = vmatmul.mubr.f32.gmra.mrb[0].mxu0 %v1504
        %v1599 = vpop.f32.mrb[0].mxu0
        %v1600 = vadd.f32 0.0, %v1599
        %v1601 = vpop.f32.mrb[0].mxu0
        %1602 = vmatprep.mubr.f32.mxu0 0.0
        %1603 = vmatmul.mubr.f32.gmra.mrb[0].mxu0 %v1505
        %v1604 = vpop.f32.mrb[0].mxu0
        %v1605 = vadd.f32 0.0, %v1604
        %v1606 = vpop.f32.mrb[0].mxu0
        %1607 = vmatprep.mubr.f32.mxu0 0.0
        %1608 = vmatmul.mubr.f32.gmra.mrb[0].mxu0 %v1506
        %v1609 = vpop.f32.mrb[0].mxu0
        %v1610 = vadd.f32 0.0, %v1609
        %v1611 = vpop.f32.mrb[0].mxu0
        %1612 = vmatprep.mubr.f32.mxu0 0.0
        %1613 = vmatmul.mubr.f32.gmra.mrb[0].mxu0 %v1507
        %v1614 = vpop.f32.mrb[0].mxu0
        %v1615 = vadd.f32 0.0, %v1614
        %v1616 = vpop.f32.mrb[0].mxu0
        %1617 = vmatprep.mubr.f32.mxu0 0.0
        %1618 = vmatmul.mubr.f32.gmra.mrb[0].mxu0 %v1508
        %v1619 = vpop.f32.mrb[0].mxu0
        %v1620 = vadd.f32 0.0, %v1619
        %v1621 = vpop.f32.mrb[0].mxu0
        %1622 = vmatprep.mubr.f32.mxu0 0.0
        %1623 = vmatmul.mubr.f32.gmra.mrb[0].mxu0 %v1509
        %v1624 = vpop.f32.mrb[0].mxu0
        %v1625 = vadd.f32 0.0, %v1624
        %v1626 = vpop.f32.mrb[0].mxu0
        %1627 = vmatprep.mubr.f32.mxu0 0.0
        %1628 = vmatmul.mubr.f32.gmra.mrb[0].mxu0 %v1510
        %v1629 = vpop.f32.mrb[0].mxu0
        %v1630 = vadd.f32 0.0, %v1629
        %v1631 = vpop.f32.mrb[0].mxu0
        %1632 = vdwg.mxu0
        %v1633 = vld [vmem:[#allocation3] sm:$0xff]
        %v1634 = vld [vmem:[#allocation3 + $0x8] sm:$0xff]
        %v1635 = vld [vmem:[#allocation3 + $0x10] sm:$0xff]
        %v1636 = vld [vmem:[#allocation3 + $0x18] sm:$0xff]
        %v1637 = vld [vmem:[#allocation3 + $0x20] sm:$0xff]
        %v1638 = vld [vmem:[#allocation3 + $0x28] sm:$0xff]
        %v1639 = vld [vmem:[#allocation3 + $0x30] sm:$0xff]
        %v1640 = vld [vmem:[#allocation3 + $0x38] sm:$0xff]
        %v1641 = vadd.f32 %v1633, %v1595
        %v1642 = vadd.f32 %v1634, %v1600
        %v1643 = vadd.f32 %v1635, %v1605
        %v1644 = vadd.f32 %v1636, %v1610
        %v1645 = vadd.f32 %v1637, %v1615
        %v1646 = vadd.f32 %v1638, %v1620
        %v1647 = vadd.f32 %v1639, %v1625
        %v1648 = vadd.f32 %v1640, %v1630
        %1649 = vst [vmem:[#allocation3] sm:$0xff] %v1641
        %1650 = vst [vmem:[#allocation3 + $0x8] sm:$0xff] %v1642
        %1651 = vst [vmem:[#allocation3 + $0x10] sm:$0xff] %v1643
        %1652 = vst [vmem:[#allocation3 + $0x18] sm:$0xff] %v1644
        %1653 = vst [vmem:[#allocation3 + $0x20] sm:$0xff] %v1645
        %1654 = vst [vmem:[#allocation3 + $0x28] sm:$0xff] %v1646
        %1655 = vst [vmem:[#allocation3 + $0x30] sm:$0xff] %v1647
        %1656 = vst [vmem:[#allocation3 + $0x38] sm:$0xff] %v1648
        %v1657 = vld [vmem:[%s1348 + $0x2] sm:$0xff]
        %v1658 = vld [vmem:[%s1348 + $0x12] sm:$0xff]
        %v1659 = vld [vmem:[%s1348 + $0x22] sm:$0xff]
        %v1660 = vld [vmem:[%s1348 + $0x32] sm:$0xff]
        %v1661 = vld [vmem:[%s1348 + $0x42] sm:$0xff]
        %v1662 = vld [vmem:[%s1348 + $0x52] sm:$0xff]
        %v1663 = vld [vmem:[%s1348 + $0x62] sm:$0xff]
        %v1664 = vld [vmem:[%s1348 + $0x72] sm:$0xff]
        %s1665 = scalar_lea.vmem [#allocation12], 1024
        %v1666 = vld [vmem:[%s1665] sm:$0xff]
        %v1667 = vld [vmem:[%s1665 + $0x8] sm:$0xff]
        %v1668 = vld [vmem:[%s1665 + $0x10] sm:$0xff]
        %v1669 = vld [vmem:[%s1665 + $0x18] sm:$0xff]
        %v1670 = vld [vmem:[%s1665 + $0x20] sm:$0xff]
        %v1671 = vld [vmem:[%s1665 + $0x28] sm:$0xff]
        %v1672 = vld [vmem:[%s1665 + $0x30] sm:$0xff]
        %v1673 = vld [vmem:[%s1665 + $0x38] sm:$0xff]
        %v1674 = vld [vmem:[%s1665 + $0x40] sm:$0xff]
        %v1675 = vld [vmem:[%s1665 + $0x48] sm:$0xff]
        %v1676 = vld [vmem:[%s1665 + $0x50] sm:$0xff]
        %v1677 = vld [vmem:[%s1665 + $0x58] sm:$0xff]
        %v1678 = vld [vmem:[%s1665 + $0x60] sm:$0xff]
        %v1679 = vld [vmem:[%s1665 + $0x68] sm:$0xff]
        %v1680 = vld [vmem:[%s1665 + $0x70] sm:$0xff]
        %v1681 = vld [vmem:[%s1665 + $0x78] sm:$0xff]
        %1682 = vmatprep.subr.mxu0 0.0
        %1683 = vmatpush1.msra.mxu0 %v1666
        %1684 = vmatprep.subr.mxu0 0.0
        %1685 = vmatpush1.msra.mxu0 %v1667
        %1686 = vmatprep.subr.mxu0 0.0
        %1687 = vmatpush1.msra.mxu0 %v1668
        %1688 = vmatprep.subr.mxu0 0.0
        %1689 = vmatpush1.msra.mxu0 %v1669
        %1690 = vmatprep.subr.mxu0 0.0
        %1691 = vmatpush1.msra.mxu0 %v1670
        %1692 = vmatprep.subr.mxu0 0.0
        %1693 = vmatpush1.msra.mxu0 %v1671
        %1694 = vmatprep.subr.mxu0 0.0
        %1695 = vmatpush1.msra.mxu0 %v1672
        %1696 = vmatprep.subr.mxu0 0.0
        %1697 = vmatpush1.msra.mxu0 %v1673
        %1698 = vmatprep.subr.mxu0 0.0
        %1699 = vmatpush1.msra.mxu0 %v1674
        %1700 = vmatprep.subr.mxu0 0.0
        %1701 = vmatpush1.msra.mxu0 %v1675
        %1702 = vmatprep.subr.mxu0 0.0
        %1703 = vmatpush1.msra.mxu0 %v1676
        %1704 = vmatprep.subr.mxu0 0.0
        %1705 = vmatpush1.msra.mxu0 %v1677
        %1706 = vmatprep.subr.mxu0 0.0
        %1707 = vmatpush1.msra.mxu0 %v1678
        %1708 = vmatprep.subr.mxu0 0.0
        %1709 = vmatpush1.msra.mxu0 %v1679
        %1710 = vmatprep.subr.mxu0 0.0
        %1711 = vmatpush1.msra.mxu0 %v1680
        %1712 = vmatprep.subr.mxu0 0.0
        %1713 = vmatpush1.msra.mxu0 %v1681
        %1714 = vmatprep.subr.mxu0 0.0
        %1715 = vmatpush1.msra.mxu0 0.0
        %1716 = vmatprep.subr.mxu0 0.0
        %1717 = vmatpush1.msra.mxu0 0.0
        %1718 = vmatprep.subr.mxu0 0.0
        %1719 = vmatpush1.msra.mxu0 0.0
        %1720 = vmatprep.subr.mxu0 0.0
        %1721 = vmatpush1.msra.mxu0 0.0
        %1722 = vmatprep.subr.mxu0 0.0
        %1723 = vmatpush1.msra.mxu0 0.0
        %1724 = vmatprep.subr.mxu0 0.0
        %1725 = vmatpush1.msra.mxu0 0.0
        %1726 = vmatprep.subr.mxu0 0.0
        %1727 = vmatpush1.msra.mxu0 0.0
        %1728 = vmatprep.subr.mxu0 0.0
        %1729 = vmatpush1.msra.mxu0 0.0
        %1730 = vmatprep.subr.mxu0 0.0
        %1731 = vmatpush1.msra.mxu0 0.0
        %1732 = vmatprep.subr.mxu0 0.0
        %1733 = vmatpush1.msra.mxu0 0.0
        %1734 = vmatprep.subr.mxu0 0.0
        %1735 = vmatpush1.msra.mxu0 0.0
        %1736 = vmatprep.subr.mxu0 0.0
        %1737 = vmatpush1.msra.mxu0 0.0
        %1738 = vmatprep.subr.mxu0 0.0
        %1739 = vmatpush1.msra.mxu0 0.0
        %1740 = vmatprep.subr.mxu0 0.0
        %1741 = vmatpush1.msra.mxu0 0.0
        %1742 = vmatprep.subr.mxu0 0.0
        %1743 = vmatpush1.msra.mxu0 0.0
        %1744 = vmatprep.subr.mxu0 0.0
        %1745 = vmatpush1.msra.mxu0 0.0
        %1746 = vmatprep.mubr.f32.mxu0 0.0
        %1747 = vmatmul.mubr.f32.gmra.mrb[0].mxu0 %v1657
        %v1748 = vpop.f32.mrb[0].mxu0
        %v1749 = vadd.f32 0.0, %v1748
        %v1750 = vpop.f32.mrb[0].mxu0
        %1751 = vmatprep.mubr.f32.mxu0 0.0
        %1752 = vmatmul.mubr.f32.gmra.mrb[0].mxu0 %v1658
        %v1753 = vpop.f32.mrb[0].mxu0
        %v1754 = vadd.f32 0.0, %v1753
        %v1755 = vpop.f32.mrb[0].mxu0
        %1756 = vmatprep.mubr.f32.mxu0 0.0
        %1757 = vmatmul.mubr.f32.gmra.mrb[0].mxu0 %v1659
        %v1758 = vpop.f32.mrb[0].mxu0
        %v1759 = vadd.f32 0.0, %v1758
        %v1760 = vpop.f32.mrb[0].mxu0
        %1761 = vmatprep.mubr.f32.mxu0 0.0
        %1762 = vmatmul.mubr.f32.gmra.mrb[0].mxu0 %v1660
        %v1763 = vpop.f32.mrb[0].mxu0
        %v1764 = vadd.f32 0.0, %v1763
        %v1765 = vpop.f32.mrb[0].mxu0
        %1766 = vmatprep.mubr.f32.mxu0 0.0
        %1767 = vmatmul.mubr.f32.gmra.mrb[0].mxu0 %v1661
        %v1768 = vpop.f32.mrb[0].mxu0
        %v1769 = vadd.f32 0.0, %v1768
        %v1770 = vpop.f32.mrb[0].mxu0
        %1771 = vmatprep.mubr.f32.mxu0 0.0
        %1772 = vmatmul.mubr.f32.gmra.mrb[0].mxu0 %v1662
        %v1773 = vpop.f32.mrb[0].mxu0
        %v1774 = vadd.f32 0.0, %v1773
        %v1775 = vpop.f32.mrb[0].mxu0
        %1776 = vmatprep.mubr.f32.mxu0 0.0
        %1777 = vmatmul.mubr.f32.gmra.mrb[0].mxu0 %v1663
        %v1778 = vpop.f32.mrb[0].mxu0
        %v1779 = vadd.f32 0.0, %v1778
        %v1780 = vpop.f32.mrb[0].mxu0
        %1781 = vmatprep.mubr.f32.mxu0 0.0
        %1782 = vmatmul.mubr.f32.gmra.mrb[0].mxu0 %v1664
        %v1783 = vpop.f32.mrb[0].mxu0
        %v1784 = vadd.f32 0.0, %v1783
        %v1785 = vpop.f32.mrb[0].mxu0
        %1786 = vdwg.mxu0
        %v1787 = vld [vmem:[#allocation3] sm:$0xff]
        %v1788 = vld [vmem:[#allocation3 + $0x8] sm:$0xff]
        %v1789 = vld [vmem:[#allocation3 + $0x10] sm:$0xff]
        %v1790 = vld [vmem:[#allocation3 + $0x18] sm:$0xff]
        %v1791 = vld [vmem:[#allocation3 + $0x20] sm:$0xff]
        %v1792 = vld [vmem:[#allocation3 + $0x28] sm:$0xff]
        %v1793 = vld [vmem:[#allocation3 + $0x30] sm:$0xff]
        %v1794 = vld [vmem:[#allocation3 + $0x38] sm:$0xff]
        %v1795 = vadd.f32 %v1787, %v1749
        %v1796 = vadd.f32 %v1788, %v1754
        %v1797 = vadd.f32 %v1789, %v1759
        %v1798 = vadd.f32 %v1790, %v1764
        %v1799 = vadd.f32 %v1791, %v1769
        %v1800 = vadd.f32 %v1792, %v1774
        %v1801 = vadd.f32 %v1793, %v1779
        %v1802 = vadd.f32 %v1794, %v1784
        %1803 = vst [vmem:[#allocation3] sm:$0xff] %v1795
        %1804 = vst [vmem:[#allocation3 + $0x8] sm:$0xff] %v1796
        %1805 = vst [vmem:[#allocation3 + $0x10] sm:$0xff] %v1797
        %1806 = vst [vmem:[#allocation3 + $0x18] sm:$0xff] %v1798
        %1807 = vst [vmem:[#allocation3 + $0x20] sm:$0xff] %v1799
        %1808 = vst [vmem:[#allocation3 + $0x28] sm:$0xff] %v1800
        %1809 = vst [vmem:[#allocation3 + $0x30] sm:$0xff] %v1801
        %1810 = vst [vmem:[#allocation3 + $0x38] sm:$0xff] %v1802
        %v1811 = vld [vmem:[#allocation3] sm:$0xff]
        %v1812 = vld [vmem:[#allocation3 + $0x8] sm:$0xff]
        %v1813 = vld [vmem:[#allocation3 + $0x10] sm:$0xff]
        %v1814 = vld [vmem:[#allocation3 + $0x18] sm:$0xff]
        %v1815 = vld [vmem:[#allocation3 + $0x20] sm:$0xff]
        %v1816 = vld [vmem:[#allocation3 + $0x28] sm:$0xff]
        %v1817 = vld [vmem:[#allocation3 + $0x30] sm:$0xff]
        %v1818 = vld [vmem:[#allocation3 + $0x38] sm:$0xff]
        %1819 = vst [vmem:[%s325] sm:$0xff] %v1811
        %1820 = vst [vmem:[%s325 + $0x8] sm:$0xff] %v1812
        %1821 = vst [vmem:[%s325 + $0x10] sm:$0xff] %v1813
        %1822 = vst [vmem:[%s325 + $0x18] sm:$0xff] %v1814
        %1823 = vst [vmem:[%s325 + $0x20] sm:$0xff] %v1815
        %1824 = vst [vmem:[%s325 + $0x28] sm:$0xff] %v1816
        %1825 = vst [vmem:[%s325 + $0x30] sm:$0xff] %v1817
        %1826 = vst [vmem:[%s325 + $0x38] sm:$0xff] %v1818
        %v1827 = vadd.f32 %v1811, %v1812
        %v1828 = vadd.f32 %v1827, %v1813
        %v1829 = vadd.f32 %v1828, %v1814
        %v1830 = vadd.f32 %v1829, %v1815
        %v1831 = vadd.f32 %v1830, %v1816
        %v1832 = vadd.f32 %v1831, %v1817
        %v1833 = vadd.f32 %v1832, %v1818
        %v1834 = vrot.slane %v1833, 4
        %v1835 = vadd.f32 %v1833, %v1834
        %v1836 = vrot.slane %v1835, 2
        %v1837 = vadd.f32 %v1835, %v1836
        %v1838 = vrot.slane %v1837, 1
        %v1839 = vadd.f32 %v1837, %v1838
        %v1840 = vmul.f32 %v1811, %v1811
        %v1841 = vmul.f32 %v1812, %v1812
        %v1842 = vmul.f32 %v1813, %v1813
        %v1843 = vmul.f32 %v1814, %v1814
        %v1844 = vmul.f32 %v1815, %v1815
        %v1845 = vmul.f32 %v1816, %v1816
        %v1846 = vmul.f32 %v1817, %v1817
        %v1847 = vmul.f32 %v1818, %v1818
        %v1848 = vadd.f32 %v1840, %v1841
        %v1849 = vadd.f32 %v1848, %v1842
        %v1850 = vadd.f32 %v1849, %v1843
        %v1851 = vadd.f32 %v1850, %v1844
        %v1852 = vadd.f32 %v1851, %v1845
        %v1853 = vadd.f32 %v1852, %v1846
        %v1854 = vadd.f32 %v1853, %v1847
        %v1855 = vrot.slane %v1854, 4
        %v1856 = vadd.f32 %v1854, %v1855
        %v1857 = vrot.slane %v1856, 2
        %v1858 = vadd.f32 %v1856, %v1857
        %v1859 = vrot.slane %v1858, 1
        %v1860 = vadd.f32 %v1858, %v1859
        %vm1861 = vcmask 1040384
        %v1862 = vsel %vm1861, %v1839, %v1860
        %1863 = vst [vmem:[%s332] sm:$0x3] %v1862
        %s1864 = sand.u32 %s147, 1
        %s1865 = scalar_lea.sflag [#allocation6], %s1864
        %s1866 = sand.u32 %s147, 1
        %s1867 = smul.addr %s1866, 64
        %s1868 = scalar_lea.vmem [#allocation13], %s1867
        %s1869 = sand.u32 %s173, 1
        %s1870 = scalar_lea.sflag [#allocation15], %s1869
        %s1871 = sand.u32 %s173, 1
        %s1872 = smul.addr %s1871, 2
        %s1873 = scalar_lea.vmem [#allocation14], %s1872
        // Predicated region
        $region61: #{bottleneck_forward.5} parent=39 // pred_check
          %p1874 = pneg %p157
        $region62: #{bottleneck_forward.5} parent=39 // pred_check_branch
          %1876 = sbr.rel (%p1874) target = $region64
        $region63: #{bottleneck_forward.5} parent=39 // pred_region
          %s1877 = smul.u32 8, %s29
          %s1879 = ssub.s32 1024, 1024
          %1880 = vsyncadd %s1865, %s1879
          %s1881 = smul.addr %s1877, 128
          %s1882 = scalar_lea.hbm %s5, %s1881
          %s1883 = sshll.u32 %s1868, 4
          %s1884 = int_to_ptr.vmem [resolvable:$true] %s1883
          %1889 = dma.vmem_to_hbm [thread:$0]  %s1884, 1024, %s1882, %s1865, 128, 128, 8
        $region64: #{bottleneck_forward.5} parent=39 // pred_fallthru
          _
        // Predicated region
        $region65: #{bottleneck_forward.5} parent=39 // pred_check
          %p1890 = pneg %p183
        $region66: #{bottleneck_forward.5} parent=39 // pred_check_branch
          %1892 = sbr.rel (%p1890) target = $region68
        $region67: #{bottleneck_forward.5} parent=39 // pred_region
          %s1894 = ssub.s32 32, 32
          %1895 = vsyncadd %s1870, %s1894
          %s1896 = smul.addr %s29, 32
          %s1897 = scalar_lea.hbm %s6, %s1896
          %s1899 = sshll.u32 %s1873, 4
          %s1900 = int_to_ptr.vmem [resolvable:$true] %s1899
          %1902 = dma.vmem_to_hbm [thread:$0]  %s1900, 32, %s1897, %s1870
        $region68: #{bottleneck_forward.5} parent=39 // pred_fallthru
          _
      $region40: #{bottleneck_forward.5} parent=5 // pred_fallthru
        _
      %p1903 = scmp.le.s32.totalorder 2, %s24
      // Predicated region
      $region69: #{bottleneck_forward.5} parent=5 // pred_check
        %p1904 = pneg %p1903
      $region70: #{bottleneck_forward.5} parent=5 // pred_check_branch
        %1906 = sbr.rel (%p1904) target = $region72
      $region71: #{bottleneck_forward.5} parent=5 // pred_region
        %s1907 = ssub.s32 %s24, 2
        // Predicated region
        $region73: #{bottleneck_forward.5} parent=71 // pred_check
          %p1908 = pneg %p163
        $region74: #{bottleneck_forward.5} parent=71 // pred_check_branch
          %1910 = sbr.rel (%p1908) target = $region76
        $region75: #{bottleneck_forward.5} parent=71 // pred_region
          %s1911 = sand.u32 %s148, 1
          %s1912 = scalar_lea.sflag [#allocation6], %s1911
          %s1913 = sand.u32 %s148, 1
          %s1914 = smul.addr %s1913, 64
          %s1915 = scalar_lea.vmem [#allocation13], %s1914
          %1916 = dma.done %s1912, 1024
        $region76: #{bottleneck_forward.5} parent=71 // pred_fallthru
          _
        // Predicated region
        $region77: #{bottleneck_forward.5} parent=71 // pred_check
          %p1917 = pneg %p189
        $region78: #{bottleneck_forward.5} parent=71 // pred_check_branch
          %1919 = sbr.rel (%p1917) target = $region80
        $region79: #{bottleneck_forward.5} parent=71 // pred_region
          %s1920 = sand.u32 %s174, 1
          %s1921 = scalar_lea.sflag [#allocation15], %s1920
          %s1922 = sand.u32 %s174, 1
          %s1923 = smul.addr %s1922, 2
          %s1924 = scalar_lea.vmem [#allocation14], %s1923
          %1925 = dma.done %s1921, 32
        $region80: #{bottleneck_forward.5} parent=71 // pred_fallthru
          _
      $region72: #{bottleneck_forward.5} parent=5 // pred_fallthru
        _
    $region6: #{bottleneck_forward.5} parent=1 // loop_footer
      %s28 = sadd.s32 1, %s24
    $region7: #{bottleneck_forward.5} parent=1 // loop_footer_branch
      %23 = sbr.rel target = $region3
    $region8: #{bottleneck_forward.5} parent=1 // loop_exit
      _
    %1926 = vsyncpa [#allocation5], 1
    %s1927 = scalar_lea.sflag [#allocation5], 1
    %1928 = vsyncpa %s1927, 1
    %1929 = vsyncpa [#allocation8], 1
    %1930 = vsyncpa [#allocation11], 1
    %1931 = vsyncpa [#allocation6], 1
    %s1932 = scalar_lea.sflag [#allocation6], 1
    %1933 = vsyncpa %s1932, 1
    %1934 = vsyncpa [#allocation15], 1
    %s1935 = scalar_lea.sflag [#allocation15], 1
    %1936 = vsyncpa %s1935, 1

</llo_original>
